<compile_context>
chip_gen: v7x
topology: tpu7x:2x2x1
jax: 0.10.0
libtpu: 0.0.40
codegen_flags: <defaults>
</compile_context>

<pallas_src>
import functools

import jax
import jax.numpy as jnp
from jax.experimental import pallas as pl
from jax.experimental.pallas import tpu as pltpu

_PACKED_ROW_TILE = 2048          # packed rows per grid step (128 lanes each)
_ROWMAJOR_ROW_TILE = 2048        # sample rows per grid step, large-C path
_ROWMAJOR_X_BLOCK_BYTES = 4 << 20


def _focal_pow(w, gamma):
    """(1 - pt) ** gamma; integer gamma -> repeated VPU multiplies (no EUP pow)."""
    if gamma == 0.0:
        return jnp.ones_like(w)
    if gamma == int(gamma) and 0 < int(gamma) <= 8:
        r = w
        for _ in range(int(gamma) - 1):
            r = r * w
        return r
    # Non-integer gamma: base already clamped into [0, 1].
    return jnp.power(jnp.maximum(w, 0.0), gamma)


def _focal_packed_kernel(x_ref, t_ref, o_ref, *, n_classes, pack, gamma,
                         alpha_vals, rows_valid, trow, out_mode):
    """Small-C path.  x block: (trow, 128) packed rows (pack samples per row),
    t block: (trow, pack) int32 class ids.  No transpose / pad was needed."""
    i = pl.program_id(0)
    x = x_ref[...].astype(jnp.float32)                 # (trow, 128)
    t = t_ref[...]                                     # (trow, pack)

    def class_plane(c):
        # (128, pack) exact one-hot selection: lane g*C+c  ->  sample slot g.
        lane = jax.lax.broadcasted_iota(jnp.int32, (128, pack), 0)
        slot = jax.lax.broadcasted_iota(jnp.int32, (128, pack), 1)
        sel = (lane == slot * n_classes + c).astype(jnp.float32)
        # HIGHEST precision keeps the picked f32 logits exact; MXU is idle here.
        return jnp.dot(x, sel, precision=jax.lax.Precision.HIGHEST,
                       preferred_element_type=jnp.float32)     # (trow, pack)

    # Pass 1: per-sample max over classes (numerical stability).
    m = class_plane(0)
    for c in range(1, n_classes):
        m = jnp.maximum(m, class_plane(c))

    # Pass 2: softmax sums + target selections (planes recomputed; MXU is free,
    # and recomputation keeps the live/spill set small).
    sum_e = jnp.zeros_like(m)
    x_t = jnp.zeros_like(m)
    e_t = jnp.zeros_like(m)
    a_t = jnp.zeros_like(m)
    for c in range(n_classes):
        xc = class_plane(c)
        ec = jnp.exp(xc - m)
        sum_e = sum_e + ec
        is_c = t == c
        x_t = jnp.where(is_c, xc, x_t)
        e_t = jnp.where(is_c, ec, e_t)
        if alpha_vals is not None:
            a_t = jnp.where(is_c, jnp.float32(alpha_vals[c]), a_t)

    lse = m + jnp.log(sum_e)
    ce = jnp.maximum(lse - x_t, 0.0)          # cross entropy, >= 0
    pt = e_t / sum_e                          # == exp(-ce); reuses exp terms
    focal = _focal_pow(1.0 - pt, gamma) * ce
    if alpha_vals is not None:
        focal = focal * a_t

    # Mask packed rows past the (ragged) end of the input.
    row = i * trow + jax.lax.broadcasted_iota(jnp.int32, focal.shape, 0)
    focal = jnp.where(row < rows_valid, focal, 0.0)

    if out_mode == "sum":
        o_ref[...] = jnp.reshape(jnp.sum(focal), (1, 1, 1))
    else:
        o_ref[...] = focal


def _focal_rowmajor_kernel(x_ref, t_ref, a_ref, o_ref, *, gamma, n_valid,
                           trow, out_mode):
    """General path (any C; best for C >= 128).  x block: (trow, C),
    t block: (trow, 1), alpha block: (1, C) resident across grid steps."""
    i = pl.program_id(0)
    x = x_ref[...].astype(jnp.float32)         # (trow, C)
    t = t_ref[...]                             # (trow, 1) int32
    a_row = a_ref[...].astype(jnp.float32)     # (1, C)

    m = jnp.max(x, axis=1, keepdims=True)
    e = jnp.exp(x - m)
    sum_e = jnp.sum(e, axis=1, keepdims=True)

    cls = jax.lax.broadcasted_iota(jnp.int32, x.shape, 1)
    onehot = cls == t
    x_t = jnp.sum(jnp.where(onehot, x, 0.0), axis=1, keepdims=True)
    e_t = jnp.sum(jnp.where(onehot, e, 0.0), axis=1, keepdims=True)
    a_t = jnp.sum(jnp.where(onehot, a_row, 0.0), axis=1, keepdims=True)

    lse = m + jnp.log(sum_e)
    ce = jnp.maximum(lse - x_t, 0.0)
    pt = e_t / sum_e                           # == exp(-ce); one exp fewer
    focal = _focal_pow(1.0 - pt, gamma) * ce * a_t

    row = i * trow + jax.lax.broadcasted_iota(jnp.int32, focal.shape, 0)
    focal = jnp.where(row < n_valid, focal, 0.0)

    if out_mode == "sum":
        o_ref[...] = jnp.reshape(jnp.sum(focal), (1, 1, 1))
    else:
        o_ref[...] = focal


def _focal_per_sample_jax(x, target, gamma, alpha_vals):
    """Plain-JAX per-sample focal loss (used only for the < pack ragged tail)."""
    x = x.astype(jnp.float32)
    logp = jax.nn.log_softmax(x, axis=-1)
    ce = -jnp.take_along_axis(logp, target[:, None].astype(jnp.int32), axis=-1)[:, 0]
    pt = jnp.exp(-ce)
    focal = (1.0 - pt) ** gamma * ce
    if alpha_vals is not None:
        focal = jnp.asarray(alpha_vals, jnp.float32)[target] * focal
    return focal


def focal_loss(x, target, gamma=2.0, alpha=None, reduction="mean"):
    """Pallas focal loss.  x: (N, C) f32/bf16 logits, target: (N,) class ids.
    gamma / alpha / reduction are static config, mirroring the PyTorch module."""
    n, c = x.shape
    target = target.astype(jnp.int32)
    gamma = float(gamma)

    # --- static alpha handling (mirrors the PyTorch constructor) -------------
    if alpha is None:
        alpha_vals = None
    elif isinstance(alpha, (float, int)):
        alpha_vals = (float(alpha), 1.0 - float(alpha))   # binary convention
    else:
        alpha_vals = tuple(float(a) for a in alpha)
    if alpha_vals is not None and len(alpha_vals) < c:
        raise ValueError("alpha must supply one weight per class")

    partial_sum = reduction in ("mean", "sum")
    out_mode = "sum" if partial_sum else "none"
    bpe = x.dtype.itemsize

    pack = 128 // c if (c <= 16 and 128 % c == 0) else 0
    use_packed = pack > 0 and n >= pack

    if use_packed:
        # ------------------ packed small-C path (no transpose, no pad) -------
        n0 = (n // pack) * pack
        r = n0 // pack
        x_body = x if n0 == n else x[:n0]
        t_body = target if n0 == n else target[:n0]
        xp = x_body.reshape(r, 128)      # zero-copy bitcast when n % pack == 0
        tp = t_body.reshape(r, pack)

        trow = r if r <= _PACKED_ROW_TILE else _PACKED_ROW_TILE
        num_tiles = -(-r // trow)

        in_specs = [
            pl.BlockSpec((trow, 128), lambda i: (i, 0)),
            pl.BlockSpec((trow, pack), lambda i: (i, 0)),
        ]
        if partial_sum:
            out_specs = pl.BlockSpec((1, 1, 1), lambda i: (i, 0, 0))
            out_shape = jax.ShapeDtypeStruct((num_tiles, 1, 1), jnp.float32)
        else:
            out_specs = pl.BlockSpec((trow, pack), lambda i: (i, 0))
            out_shape = jax.ShapeDtypeStruct((r, pack), jnp.float32)

        # Need-based VMEM cap: double-buffered blocks (lane-padded) + headroom.
        blk = 2 * (trow * 128 * bpe + trow * 128 * 4
                   + (0 if partial_sum else trow * 128 * 4))
        vmem_limit = int(min(40 << 20, blk + (24 << 20)))

        out = pl.pallas_call(
            functools.partial(_focal_packed_kernel, n_classes=c, pack=pack,
                              gamma=gamma, alpha_vals=alpha_vals,
                              rows_valid=r, trow=trow, out_mode=out_mode),
            out_shape=out_shape,
            grid_spec=pltpu.PrefetchScalarGridSpec(
                num_scalar_prefetch=0,
                grid=(num_tiles,),
                in_specs=in_specs,
                out_specs=out_specs),
            compiler_params=pltpu.CompilerParams(
                # Independent per-step outputs -> both TensorCores on v7x.
                dimension_semantics=("parallel",),
                vmem_limit_bytes=vmem_limit),
        )(xp, tp)

        if partial_sum:
            total = jnp.sum(out)
        else:
            per_sample = out.reshape(n0)

        if n0 != n:
            # TODO(synk): the < pack leftover samples (at most 127) are finished
            # in plain JAX instead of a second Pallas launch.
            tail = _focal_per_sample_jax(x[n0:], target[n0:], gamma, alpha_vals)
            if partial_sum:
                total = total + jnp.sum(tail)
            else:
                per_sample = jnp.concatenate([per_sample, tail])
    else:
        # ------------------ general row-major path (any C) -------------------
        c_lanes = -(-c // 128) * 128
        trow = _ROWMAJOR_X_BLOCK_BYTES // (c_lanes * bpe)
        trow = max(32, min(_ROWMAJOR_ROW_TILE, (trow // 32) * 32))
        if n <= trow:
            trow = n                     # full-dim block (legal for any n)
        num_tiles = -(-n // trow)

        alpha_arr = (jnp.ones((1, c), jnp.float32) if alpha_vals is None else
                     jnp.asarray(alpha_vals[:c], jnp.float32).reshape(1, c))
        t2 = target.reshape(n, 1)

        in_specs = [
            pl.BlockSpec((trow, c), lambda i: (i, 0)),
            pl.BlockSpec((trow, 1), lambda i: (i, 0)),
            pl.BlockSpec((1, c), lambda i: (0, 0)),     # resident across steps
        ]
        if partial_sum:
            out_specs = pl.BlockSpec((1, 1, 1), lambda i: (i, 0, 0))
            out_shape = jax.ShapeDtypeStruct((num_tiles, 1, 1), jnp.float32)
        else:
            out_specs = pl.BlockSpec((trow, 1), lambda i: (i, 0))
            out_shape = jax.ShapeDtypeStruct((n, 1), jnp.float32)

        blk = 2 * (trow * c_lanes * bpe + trow * 128 * 4
                   + (0 if partial_sum else trow * 128 * 4))
        vmem_limit = int(min(40 << 20, blk + (24 << 20)))

        out = pl.pallas_call(
            functools.partial(_focal_rowmajor_kernel, gamma=gamma, n_valid=n,
                              trow=trow, out_mode=out_mode),
            out_shape=out_shape,
            grid_spec=pltpu.PrefetchScalarGridSpec(
                num_scalar_prefetch=0,
                grid=(num_tiles,),
                in_specs=in_specs,
                out_specs=out_specs),
            compiler_params=pltpu.CompilerParams(
                dimension_semantics=("parallel",),
                vmem_limit_bytes=vmem_limit),
        )(x, t2, alpha_arr)

        if partial_sum:
            total = jnp.sum(out)
        else:
            per_sample = out.reshape(n)

    if reduction == "mean":
        return total / n
    if reduction == "sum":
        return total
    return per_sample


def _reference_focal_loss(x, target, gamma, alpha=None, reduction="mean"):
    focal = _focal_per_sample_jax(
        x, target, float(gamma),
        None if alpha is None else tuple(float(a) for a in alpha))
    if reduction == "mean":
        return jnp.mean(focal)
    if reduction == "sum":
        return jnp.sum(focal)
    return focal


if __name__ == "__main__":
    key = jax.random.PRNGKey(0)
    k = jax.random.split(key, 8)

    # Case 1: packed small-C path (C=4), per-class alpha, reduction='mean'.
    n1, c1 = 256, 4
    alpha1 = [0.1, 0.2, 0.3, 0.4]
    x1 = 3.0 * jax.random.normal(k[0], (n1, c1), jnp.float32)
    t1 = jax.random.randint(k[1], (n1,), 0, c1, dtype=jnp.int32)
    got1 = jax.block_until_ready(
        focal_loss(x1, t1, gamma=2.0, alpha=alpha1, reduction="mean"))
    ref1 = _reference_focal_loss(x1, t1, 2.0, alpha1, "mean")
    assert jnp.allclose(got1, ref1, rtol=2e-5, atol=1e-6), (got1, ref1)

    # Case 2: packed path with a ragged tail (N % pack != 0), reduction='none'.
    n2 = 131
    x2 = jax.random.normal(k[2], (n2, c1), jnp.float32)
    t2 = jax.random.randint(k[3], (n2,), 0, c1, dtype=jnp.int32)
    got2 = jax.block_until_ready(
        focal_loss(x2, t2, gamma=2.0, alpha=alpha1, reduction="none"))
    ref2 = _reference_focal_loss(x2, t2, 2.0, alpha1, "none")
    assert got2.shape == (n2,)
    assert jnp.allclose(got2, ref2, rtol=2e-5, atol=1e-6)

    # Case 3: binary case with scalar alpha (-> [alpha, 1 - alpha]), C=2, 'sum'.
    n3, c3 = 64, 2
    x3 = jax.random.normal(k[4], (n3, c3), jnp.float32)
    t3 = jax.random.randint(k[5], (n3,), 0, c3, dtype=jnp.int32)
    got3 = jax.block_until_ready(
        focal_loss(x3, t3, gamma=2.0, alpha=0.25, reduction="sum"))
    ref3 = _reference_focal_loss(x3, t3, 2.0, [0.25, 0.75], "sum")
    assert jnp.allclose(got3, ref3, rtol=2e-5, atol=1e-5), (got3, ref3)

    # Case 4: large-C row-major path, alpha=None, reduction='sum'.
    n4, c4 = 48, 256
    x4 = jax.random.normal(k[6], (n4, c4), jnp.float32)
    t4 = jax.random.randint(k[7], (n4,), 0, c4, dtype=jnp.int32)
    got4 = jax.block_until_ready(
        focal_loss(x4, t4, gamma=2.0, alpha=None, reduction="sum"))
    ref4 = _reference_focal_loss(x4, t4, 2.0, None, "sum")
    assert jnp.allclose(got4, ref4, rtol=2e-5, atol=1e-5), (got4, ref4)

    print("KERNEL_OK")
</pallas_src>

<mosaic_0001>
module attributes {stable_mosaic.version = 11 : i64} {
  func.func @_focal_packed_kernel(%arg0: i32, %arg1: memref<8x128xf32, #tpu.memory_space<vmem>>, %arg2: memref<8x32xi32, #tpu.memory_space<vmem>>, %arg3: memref<1x1x1xf32, #tpu.memory_space<vmem>>) attributes {dimension_semantics = [#tpu.dimension_semantics<parallel>], iteration_bounds = array<i64: 1>, scalar_prefetch = 0 : i64, scratch_operands = 0 : i64, tpu.core_type = #tpu.core_type<tc>, window_params = [{transform_indices = @transform_0, window_bounds = array<i64: 8, 128>}, {transform_indices = @transform_1, window_bounds = array<i64: 8, 32>}, {transform_indices = @transform_2, window_bounds = array<i64: 1, 1, 1>}]} {
    %c0 = arith.constant 0 : index
    %c0_0 = arith.constant 0 : index
    %0 = vector.load %arg1[%c0, %c0_0] : memref<8x128xf32, #tpu.memory_space<vmem>>, vector<8x128xf32>
    %c0_1 = arith.constant 0 : index
    %c0_2 = arith.constant 0 : index
    %1 = vector.load %arg2[%c0_1, %c0_2] : memref<8x32xi32, #tpu.memory_space<vmem>>, vector<8x32xi32>
    %2 = tpu.iota {dimensions = array<i32: 0>} : vector<128x32xi32>
    %3 = tpu.iota {dimensions = array<i32: 1>} : vector<128x32xi32>
    %c4_i32 = arith.constant 4 : i32
    %4 = vector.broadcast %c4_i32 : i32 to vector<128x32xi32>
    %5 = arith.muli %3, %4 : vector<128x32xi32>
    %c0_i32 = arith.constant 0 : i32
    %6 = vector.broadcast %c0_i32 : i32 to vector<128x32xi32>
    %7 = arith.addi %5, %6 : vector<128x32xi32>
    %8 = arith.cmpi eq, %2, %7 : vector<128x32xi32>
    %9 = arith.extui %8 : vector<128x32xi1> to vector<128x32xi32>
    %10 = arith.sitofp %9 : vector<128x32xi32> to vector<128x32xf32>
    %cst = arith.constant dense<0.000000e+00> : vector<8x32xf32>
    %11 = tpu.matmul %0, %10, %cst {dimension_numbers = #tpu.dot_dimension_numbers<[1], [0], [0], [1], [0, 0, 1, 1], [], []>, precision = #tpu.contract_precision<fp32>} : vector<8x128xf32>, vector<128x32xf32>, vector<8x32xf32> -> vector<8x32xf32>
    %12 = tpu.iota {dimensions = array<i32: 0>} : vector<128x32xi32>
    %13 = tpu.iota {dimensions = array<i32: 1>} : vector<128x32xi32>
    %c4_i32_3 = arith.constant 4 : i32
    %14 = vector.broadcast %c4_i32_3 : i32 to vector<128x32xi32>
    %15 = arith.muli %13, %14 : vector<128x32xi32>
    %c1_i32 = arith.constant 1 : i32
    %16 = vector.broadcast %c1_i32 : i32 to vector<128x32xi32>
    %17 = arith.addi %15, %16 : vector<128x32xi32>
    %18 = arith.cmpi eq, %12, %17 : vector<128x32xi32>
    %19 = arith.extui %18 : vector<128x32xi1> to vector<128x32xi32>
    %20 = arith.sitofp %19 : vector<128x32xi32> to vector<128x32xf32>
    %cst_4 = arith.constant dense<0.000000e+00> : vector<8x32xf32>
    %21 = tpu.matmul %0, %20, %cst_4 {dimension_numbers = #tpu.dot_dimension_numbers<[1], [0], [0], [1], [0, 0, 1, 1], [], []>, precision = #tpu.contract_precision<fp32>} : vector<8x128xf32>, vector<128x32xf32>, vector<8x32xf32> -> vector<8x32xf32>
    %22 = arith.maximumf %11, %21 : vector<8x32xf32>
    %23 = tpu.iota {dimensions = array<i32: 0>} : vector<128x32xi32>
    %24 = tpu.iota {dimensions = array<i32: 1>} : vector<128x32xi32>
    %c4_i32_5 = arith.constant 4 : i32
    %25 = vector.broadcast %c4_i32_5 : i32 to vector<128x32xi32>
    %26 = arith.muli %24, %25 : vector<128x32xi32>
    %c2_i32 = arith.constant 2 : i32
    %27 = vector.broadcast %c2_i32 : i32 to vector<128x32xi32>
    %28 = arith.addi %26, %27 : vector<128x32xi32>
    %29 = arith.cmpi eq, %23, %28 : vector<128x32xi32>
    %30 = arith.extui %29 : vector<128x32xi1> to vector<128x32xi32>
    %31 = arith.sitofp %30 : vector<128x32xi32> to vector<128x32xf32>
    %cst_6 = arith.constant dense<0.000000e+00> : vector<8x32xf32>
    %32 = tpu.matmul %0, %31, %cst_6 {dimension_numbers = #tpu.dot_dimension_numbers<[1], [0], [0], [1], [0, 0, 1, 1], [], []>, precision = #tpu.contract_precision<fp32>} : vector<8x128xf32>, vector<128x32xf32>, vector<8x32xf32> -> vector<8x32xf32>
    %33 = arith.maximumf %22, %32 : vector<8x32xf32>
    %34 = tpu.iota {dimensions = array<i32: 0>} : vector<128x32xi32>
    %35 = tpu.iota {dimensions = array<i32: 1>} : vector<128x32xi32>
    %c4_i32_7 = arith.constant 4 : i32
    %36 = vector.broadcast %c4_i32_7 : i32 to vector<128x32xi32>
    %37 = arith.muli %35, %36 : vector<128x32xi32>
    %c3_i32 = arith.constant 3 : i32
    %38 = vector.broadcast %c3_i32 : i32 to vector<128x32xi32>
    %39 = arith.addi %37, %38 : vector<128x32xi32>
    %40 = arith.cmpi eq, %34, %39 : vector<128x32xi32>
    %41 = arith.extui %40 : vector<128x32xi1> to vector<128x32xi32>
    %42 = arith.sitofp %41 : vector<128x32xi32> to vector<128x32xf32>
    %cst_8 = arith.constant dense<0.000000e+00> : vector<8x32xf32>
    %43 = tpu.matmul %0, %42, %cst_8 {dimension_numbers = #tpu.dot_dimension_numbers<[1], [0], [0], [1], [0, 0, 1, 1], [], []>, precision = #tpu.contract_precision<fp32>} : vector<8x128xf32>, vector<128x32xf32>, vector<8x32xf32> -> vector<8x32xf32>
    %44 = arith.maximumf %33, %43 : vector<8x32xf32>
    %cst_9 = arith.constant 0.000000e+00 : f32
    %45 = vector.broadcast %cst_9 : f32 to vector<8x32xf32>
    %cst_10 = arith.constant 0.000000e+00 : f32
    %46 = vector.broadcast %cst_10 : f32 to vector<8x32xf32>
    %cst_11 = arith.constant 0.000000e+00 : f32
    %47 = vector.broadcast %cst_11 : f32 to vector<8x32xf32>
    %cst_12 = arith.constant 0.000000e+00 : f32
    %48 = vector.broadcast %cst_12 : f32 to vector<8x32xf32>
    %49 = tpu.iota {dimensions = array<i32: 0>} : vector<128x32xi32>
    %50 = tpu.iota {dimensions = array<i32: 1>} : vector<128x32xi32>
    %c4_i32_13 = arith.constant 4 : i32
    %51 = vector.broadcast %c4_i32_13 : i32 to vector<128x32xi32>
    %52 = arith.muli %50, %51 : vector<128x32xi32>
    %c0_i32_14 = arith.constant 0 : i32
    %53 = vector.broadcast %c0_i32_14 : i32 to vector<128x32xi32>
    %54 = arith.addi %52, %53 : vector<128x32xi32>
    %55 = arith.cmpi eq, %49, %54 : vector<128x32xi32>
    %56 = arith.extui %55 : vector<128x32xi1> to vector<128x32xi32>
    %57 = arith.sitofp %56 : vector<128x32xi32> to vector<128x32xf32>
    %cst_15 = arith.constant dense<0.000000e+00> : vector<8x32xf32>
    %58 = tpu.matmul %0, %57, %cst_15 {dimension_numbers = #tpu.dot_dimension_numbers<[1], [0], [0], [1], [0, 0, 1, 1], [], []>, precision = #tpu.contract_precision<fp32>} : vector<8x128xf32>, vector<128x32xf32>, vector<8x32xf32> -> vector<8x32xf32>
    %59 = arith.subf %58, %44 : vector<8x32xf32>
    %60 = math.exp %59 : vector<8x32xf32>
    %61 = arith.addf %45, %60 : vector<8x32xf32>
    %c0_i32_16 = arith.constant 0 : i32
    %62 = vector.broadcast %c0_i32_16 : i32 to vector<8x32xi32>
    %63 = arith.cmpi eq, %1, %62 : vector<8x32xi32>
    %64 = arith.select %63, %58, %46 : vector<8x32xi1>, vector<8x32xf32>
    %65 = arith.select %63, %60, %47 : vector<8x32xi1>, vector<8x32xf32>
    %cst_17 = arith.constant 1.000000e-01 : f32
    %66 = vector.broadcast %cst_17 : f32 to vector<8x32xf32>
    %67 = arith.select %63, %66, %48 : vector<8x32xi1>, vector<8x32xf32>
    %68 = tpu.iota {dimensions = array<i32: 0>} : vector<128x32xi32>
    %69 = tpu.iota {dimensions = array<i32: 1>} : vector<128x32xi32>
    %c4_i32_18 = arith.constant 4 : i32
    %70 = vector.broadcast %c4_i32_18 : i32 to vector<128x32xi32>
    %71 = arith.muli %69, %70 : vector<128x32xi32>
    %c1_i32_19 = arith.constant 1 : i32
    %72 = vector.broadcast %c1_i32_19 : i32 to vector<128x32xi32>
    %73 = arith.addi %71, %72 : vector<128x32xi32>
    %74 = arith.cmpi eq, %68, %73 : vector<128x32xi32>
    %75 = arith.extui %74 : vector<128x32xi1> to vector<128x32xi32>
    %76 = arith.sitofp %75 : vector<128x32xi32> to vector<128x32xf32>
    %cst_20 = arith.constant dense<0.000000e+00> : vector<8x32xf32>
    %77 = tpu.matmul %0, %76, %cst_20 {dimension_numbers = #tpu.dot_dimension_numbers<[1], [0], [0], [1], [0, 0, 1, 1], [], []>, precision = #tpu.contract_precision<fp32>} : vector<8x128xf32>, vector<128x32xf32>, vector<8x32xf32> -> vector<8x32xf32>
    %78 = arith.subf %77, %44 : vector<8x32xf32>
    %79 = math.exp %78 : vector<8x32xf32>
    %80 = arith.addf %61, %79 : vector<8x32xf32>
    %c1_i32_21 = arith.constant 1 : i32
    %81 = vector.broadcast %c1_i32_21 : i32 to vector<8x32xi32>
    %82 = arith.cmpi eq, %1, %81 : vector<8x32xi32>
    %83 = arith.select %82, %77, %64 : vector<8x32xi1>, vector<8x32xf32>
    %84 = arith.select %82, %79, %65 : vector<8x32xi1>, vector<8x32xf32>
    %cst_22 = arith.constant 2.000000e-01 : f32
    %85 = vector.broadcast %cst_22 : f32 to vector<8x32xf32>
    %86 = arith.select %82, %85, %67 : vector<8x32xi1>, vector<8x32xf32>
    %87 = tpu.iota {dimensions = array<i32: 0>} : vector<128x32xi32>
    %88 = tpu.iota {dimensions = array<i32: 1>} : vector<128x32xi32>
    %c4_i32_23 = arith.constant 4 : i32
    %89 = vector.broadcast %c4_i32_23 : i32 to vector<128x32xi32>
    %90 = arith.muli %88, %89 : vector<128x32xi32>
    %c2_i32_24 = arith.constant 2 : i32
    %91 = vector.broadcast %c2_i32_24 : i32 to vector<128x32xi32>
    %92 = arith.addi %90, %91 : vector<128x32xi32>
    %93 = arith.cmpi eq, %87, %92 : vector<128x32xi32>
    %94 = arith.extui %93 : vector<128x32xi1> to vector<128x32xi32>
    %95 = arith.sitofp %94 : vector<128x32xi32> to vector<128x32xf32>
    %cst_25 = arith.constant dense<0.000000e+00> : vector<8x32xf32>
    %96 = tpu.matmul %0, %95, %cst_25 {dimension_numbers = #tpu.dot_dimension_numbers<[1], [0], [0], [1], [0, 0, 1, 1], [], []>, precision = #tpu.contract_precision<fp32>} : vector<8x128xf32>, vector<128x32xf32>, vector<8x32xf32> -> vector<8x32xf32>
    %97 = arith.subf %96, %44 : vector<8x32xf32>
    %98 = math.exp %97 : vector<8x32xf32>
    %99 = arith.addf %80, %98 : vector<8x32xf32>
    %c2_i32_26 = arith.constant 2 : i32
    %100 = vector.broadcast %c2_i32_26 : i32 to vector<8x32xi32>
    %101 = arith.cmpi eq, %1, %100 : vector<8x32xi32>
    %102 = arith.select %101, %96, %83 : vector<8x32xi1>, vector<8x32xf32>
    %103 = arith.select %101, %98, %84 : vector<8x32xi1>, vector<8x32xf32>
    %cst_27 = arith.constant 3.000000e-01 : f32
    %104 = vector.broadcast %cst_27 : f32 to vector<8x32xf32>
    %105 = arith.select %101, %104, %86 : vector<8x32xi1>, vector<8x32xf32>
    %106 = tpu.iota {dimensions = array<i32: 0>} : vector<128x32xi32>
    %107 = tpu.iota {dimensions = array<i32: 1>} : vector<128x32xi32>
    %c4_i32_28 = arith.constant 4 : i32
    %108 = vector.broadcast %c4_i32_28 : i32 to vector<128x32xi32>
    %109 = arith.muli %107, %108 : vector<128x32xi32>
    %c3_i32_29 = arith.constant 3 : i32
    %110 = vector.broadcast %c3_i32_29 : i32 to vector<128x32xi32>
    %111 = arith.addi %109, %110 : vector<128x32xi32>
    %112 = arith.cmpi eq, %106, %111 : vector<128x32xi32>
    %113 = arith.extui %112 : vector<128x32xi1> to vector<128x32xi32>
    %114 = arith.sitofp %113 : vector<128x32xi32> to vector<128x32xf32>
    %cst_30 = arith.constant dense<0.000000e+00> : vector<8x32xf32>
    %115 = tpu.matmul %0, %114, %cst_30 {dimension_numbers = #tpu.dot_dimension_numbers<[1], [0], [0], [1], [0, 0, 1, 1], [], []>, precision = #tpu.contract_precision<fp32>} : vector<8x128xf32>, vector<128x32xf32>, vector<8x32xf32> -> vector<8x32xf32>
    %116 = arith.subf %115, %44 : vector<8x32xf32>
    %117 = math.exp %116 : vector<8x32xf32>
    %118 = arith.addf %99, %117 : vector<8x32xf32>
    %c3_i32_31 = arith.constant 3 : i32
    %119 = vector.broadcast %c3_i32_31 : i32 to vector<8x32xi32>
    %120 = arith.cmpi eq, %1, %119 : vector<8x32xi32>
    %121 = arith.select %120, %115, %102 : vector<8x32xi1>, vector<8x32xf32>
    %122 = arith.select %120, %117, %103 : vector<8x32xi1>, vector<8x32xf32>
    %cst_32 = arith.constant 4.000000e-01 : f32
    %123 = vector.broadcast %cst_32 : f32 to vector<8x32xf32>
    %124 = arith.select %120, %123, %105 : vector<8x32xi1>, vector<8x32xf32>
    %125 = math.log %118 : vector<8x32xf32>
    %126 = arith.addf %44, %125 : vector<8x32xf32>
    %127 = arith.subf %126, %121 : vector<8x32xf32>
    %cst_33 = arith.constant 0.000000e+00 : f32
    %128 = vector.broadcast %cst_33 : f32 to vector<8x32xf32>
    %129 = arith.maximumf %127, %128 : vector<8x32xf32>
    %130 = arith.divf %122, %118 : vector<8x32xf32>
    %cst_34 = arith.constant 1.000000e+00 : f32
    %131 = vector.broadcast %cst_34 : f32 to vector<8x32xf32>
    %132 = arith.subf %131, %130 : vector<8x32xf32>
    %133 = arith.mulf %132, %132 : vector<8x32xf32>
    %134 = arith.mulf %133, %129 : vector<8x32xf32>
    %135 = arith.mulf %134, %124 : vector<8x32xf32>
    %c8_i32 = arith.constant 8 : i32
    %136 = arith.muli %arg0, %c8_i32 : i32
    %137 = tpu.iota {dimensions = array<i32: 0>} : vector<8x32xi32>
    %138 = vector.broadcast %136 : i32 to vector<8x32xi32>
    %139 = arith.addi %138, %137 : vector<8x32xi32>
    %c8_i32_35 = arith.constant 8 : i32
    %140 = vector.broadcast %c8_i32_35 : i32 to vector<8x32xi32>
    %141 = arith.cmpi slt, %139, %140 : vector<8x32xi32>
    %cst_36 = arith.constant 0.000000e+00 : f32
    %142 = vector.broadcast %cst_36 : f32 to vector<8x32xf32>
    %143 = arith.select %141, %135, %142 : vector<8x32xi1>, vector<8x32xf32>
    %144 = vector.shape_cast %143 : vector<8x32xf32> to vector<1x8x32xf32>
    %cst_37 = arith.constant dense<0.000000e+00> : vector<1xf32>
    %145 = vector.multi_reduction <add>, %144, %cst_37 [1, 2] : vector<1x8x32xf32> to vector<1xf32>
    %146 = vector.shape_cast %145 : vector<1xf32> to vector<1x1x1xf32>
    %147 = vector.extract %146[0, 0, 0] : f32 from vector<1x1x1xf32>
    %148 = vector.broadcast %147 : f32 to vector<1x1x1xf32>
    %c0_38 = arith.constant 0 : index
    %c0_39 = arith.constant 0 : index
    %c0_40 = arith.constant 0 : index
    %149 = vector.load %arg3[%c0_38, %c0_39, %c0_40] : memref<1x1x1xf32, #tpu.memory_space<vmem>>, vector<1x1x1xf32>
    tpu.vector_store %arg3[%c0_38, %c0_39, %c0_40], %148 {strides = array<i32>} : memref<1x1x1xf32, #tpu.memory_space<vmem>>, vector<1x1x1xf32>,
    return
  }
  func.func @transform_0(%arg0: i32) -> (i32, i32) {
    %c0_i32 = arith.constant 0 : i32
    %c0_i32_0 = arith.constant 0 : i32
    return %arg0, %c0_i32 : i32, i32
  }
  func.func @transform_1(%arg0: i32) -> (i32, i32) {
    %c0_i32 = arith.constant 0 : i32
    %c0_i32_0 = arith.constant 0 : i32
    return %arg0, %c0_i32 : i32, i32
  }
  func.func @transform_2(%arg0: i32) -> (i32, i32, i32) {
    %c0_i32 = arith.constant 0 : i32
    %c0_i32_0 = arith.constant 0 : i32
    %c0_i32_1 = arith.constant 0 : i32
    return %arg0, %c0_i32, %c0_i32_0 : i32, i32, i32
  }
}

</mosaic_0001>

<llo_original>
// kernel: tpu_custom_call.1
$region0: #{tpu_custom_call.1}
  #allocation0 [shape = 'u32[]', space=smem, size = 0x4, offset = 0x4, fixed_abs, tag = 'smem constant byte address 0x4 - core index']
  #allocation1 [shape = 'u32[144,128]{1,0:T(1,128)}', space=vmem, size = 0x12000, scoped, tag = 'internal scratch']
  %s0 = inlined_call_operand.hbm [shape: f32[8,128], index: 0, kind: input, shape index: {}]
  %s1 = inlined_call_operand.hbm [shape: s32[8,32], index: 1, kind: input, shape index: {}]
  %s2 = inlined_call_operand.hbm [shape: f32[1,1,1], index: 2, kind: output, shape index: {}]
  %s3 = sld [smem:[#allocation0]]
  $region26: #{tpu_custom_call.1} parent=0
    _
  %s5 = ssub.s32 1, %s3
  %s6 = scalar_select 0, %s5, %s3
  $region1: #{tpu_custom_call.1} parent=0
    #allocation2 [shape = 'u8[4096]{0}', space=vmem, size = 0x1000, scoped, tag = 'input window, operand 0, single buffered']
    #allocation3 [shape = 's32[1]{0}', space=sflag, size = 0x4, scoped, tag = 'scoped memory for tpu_custom_call.1']
    #allocation4 [shape = 's32[1]{0}', space=sflag, size = 0x4, scoped, tag = 'scoped memory for tpu_custom_call.1']
    #allocation5 [shape = 'u8[4096]{0}', space=vmem, size = 0x1000, scoped, tag = 'input window, operand 1, single buffered']
    #allocation6 [shape = 's32[1]{0}', space=sflag, size = 0x4, scoped, tag = 'scoped memory for tpu_custom_call.1']
    #allocation7 [shape = 'u8[512]{0}', space=vmem, size = 0x400, scoped, tag = 'output window, operand 0, single buffered']
    %7 = vsyncpa [#allocation3], 0
    %8 = vsyncpa [#allocation6], 0
    %9 = vsyncpa [#allocation4], 0
    // Predicated region
    $region2: #{tpu_custom_call.1} parent=1 // pred_check
      _
    $region3: #{tpu_custom_call.1} parent=1 // pred_check_branch
      %11 = sbr.rel (0) target = $region5
    $region4: #{tpu_custom_call.1} parent=1 // pred_region
      %s13 = ssub.s32 128, 128
      %14 = vsyncadd [#allocation3], %s13
      %s16 = sshll.u32 [#allocation2], 4
      %s17 = int_to_ptr.vmem [resolvable:$true] %s16
      %19 = dma.hbm_to_vmem [thread:$0]  %s0, 128, %s17, [#allocation3]
    $region5: #{tpu_custom_call.1} parent=1 // pred_fallthru
      _
    // Predicated region
    $region6: #{tpu_custom_call.1} parent=1 // pred_check
      _
    $region7: #{tpu_custom_call.1} parent=1 // pred_check_branch
      %21 = sbr.rel (0) target = $region9
    $region8: #{tpu_custom_call.1} parent=1 // pred_region
      %s23 = ssub.s32 128, 128
      %24 = vsyncadd [#allocation6], %s23
      %s26 = sshll.u32 [#allocation5], 4
      %s27 = int_to_ptr.vmem [resolvable:$true] %s26
      %29 = dma.hbm_to_vmem [thread:$0]  %s1, 128, %s27, [#allocation6]
    $region9: #{tpu_custom_call.1} parent=1 // pred_fallthru
      _
    // Predicated region
    $region10: #{tpu_custom_call.1} parent=1 // pred_check
      _
    $region11: #{tpu_custom_call.1} parent=1 // pred_check_branch
      %31 = sbr.rel (0) target = $region13
    $region12: #{tpu_custom_call.1} parent=1 // pred_region
      %32 = dma.done [#allocation3], 128
    $region13: #{tpu_custom_call.1} parent=1 // pred_fallthru
      _
    // Predicated region
    $region14: #{tpu_custom_call.1} parent=1 // pred_check
      _
    $region15: #{tpu_custom_call.1} parent=1 // pred_check_branch
      %34 = sbr.rel (0) target = $region17
    $region16: #{tpu_custom_call.1} parent=1 // pred_region
      %35 = dma.done [#allocation6], 128
    $region17: #{tpu_custom_call.1} parent=1 // pred_fallthru
      _
    %v36 = vld [vmem:[#allocation2] sm:$0xff]
    %v37 = vld [vmem:[#allocation5] sm:$0xff]
    %v38 = vlaneseq
    %v39 = vshrl.u32 %v38, 7
    %v40 = vadd.s32 %v39, 8
    %v41 = vadd.s32 %v39, 16
    %v42 = vadd.s32 %v39, 24
    %v43 = vadd.s32 %v39, 32
    %v44 = vadd.s32 %v39, 40
    %v45 = vadd.s32 %v39, 48
    %v46 = vadd.s32 %v39, 56
    %v47 = vadd.s32 %v39, 64
    %v48 = vadd.s32 %v39, 72
    %v49 = vadd.s32 %v39, 80
    %v50 = vadd.s32 %v39, 88
    %v51 = vadd.s32 %v39, 96
    %v52 = vadd.s32 %v39, 104
    %v53 = vadd.s32 %v39, 112
    %v54 = vadd.s32 %v39, 120
    %v55 = vlaneseq
    %v56 = vand.u32 %v55, 127
    %v57 = vmul.u32 %v56, 4
    %vm58 = vcmp.eq.s32.totalorder %v39, %v57
    %vm59 = vcmp.eq.s32.totalorder %v40, %v57
    %vm60 = vcmp.eq.s32.totalorder %v41, %v57
    %vm61 = vcmp.eq.s32.totalorder %v42, %v57
    %vm62 = vcmp.eq.s32.totalorder %v43, %v57
    %vm63 = vcmp.eq.s32.totalorder %v44, %v57
    %vm64 = vcmp.eq.s32.totalorder %v45, %v57
    %vm65 = vcmp.eq.s32.totalorder %v46, %v57
    %vm66 = vcmp.eq.s32.totalorder %v47, %v57
    %vm67 = vcmp.eq.s32.totalorder %v48, %v57
    %vm68 = vcmp.eq.s32.totalorder %v49, %v57
    %vm69 = vcmp.eq.s32.totalorder %v50, %v57
    %vm70 = vcmp.eq.s32.totalorder %v51, %v57
    %vm71 = vcmp.eq.s32.totalorder %v52, %v57
    %vm72 = vcmp.eq.s32.totalorder %v53, %v57
    %vm73 = vcmp.eq.s32.totalorder %v54, %v57
    %v74 = vsel %vm58, 1, 0
    %v75 = vsel %vm59, 1, 0
    %v76 = vsel %vm60, 1, 0
    %v77 = vsel %vm61, 1, 0
    %v78 = vsel %vm62, 1, 0
    %v79 = vsel %vm63, 1, 0
    %v80 = vsel %vm64, 1, 0
    %v81 = vsel %vm65, 1, 0
    %v82 = vsel %vm66, 1, 0
    %v83 = vsel %vm67, 1, 0
    %v84 = vsel %vm68, 1, 0
    %v85 = vsel %vm69, 1, 0
    %v86 = vsel %vm70, 1, 0
    %v87 = vsel %vm71, 1, 0
    %v88 = vsel %vm72, 1, 0
    %v89 = vsel %vm73, 1, 0
    %v90 = vcvt.s32.f32 %v74
    %v91 = vcvt.s32.f32 %v75
    %v92 = vcvt.s32.f32 %v76
    %v93 = vcvt.s32.f32 %v77
    %v94 = vcvt.s32.f32 %v78
    %v95 = vcvt.s32.f32 %v79
    %v96 = vcvt.s32.f32 %v80
    %v97 = vcvt.s32.f32 %v81
    %v98 = vcvt.s32.f32 %v82
    %v99 = vcvt.s32.f32 %v83
    %v100 = vcvt.s32.f32 %v84
    %v101 = vcvt.s32.f32 %v85
    %v102 = vcvt.s32.f32 %v86
    %v103 = vcvt.s32.f32 %v87
    %v104 = vcvt.s32.f32 %v88
    %v105 = vcvt.s32.f32 %v89
    %106 = vmatprep.subr.mxu0 0.0
    %v107 = vand.u32 %v90, 4294901760
    %108 = vmatpush1.msra.mxu0 %v107
    %109 = vmatprep.subr.mxu0 0.0
    %v110 = vand.u32 %v91, 4294901760
    %111 = vmatpush1.msra.mxu0 %v110
    %112 = vmatprep.subr.mxu0 0.0
    %v113 = vand.u32 %v92, 4294901760
    %114 = vmatpush1.msra.mxu0 %v113
    %115 = vmatprep.subr.mxu0 0.0
    %v116 = vand.u32 %v93, 4294901760
    %117 = vmatpush1.msra.mxu0 %v116
    %118 = vmatprep.subr.mxu0 0.0
    %v119 = vand.u32 %v94, 4294901760
    %120 = vmatpush1.msra.mxu0 %v119
    %121 = vmatprep.subr.mxu0 0.0
    %v122 = vand.u32 %v95, 4294901760
    %123 = vmatpush1.msra.mxu0 %v122
    %124 = vmatprep.subr.mxu0 0.0
    %v125 = vand.u32 %v96, 4294901760
    %126 = vmatpush1.msra.mxu0 %v125
    %127 = vmatprep.subr.mxu0 0.0
    %v128 = vand.u32 %v97, 4294901760
    %129 = vmatpush1.msra.mxu0 %v128
    %130 = vmatprep.subr.mxu0 0.0
    %v131 = vand.u32 %v98, 4294901760
    %132 = vmatpush1.msra.mxu0 %v131
    %133 = vmatprep.subr.mxu0 0.0
    %v134 = vand.u32 %v99, 4294901760
    %135 = vmatpush1.msra.mxu0 %v134
    %136 = vmatprep.subr.mxu0 0.0
    %v137 = vand.u32 %v100, 4294901760
    %138 = vmatpush1.msra.mxu0 %v137
    %139 = vmatprep.subr.mxu0 0.0
    %v140 = vand.u32 %v101, 4294901760
    %141 = vmatpush1.msra.mxu0 %v140
    %142 = vmatprep.subr.mxu0 0.0
    %v143 = vand.u32 %v102, 4294901760
    %144 = vmatpush1.msra.mxu0 %v143
    %145 = vmatprep.subr.mxu0 0.0
    %v146 = vand.u32 %v103, 4294901760
    %147 = vmatpush1.msra.mxu0 %v146
    %148 = vmatprep.subr.mxu0 0.0
    %v149 = vand.u32 %v104, 4294901760
    %150 = vmatpush1.msra.mxu0 %v149
    %151 = vmatprep.subr.mxu0 0.0
    %v152 = vand.u32 %v105, 4294901760
    %153 = vmatpush1.msra.mxu0 %v152
    %154 = vmatprep.subr.mxu0 0.0
    %155 = vmatpush1.msra.mxu0 0.0
    %156 = vmatprep.subr.mxu0 0.0
    %157 = vmatpush1.msra.mxu0 0.0
    %158 = vmatprep.subr.mxu0 0.0
    %159 = vmatpush1.msra.mxu0 0.0
    %160 = vmatprep.subr.mxu0 0.0
    %161 = vmatpush1.msra.mxu0 0.0
    %162 = vmatprep.subr.mxu0 0.0
    %163 = vmatpush1.msra.mxu0 0.0
    %164 = vmatprep.subr.mxu0 0.0
    %165 = vmatpush1.msra.mxu0 0.0
    %166 = vmatprep.subr.mxu0 0.0
    %167 = vmatpush1.msra.mxu0 0.0
    %168 = vmatprep.subr.mxu0 0.0
    %169 = vmatpush1.msra.mxu0 0.0
    %170 = vmatprep.subr.mxu0 0.0
    %171 = vmatpush1.msra.mxu0 0.0
    %172 = vmatprep.subr.mxu0 0.0
    %173 = vmatpush1.msra.mxu0 0.0
    %174 = vmatprep.subr.mxu0 0.0
    %175 = vmatpush1.msra.mxu0 0.0
    %176 = vmatprep.subr.mxu0 0.0
    %177 = vmatpush1.msra.mxu0 0.0
    %178 = vmatprep.subr.mxu0 0.0
    %179 = vmatpush1.msra.mxu0 0.0
    %180 = vmatprep.subr.mxu0 0.0
    %181 = vmatpush1.msra.mxu0 0.0
    %182 = vmatprep.subr.mxu0 0.0
    %183 = vmatpush1.msra.mxu0 0.0
    %184 = vmatprep.subr.mxu0 0.0
    %185 = vmatpush1.msra.mxu0 0.0
    %186 = vmatprep.mubr.f32.mxu0 0.0
    %v187 = vand.u32 %v36, 4294901760
    %v188 = vsub.f32 %v36, %v187
    %v189 = vand.u32 %v188, 4294901760
    %v190 = vsub.f32 %v188, %v189
    %v191 = vand.u32 %v190, 4294901760
    %192 = vmatmul.mubr.f32.gmra.mrb[0].mxu0 %v191
    %v193 = vpop.f32.mrb[0].mxu0
    %v194 = vadd.f32 0.0, %v193
    %v195 = vpop.f32.mrb[0].mxu0
    %196 = vdwg.mxu0
    %197 = vmatprep.subr.mxu0 0.0
    %v198 = vand.u32 %v90, 4294901760
    %v199 = vsub.f32 %v90, %v198
    %v200 = vand.u32 %v199, 4294901760
    %v201 = vsub.f32 %v199, %v200
    %v202 = vand.u32 %v201, 4294901760
    %203 = vmatpush1.msra.mxu0 %v202
    %204 = vmatprep.subr.mxu0 0.0
    %v205 = vand.u32 %v91, 4294901760
    %v206 = vsub.f32 %v91, %v205
    %v207 = vand.u32 %v206, 4294901760
    %v208 = vsub.f32 %v206, %v207
    %v209 = vand.u32 %v208, 4294901760
    %210 = vmatpush1.msra.mxu0 %v209
    %211 = vmatprep.subr.mxu0 0.0
    %v212 = vand.u32 %v92, 4294901760
    %v213 = vsub.f32 %v92, %v212
    %v214 = vand.u32 %v213, 4294901760
    %v215 = vsub.f32 %v213, %v214
    %v216 = vand.u32 %v215, 4294901760
    %217 = vmatpush1.msra.mxu0 %v216
    %218 = vmatprep.subr.mxu0 0.0
    %v219 = vand.u32 %v93, 4294901760
    %v220 = vsub.f32 %v93, %v219
    %v221 = vand.u32 %v220, 4294901760
    %v222 = vsub.f32 %v220, %v221
    %v223 = vand.u32 %v222, 4294901760
    %224 = vmatpush1.msra.mxu0 %v223
    %225 = vmatprep.subr.mxu0 0.0
    %v226 = vand.u32 %v94, 4294901760
    %v227 = vsub.f32 %v94, %v226
    %v228 = vand.u32 %v227, 4294901760
    %v229 = vsub.f32 %v227, %v228
    %v230 = vand.u32 %v229, 4294901760
    %231 = vmatpush1.msra.mxu0 %v230
    %232 = vmatprep.subr.mxu0 0.0
    %v233 = vand.u32 %v95, 4294901760
    %v234 = vsub.f32 %v95, %v233
    %v235 = vand.u32 %v234, 4294901760
    %v236 = vsub.f32 %v234, %v235
    %v237 = vand.u32 %v236, 4294901760
    %238 = vmatpush1.msra.mxu0 %v237
    %239 = vmatprep.subr.mxu0 0.0
    %v240 = vand.u32 %v96, 4294901760
    %v241 = vsub.f32 %v96, %v240
    %v242 = vand.u32 %v241, 4294901760
    %v243 = vsub.f32 %v241, %v242
    %v244 = vand.u32 %v243, 4294901760
    %245 = vmatpush1.msra.mxu0 %v244
    %246 = vmatprep.subr.mxu0 0.0
    %v247 = vand.u32 %v97, 4294901760
    %v248 = vsub.f32 %v97, %v247
    %v249 = vand.u32 %v248, 4294901760
    %v250 = vsub.f32 %v248, %v249
    %v251 = vand.u32 %v250, 4294901760
    %252 = vmatpush1.msra.mxu0 %v251
    %253 = vmatprep.subr.mxu0 0.0
    %v254 = vand.u32 %v98, 4294901760
    %v255 = vsub.f32 %v98, %v254
    %v256 = vand.u32 %v255, 4294901760
    %v257 = vsub.f32 %v255, %v256
    %v258 = vand.u32 %v257, 4294901760
    %259 = vmatpush1.msra.mxu0 %v258
    %260 = vmatprep.subr.mxu0 0.0
    %v261 = vand.u32 %v99, 4294901760
    %v262 = vsub.f32 %v99, %v261
    %v263 = vand.u32 %v262, 4294901760
    %v264 = vsub.f32 %v262, %v263
    %v265 = vand.u32 %v264, 4294901760
    %266 = vmatpush1.msra.mxu0 %v265
    %267 = vmatprep.subr.mxu0 0.0
    %v268 = vand.u32 %v100, 4294901760
    %v269 = vsub.f32 %v100, %v268
    %v270 = vand.u32 %v269, 4294901760
    %v271 = vsub.f32 %v269, %v270
    %v272 = vand.u32 %v271, 4294901760
    %273 = vmatpush1.msra.mxu0 %v272
    %274 = vmatprep.subr.mxu0 0.0
    %v275 = vand.u32 %v101, 4294901760
    %v276 = vsub.f32 %v101, %v275
    %v277 = vand.u32 %v276, 4294901760
    %v278 = vsub.f32 %v276, %v277
    %v279 = vand.u32 %v278, 4294901760
    %280 = vmatpush1.msra.mxu0 %v279
    %281 = vmatprep.subr.mxu0 0.0
    %v282 = vand.u32 %v102, 4294901760
    %v283 = vsub.f32 %v102, %v282
    %v284 = vand.u32 %v283, 4294901760
    %v285 = vsub.f32 %v283, %v284
    %v286 = vand.u32 %v285, 4294901760
    %287 = vmatpush1.msra.mxu0 %v286
    %288 = vmatprep.subr.mxu0 0.0
    %v289 = vand.u32 %v103, 4294901760
    %v290 = vsub.f32 %v103, %v289
    %v291 = vand.u32 %v290, 4294901760
    %v292 = vsub.f32 %v290, %v291
    %v293 = vand.u32 %v292, 4294901760
    %294 = vmatpush1.msra.mxu0 %v293
    %295 = vmatprep.subr.mxu0 0.0
    %v296 = vand.u32 %v104, 4294901760
    %v297 = vsub.f32 %v104, %v296
    %v298 = vand.u32 %v297, 4294901760
    %v299 = vsub.f32 %v297, %v298
    %v300 = vand.u32 %v299, 4294901760
    %301 = vmatpush1.msra.mxu0 %v300
    %302 = vmatprep.subr.mxu0 0.0
    %v303 = vand.u32 %v105, 4294901760
    %v304 = vsub.f32 %v105, %v303
    %v305 = vand.u32 %v304, 4294901760
    %v306 = vsub.f32 %v304, %v305
    %v307 = vand.u32 %v306, 4294901760
    %308 = vmatpush1.msra.mxu0 %v307
    %309 = vmatprep.subr.mxu0 0.0
    %310 = vmatpush1.msra.mxu0 0.0
    %311 = vmatprep.subr.mxu0 0.0
    %312 = vmatpush1.msra.mxu0 0.0
    %313 = vmatprep.subr.mxu0 0.0
    %314 = vmatpush1.msra.mxu0 0.0
    %315 = vmatprep.subr.mxu0 0.0
    %316 = vmatpush1.msra.mxu0 0.0
    %317 = vmatprep.subr.mxu0 0.0
    %318 = vmatpush1.msra.mxu0 0.0
    %319 = vmatprep.subr.mxu0 0.0
    %320 = vmatpush1.msra.mxu0 0.0
    %321 = vmatprep.subr.mxu0 0.0
    %322 = vmatpush1.msra.mxu0 0.0
    %323 = vmatprep.subr.mxu0 0.0
    %324 = vmatpush1.msra.mxu0 0.0
    %325 = vmatprep.subr.mxu0 0.0
    %326 = vmatpush1.msra.mxu0 0.0
    %327 = vmatprep.subr.mxu0 0.0
    %328 = vmatpush1.msra.mxu0 0.0
    %329 = vmatprep.subr.mxu0 0.0
    %330 = vmatpush1.msra.mxu0 0.0
    %331 = vmatprep.subr.mxu0 0.0
    %332 = vmatpush1.msra.mxu0 0.0
    %333 = vmatprep.subr.mxu0 0.0
    %334 = vmatpush1.msra.mxu0 0.0
    %335 = vmatprep.subr.mxu0 0.0
    %336 = vmatpush1.msra.mxu0 0.0
    %337 = vmatprep.subr.mxu0 0.0
    %338 = vmatpush1.msra.mxu0 0.0
    %339 = vmatprep.subr.mxu0 0.0
    %340 = vmatpush1.msra.mxu0 0.0
    %341 = vmatprep.mubr.f32.mxu0 0.0
    %v342 = vand.u32 %v36, 4294901760
    %343 = vmatmul.mubr.f32.gmra.mrb[0].mxu0 %v342
    %v344 = vpop.f32.mrb[0].mxu0
    %v345 = vadd.f32 %v194, %v344
    %v346 = vpop.f32.mrb[0].mxu0
    %347 = vdwg.mxu0
    %348 = vmatprep.subr.mxu0 0.0
    %v349 = vand.u32 %v90, 4294901760
    %v350 = vsub.f32 %v90, %v349
    %351 = vmatpush1.msra.mxu0 %v350
    %352 = vmatprep.subr.mxu0 0.0
    %v353 = vand.u32 %v91, 4294901760
    %v354 = vsub.f32 %v91, %v353
    %355 = vmatpush1.msra.mxu0 %v354
    %356 = vmatprep.subr.mxu0 0.0
    %v357 = vand.u32 %v92, 4294901760
    %v358 = vsub.f32 %v92, %v357
    %359 = vmatpush1.msra.mxu0 %v358
    %360 = vmatprep.subr.mxu0 0.0
    %v361 = vand.u32 %v93, 4294901760
    %v362 = vsub.f32 %v93, %v361
    %363 = vmatpush1.msra.mxu0 %v362
    %364 = vmatprep.subr.mxu0 0.0
    %v365 = vand.u32 %v94, 4294901760
    %v366 = vsub.f32 %v94, %v365
    %367 = vmatpush1.msra.mxu0 %v366
    %368 = vmatprep.subr.mxu0 0.0
    %v369 = vand.u32 %v95, 4294901760
    %v370 = vsub.f32 %v95, %v369
    %371 = vmatpush1.msra.mxu0 %v370
    %372 = vmatprep.subr.mxu0 0.0
    %v373 = vand.u32 %v96, 4294901760
    %v374 = vsub.f32 %v96, %v373
    %375 = vmatpush1.msra.mxu0 %v374
    %376 = vmatprep.subr.mxu0 0.0
    %v377 = vand.u32 %v97, 4294901760
    %v378 = vsub.f32 %v97, %v377
    %379 = vmatpush1.msra.mxu0 %v378
    %380 = vmatprep.subr.mxu0 0.0
    %v381 = vand.u32 %v98, 4294901760
    %v382 = vsub.f32 %v98, %v381
    %383 = vmatpush1.msra.mxu0 %v382
    %384 = vmatprep.subr.mxu0 0.0
    %v385 = vand.u32 %v99, 4294901760
    %v386 = vsub.f32 %v99, %v385
    %387 = vmatpush1.msra.mxu0 %v386
    %388 = vmatprep.subr.mxu0 0.0
    %v389 = vand.u32 %v100, 4294901760
    %v390 = vsub.f32 %v100, %v389
    %391 = vmatpush1.msra.mxu0 %v390
    %392 = vmatprep.subr.mxu0 0.0
    %v393 = vand.u32 %v101, 4294901760
    %v394 = vsub.f32 %v101, %v393
    %395 = vmatpush1.msra.mxu0 %v394
    %396 = vmatprep.subr.mxu0 0.0
    %v397 = vand.u32 %v102, 4294901760
    %v398 = vsub.f32 %v102, %v397
    %399 = vmatpush1.msra.mxu0 %v398
    %400 = vmatprep.subr.mxu0 0.0
    %v401 = vand.u32 %v103, 4294901760
    %v402 = vsub.f32 %v103, %v401
    %403 = vmatpush1.msra.mxu0 %v402
    %404 = vmatprep.subr.mxu0 0.0
    %v405 = vand.u32 %v104, 4294901760
    %v406 = vsub.f32 %v104, %v405
    %407 = vmatpush1.msra.mxu0 %v406
    %408 = vmatprep.subr.mxu0 0.0
    %v409 = vand.u32 %v105, 4294901760
    %v410 = vsub.f32 %v105, %v409
    %411 = vmatpush1.msra.mxu0 %v410
    %412 = vmatprep.subr.mxu0 0.0
    %413 = vmatpush1.msra.mxu0 0.0
    %414 = vmatprep.subr.mxu0 0.0
    %415 = vmatpush1.msra.mxu0 0.0
    %416 = vmatprep.subr.mxu0 0.0
    %417 = vmatpush1.msra.mxu0 0.0
    %418 = vmatprep.subr.mxu0 0.0
    %419 = vmatpush1.msra.mxu0 0.0
    %420 = vmatprep.subr.mxu0 0.0
    %421 = vmatpush1.msra.mxu0 0.0
    %422 = vmatprep.subr.mxu0 0.0
    %423 = vmatpush1.msra.mxu0 0.0
    %424 = vmatprep.subr.mxu0 0.0
    %425 = vmatpush1.msra.mxu0 0.0
    %426 = vmatprep.subr.mxu0 0.0
    %427 = vmatpush1.msra.mxu0 0.0
    %428 = vmatprep.subr.mxu0 0.0
    %429 = vmatpush1.msra.mxu0 0.0
    %430 = vmatprep.subr.mxu0 0.0
    %431 = vmatpush1.msra.mxu0 0.0
    %432 = vmatprep.subr.mxu0 0.0
    %433 = vmatpush1.msra.mxu0 0.0
    %434 = vmatprep.subr.mxu0 0.0
    %435 = vmatpush1.msra.mxu0 0.0
    %436 = vmatprep.subr.mxu0 0.0
    %437 = vmatpush1.msra.mxu0 0.0
    %438 = vmatprep.subr.mxu0 0.0
    %439 = vmatpush1.msra.mxu0 0.0
    %440 = vmatprep.subr.mxu0 0.0
    %441 = vmatpush1.msra.mxu0 0.0
    %442 = vmatprep.subr.mxu0 0.0
    %443 = vmatpush1.msra.mxu0 0.0
    %444 = vmatprep.mubr.f32.mxu0 0.0
    %v445 = vand.u32 %v36, 4294901760
    %v446 = vsub.f32 %v36, %v445
    %447 = vmatmul.mubr.f32.gmra.mrb[0].mxu0 %v446
    %v448 = vpop.f32.mrb[0].mxu0
    %v449 = vadd.f32 %v345, %v448
    %v450 = vpop.f32.mrb[0].mxu0
    %451 = vdwg.mxu0
    %452 = vmatprep.subr.mxu0 0.0
    %v453 = vand.u32 %v90, 4294901760
    %454 = vmatpush1.msra.mxu0 %v453
    %455 = vmatprep.subr.mxu0 0.0
    %v456 = vand.u32 %v91, 4294901760
    %457 = vmatpush1.msra.mxu0 %v456
    %458 = vmatprep.subr.mxu0 0.0
    %v459 = vand.u32 %v92, 4294901760
    %460 = vmatpush1.msra.mxu0 %v459
    %461 = vmatprep.subr.mxu0 0.0
    %v462 = vand.u32 %v93, 4294901760
    %463 = vmatpush1.msra.mxu0 %v462
    %464 = vmatprep.subr.mxu0 0.0
    %v465 = vand.u32 %v94, 4294901760
    %466 = vmatpush1.msra.mxu0 %v465
    %467 = vmatprep.subr.mxu0 0.0
    %v468 = vand.u32 %v95, 4294901760
    %469 = vmatpush1.msra.mxu0 %v468
    %470 = vmatprep.subr.mxu0 0.0
    %v471 = vand.u32 %v96, 4294901760
    %472 = vmatpush1.msra.mxu0 %v471
    %473 = vmatprep.subr.mxu0 0.0
    %v474 = vand.u32 %v97, 4294901760
    %475 = vmatpush1.msra.mxu0 %v474
    %476 = vmatprep.subr.mxu0 0.0
    %v477 = vand.u32 %v98, 4294901760
    %478 = vmatpush1.msra.mxu0 %v477
    %479 = vmatprep.subr.mxu0 0.0
    %v480 = vand.u32 %v99, 4294901760
    %481 = vmatpush1.msra.mxu0 %v480
    %482 = vmatprep.subr.mxu0 0.0
    %v483 = vand.u32 %v100, 4294901760
    %484 = vmatpush1.msra.mxu0 %v483
    %485 = vmatprep.subr.mxu0 0.0
    %v486 = vand.u32 %v101, 4294901760
    %487 = vmatpush1.msra.mxu0 %v486
    %488 = vmatprep.subr.mxu0 0.0
    %v489 = vand.u32 %v102, 4294901760
    %490 = vmatpush1.msra.mxu0 %v489
    %491 = vmatprep.subr.mxu0 0.0
    %v492 = vand.u32 %v103, 4294901760
    %493 = vmatpush1.msra.mxu0 %v492
    %494 = vmatprep.subr.mxu0 0.0
    %v495 = vand.u32 %v104, 4294901760
    %496 = vmatpush1.msra.mxu0 %v495
    %497 = vmatprep.subr.mxu0 0.0
    %v498 = vand.u32 %v105, 4294901760
    %499 = vmatpush1.msra.mxu0 %v498
    %500 = vmatprep.subr.mxu0 0.0
    %501 = vmatpush1.msra.mxu0 0.0
    %502 = vmatprep.subr.mxu0 0.0
    %503 = vmatpush1.msra.mxu0 0.0
    %504 = vmatprep.subr.mxu0 0.0
    %505 = vmatpush1.msra.mxu0 0.0
    %506 = vmatprep.subr.mxu0 0.0
    %507 = vmatpush1.msra.mxu0 0.0
    %508 = vmatprep.subr.mxu0 0.0
    %509 = vmatpush1.msra.mxu0 0.0
    %510 = vmatprep.subr.mxu0 0.0
    %511 = vmatpush1.msra.mxu0 0.0
    %512 = vmatprep.subr.mxu0 0.0
    %513 = vmatpush1.msra.mxu0 0.0
    %514 = vmatprep.subr.mxu0 0.0
    %515 = vmatpush1.msra.mxu0 0.0
    %516 = vmatprep.subr.mxu0 0.0
    %517 = vmatpush1.msra.mxu0 0.0
    %518 = vmatprep.subr.mxu0 0.0
    %519 = vmatpush1.msra.mxu0 0.0
    %520 = vmatprep.subr.mxu0 0.0
    %521 = vmatpush1.msra.mxu0 0.0
    %522 = vmatprep.subr.mxu0 0.0
    %523 = vmatpush1.msra.mxu0 0.0
    %524 = vmatprep.subr.mxu0 0.0
    %525 = vmatpush1.msra.mxu0 0.0
    %526 = vmatprep.subr.mxu0 0.0
    %527 = vmatpush1.msra.mxu0 0.0
    %528 = vmatprep.subr.mxu0 0.0
    %529 = vmatpush1.msra.mxu0 0.0
    %530 = vmatprep.subr.mxu0 0.0
    %531 = vmatpush1.msra.mxu0 0.0
    %532 = vmatprep.mubr.f32.mxu0 0.0
    %v533 = vand.u32 %v36, 4294901760
    %v534 = vsub.f32 %v36, %v533
    %v535 = vand.u32 %v534, 4294901760
    %536 = vmatmul.mubr.f32.gmra.mrb[0].mxu0 %v535
    %v537 = vpop.f32.mrb[0].mxu0
    %v538 = vadd.f32 %v449, %v537
    %v539 = vpop.f32.mrb[0].mxu0
    %540 = vdwg.mxu0
    %541 = vmatprep.subr.mxu0 0.0
    %v542 = vand.u32 %v90, 4294901760
    %v543 = vsub.f32 %v90, %v542
    %v544 = vand.u32 %v543, 4294901760
    %545 = vmatpush1.msra.mxu0 %v544
    %546 = vmatprep.subr.mxu0 0.0
    %v547 = vand.u32 %v91, 4294901760
    %v548 = vsub.f32 %v91, %v547
    %v549 = vand.u32 %v548, 4294901760
    %550 = vmatpush1.msra.mxu0 %v549
    %551 = vmatprep.subr.mxu0 0.0
    %v552 = vand.u32 %v92, 4294901760
    %v553 = vsub.f32 %v92, %v552
    %v554 = vand.u32 %v553, 4294901760
    %555 = vmatpush1.msra.mxu0 %v554
    %556 = vmatprep.subr.mxu0 0.0
    %v557 = vand.u32 %v93, 4294901760
    %v558 = vsub.f32 %v93, %v557
    %v559 = vand.u32 %v558, 4294901760
    %560 = vmatpush1.msra.mxu0 %v559
    %561 = vmatprep.subr.mxu0 0.0
    %v562 = vand.u32 %v94, 4294901760
    %v563 = vsub.f32 %v94, %v562
    %v564 = vand.u32 %v563, 4294901760
    %565 = vmatpush1.msra.mxu0 %v564
    %566 = vmatprep.subr.mxu0 0.0
    %v567 = vand.u32 %v95, 4294901760
    %v568 = vsub.f32 %v95, %v567
    %v569 = vand.u32 %v568, 4294901760
    %570 = vmatpush1.msra.mxu0 %v569
    %571 = vmatprep.subr.mxu0 0.0
    %v572 = vand.u32 %v96, 4294901760
    %v573 = vsub.f32 %v96, %v572
    %v574 = vand.u32 %v573, 4294901760
    %575 = vmatpush1.msra.mxu0 %v574
    %576 = vmatprep.subr.mxu0 0.0
    %v577 = vand.u32 %v97, 4294901760
    %v578 = vsub.f32 %v97, %v577
    %v579 = vand.u32 %v578, 4294901760
    %580 = vmatpush1.msra.mxu0 %v579
    %581 = vmatprep.subr.mxu0 0.0
    %v582 = vand.u32 %v98, 4294901760
    %v583 = vsub.f32 %v98, %v582
    %v584 = vand.u32 %v583, 4294901760
    %585 = vmatpush1.msra.mxu0 %v584
    %586 = vmatprep.subr.mxu0 0.0
    %v587 = vand.u32 %v99, 4294901760
    %v588 = vsub.f32 %v99, %v587
    %v589 = vand.u32 %v588, 4294901760
    %590 = vmatpush1.msra.mxu0 %v589
    %591 = vmatprep.subr.mxu0 0.0
    %v592 = vand.u32 %v100, 4294901760
    %v593 = vsub.f32 %v100, %v592
    %v594 = vand.u32 %v593, 4294901760
    %595 = vmatpush1.msra.mxu0 %v594
    %596 = vmatprep.subr.mxu0 0.0
    %v597 = vand.u32 %v101, 4294901760
    %v598 = vsub.f32 %v101, %v597
    %v599 = vand.u32 %v598, 4294901760
    %600 = vmatpush1.msra.mxu0 %v599
    %601 = vmatprep.subr.mxu0 0.0
    %v602 = vand.u32 %v102, 4294901760
    %v603 = vsub.f32 %v102, %v602
    %v604 = vand.u32 %v603, 4294901760
    %605 = vmatpush1.msra.mxu0 %v604
    %606 = vmatprep.subr.mxu0 0.0
    %v607 = vand.u32 %v103, 4294901760
    %v608 = vsub.f32 %v103, %v607
    %v609 = vand.u32 %v608, 4294901760
    %610 = vmatpush1.msra.mxu0 %v609
    %611 = vmatprep.subr.mxu0 0.0
    %v612 = vand.u32 %v104, 4294901760
    %v613 = vsub.f32 %v104, %v612
    %v614 = vand.u32 %v613, 4294901760
    %615 = vmatpush1.msra.mxu0 %v614
    %616 = vmatprep.subr.mxu0 0.0
    %v617 = vand.u32 %v105, 4294901760
    %v618 = vsub.f32 %v105, %v617
    %v619 = vand.u32 %v618, 4294901760
    %620 = vmatpush1.msra.mxu0 %v619
    %621 = vmatprep.subr.mxu0 0.0
    %622 = vmatpush1.msra.mxu0 0.0
    %623 = vmatprep.subr.mxu0 0.0
    %624 = vmatpush1.msra.mxu0 0.0
    %625 = vmatprep.subr.mxu0 0.0
    %626 = vmatpush1.msra.mxu0 0.0
    %627 = vmatprep.subr.mxu0 0.0
    %628 = vmatpush1.msra.mxu0 0.0
    %629 = vmatprep.subr.mxu0 0.0
    %630 = vmatpush1.msra.mxu0 0.0
    %631 = vmatprep.subr.mxu0 0.0
    %632 = vmatpush1.msra.mxu0 0.0
    %633 = vmatprep.subr.mxu0 0.0
    %634 = vmatpush1.msra.mxu0 0.0
    %635 = vmatprep.subr.mxu0 0.0
    %636 = vmatpush1.msra.mxu0 0.0
    %637 = vmatprep.subr.mxu0 0.0
    %638 = vmatpush1.msra.mxu0 0.0
    %639 = vmatprep.subr.mxu0 0.0
    %640 = vmatpush1.msra.mxu0 0.0
    %641 = vmatprep.subr.mxu0 0.0
    %642 = vmatpush1.msra.mxu0 0.0
    %643 = vmatprep.subr.mxu0 0.0
    %644 = vmatpush1.msra.mxu0 0.0
    %645 = vmatprep.subr.mxu0 0.0
    %646 = vmatpush1.msra.mxu0 0.0
    %647 = vmatprep.subr.mxu0 0.0
    %648 = vmatpush1.msra.mxu0 0.0
    %649 = vmatprep.subr.mxu0 0.0
    %650 = vmatpush1.msra.mxu0 0.0
    %651 = vmatprep.subr.mxu0 0.0
    %652 = vmatpush1.msra.mxu0 0.0
    %653 = vmatprep.mubr.f32.mxu0 0.0
    %v654 = vand.u32 %v36, 4294901760
    %655 = vmatmul.mubr.f32.gmra.mrb[0].mxu0 %v654
    %v656 = vpop.f32.mrb[0].mxu0
    %v657 = vadd.f32 %v538, %v656
    %v658 = vpop.f32.mrb[0].mxu0
    %659 = vdwg.mxu0
    %660 = vmatprep.subr.mxu0 0.0
    %v661 = vand.u32 %v90, 4294901760
    %662 = vmatpush1.msra.mxu0 %v661
    %663 = vmatprep.subr.mxu0 0.0
    %v664 = vand.u32 %v91, 4294901760
    %665 = vmatpush1.msra.mxu0 %v664
    %666 = vmatprep.subr.mxu0 0.0
    %v667 = vand.u32 %v92, 4294901760
    %668 = vmatpush1.msra.mxu0 %v667
    %669 = vmatprep.subr.mxu0 0.0
    %v670 = vand.u32 %v93, 4294901760
    %671 = vmatpush1.msra.mxu0 %v670
    %672 = vmatprep.subr.mxu0 0.0
    %v673 = vand.u32 %v94, 4294901760
    %674 = vmatpush1.msra.mxu0 %v673
    %675 = vmatprep.subr.mxu0 0.0
    %v676 = vand.u32 %v95, 4294901760
    %677 = vmatpush1.msra.mxu0 %v676
    %678 = vmatprep.subr.mxu0 0.0
    %v679 = vand.u32 %v96, 4294901760
    %680 = vmatpush1.msra.mxu0 %v679
    %681 = vmatprep.subr.mxu0 0.0
    %v682 = vand.u32 %v97, 4294901760
    %683 = vmatpush1.msra.mxu0 %v682
    %684 = vmatprep.subr.mxu0 0.0
    %v685 = vand.u32 %v98, 4294901760
    %686 = vmatpush1.msra.mxu0 %v685
    %687 = vmatprep.subr.mxu0 0.0
    %v688 = vand.u32 %v99, 4294901760
    %689 = vmatpush1.msra.mxu0 %v688
    %690 = vmatprep.subr.mxu0 0.0
    %v691 = vand.u32 %v100, 4294901760
    %692 = vmatpush1.msra.mxu0 %v691
    %693 = vmatprep.subr.mxu0 0.0
    %v694 = vand.u32 %v101, 4294901760
    %695 = vmatpush1.msra.mxu0 %v694
    %696 = vmatprep.subr.mxu0 0.0
    %v697 = vand.u32 %v102, 4294901760
    %698 = vmatpush1.msra.mxu0 %v697
    %699 = vmatprep.subr.mxu0 0.0
    %v700 = vand.u32 %v103, 4294901760
    %701 = vmatpush1.msra.mxu0 %v700
    %702 = vmatprep.subr.mxu0 0.0
    %v703 = vand.u32 %v104, 4294901760
    %704 = vmatpush1.msra.mxu0 %v703
    %705 = vmatprep.subr.mxu0 0.0
    %v706 = vand.u32 %v105, 4294901760
    %707 = vmatpush1.msra.mxu0 %v706
    %708 = vmatprep.subr.mxu0 0.0
    %709 = vmatpush1.msra.mxu0 0.0
    %710 = vmatprep.subr.mxu0 0.0
    %711 = vmatpush1.msra.mxu0 0.0
    %712 = vmatprep.subr.mxu0 0.0
    %713 = vmatpush1.msra.mxu0 0.0
    %714 = vmatprep.subr.mxu0 0.0
    %715 = vmatpush1.msra.mxu0 0.0
    %716 = vmatprep.subr.mxu0 0.0
    %717 = vmatpush1.msra.mxu0 0.0
    %718 = vmatprep.subr.mxu0 0.0
    %719 = vmatpush1.msra.mxu0 0.0
    %720 = vmatprep.subr.mxu0 0.0
    %721 = vmatpush1.msra.mxu0 0.0
    %722 = vmatprep.subr.mxu0 0.0
    %723 = vmatpush1.msra.mxu0 0.0
    %724 = vmatprep.subr.mxu0 0.0
    %725 = vmatpush1.msra.mxu0 0.0
    %726 = vmatprep.subr.mxu0 0.0
    %727 = vmatpush1.msra.mxu0 0.0
    %728 = vmatprep.subr.mxu0 0.0
    %729 = vmatpush1.msra.mxu0 0.0
    %730 = vmatprep.subr.mxu0 0.0
    %731 = vmatpush1.msra.mxu0 0.0
    %732 = vmatprep.subr.mxu0 0.0
    %733 = vmatpush1.msra.mxu0 0.0
    %734 = vmatprep.subr.mxu0 0.0
    %735 = vmatpush1.msra.mxu0 0.0
    %736 = vmatprep.subr.mxu0 0.0
    %737 = vmatpush1.msra.mxu0 0.0
    %738 = vmatprep.subr.mxu0 0.0
    %739 = vmatpush1.msra.mxu0 0.0
    %740 = vmatprep.mubr.f32.mxu0 0.0
    %v741 = vand.u32 %v36, 4294901760
    %742 = vmatmul.mubr.f32.gmra.mrb[0].mxu0 %v741
    %v743 = vpop.f32.mrb[0].mxu0
    %v744 = vadd.f32 %v657, %v743
    %v745 = vpop.f32.mrb[0].mxu0
    %746 = vdwg.mxu0
    %v747 = vadd.s32 %v57, 1
    %vm748 = vcmp.eq.s32.totalorder %v39, %v747
    %vm749 = vcmp.eq.s32.totalorder %v40, %v747
    %vm750 = vcmp.eq.s32.totalorder %v41, %v747
    %vm751 = vcmp.eq.s32.totalorder %v42, %v747
    %vm752 = vcmp.eq.s32.totalorder %v43, %v747
    %vm753 = vcmp.eq.s32.totalorder %v44, %v747
    %vm754 = vcmp.eq.s32.totalorder %v45, %v747
    %vm755 = vcmp.eq.s32.totalorder %v46, %v747
    %vm756 = vcmp.eq.s32.totalorder %v47, %v747
    %vm757 = vcmp.eq.s32.totalorder %v48, %v747
    %vm758 = vcmp.eq.s32.totalorder %v49, %v747
    %vm759 = vcmp.eq.s32.totalorder %v50, %v747
    %vm760 = vcmp.eq.s32.totalorder %v51, %v747
    %vm761 = vcmp.eq.s32.totalorder %v52, %v747
    %vm762 = vcmp.eq.s32.totalorder %v53, %v747
    %vm763 = vcmp.eq.s32.totalorder %v54, %v747
    %v764 = vsel %vm748, 1, 0
    %v765 = vsel %vm749, 1, 0
    %v766 = vsel %vm750, 1, 0
    %v767 = vsel %vm751, 1, 0
    %v768 = vsel %vm752, 1, 0
    %v769 = vsel %vm753, 1, 0
    %v770 = vsel %vm754, 1, 0
    %v771 = vsel %vm755, 1, 0
    %v772 = vsel %vm756, 1, 0
    %v773 = vsel %vm757, 1, 0
    %v774 = vsel %vm758, 1, 0
    %v775 = vsel %vm759, 1, 0
    %v776 = vsel %vm760, 1, 0
    %v777 = vsel %vm761, 1, 0
    %v778 = vsel %vm762, 1, 0
    %v779 = vsel %vm763, 1, 0
    %v780 = vcvt.s32.f32 %v764
    %v781 = vcvt.s32.f32 %v765
    %v782 = vcvt.s32.f32 %v766
    %v783 = vcvt.s32.f32 %v767
    %v784 = vcvt.s32.f32 %v768
    %v785 = vcvt.s32.f32 %v769
    %v786 = vcvt.s32.f32 %v770
    %v787 = vcvt.s32.f32 %v771
    %v788 = vcvt.s32.f32 %v772
    %v789 = vcvt.s32.f32 %v773
    %v790 = vcvt.s32.f32 %v774
    %v791 = vcvt.s32.f32 %v775
    %v792 = vcvt.s32.f32 %v776
    %v793 = vcvt.s32.f32 %v777
    %v794 = vcvt.s32.f32 %v778
    %v795 = vcvt.s32.f32 %v779
    %796 = vmatprep.subr.mxu0 0.0
    %v797 = vand.u32 %v780, 4294901760
    %798 = vmatpush1.msra.mxu0 %v797
    %799 = vmatprep.subr.mxu0 0.0
    %v800 = vand.u32 %v781, 4294901760
    %801 = vmatpush1.msra.mxu0 %v800
    %802 = vmatprep.subr.mxu0 0.0
    %v803 = vand.u32 %v782, 4294901760
    %804 = vmatpush1.msra.mxu0 %v803
    %805 = vmatprep.subr.mxu0 0.0
    %v806 = vand.u32 %v783, 4294901760
    %807 = vmatpush1.msra.mxu0 %v806
    %808 = vmatprep.subr.mxu0 0.0
    %v809 = vand.u32 %v784, 4294901760
    %810 = vmatpush1.msra.mxu0 %v809
    %811 = vmatprep.subr.mxu0 0.0
    %v812 = vand.u32 %v785, 4294901760
    %813 = vmatpush1.msra.mxu0 %v812
    %814 = vmatprep.subr.mxu0 0.0
    %v815 = vand.u32 %v786, 4294901760
    %816 = vmatpush1.msra.mxu0 %v815
    %817 = vmatprep.subr.mxu0 0.0
    %v818 = vand.u32 %v787, 4294901760
    %819 = vmatpush1.msra.mxu0 %v818
    %820 = vmatprep.subr.mxu0 0.0
    %v821 = vand.u32 %v788, 4294901760
    %822 = vmatpush1.msra.mxu0 %v821
    %823 = vmatprep.subr.mxu0 0.0
    %v824 = vand.u32 %v789, 4294901760
    %825 = vmatpush1.msra.mxu0 %v824
    %826 = vmatprep.subr.mxu0 0.0
    %v827 = vand.u32 %v790, 4294901760
    %828 = vmatpush1.msra.mxu0 %v827
    %829 = vmatprep.subr.mxu0 0.0
    %v830 = vand.u32 %v791, 4294901760
    %831 = vmatpush1.msra.mxu0 %v830
    %832 = vmatprep.subr.mxu0 0.0
    %v833 = vand.u32 %v792, 4294901760
    %834 = vmatpush1.msra.mxu0 %v833
    %835 = vmatprep.subr.mxu0 0.0
    %v836 = vand.u32 %v793, 4294901760
    %837 = vmatpush1.msra.mxu0 %v836
    %838 = vmatprep.subr.mxu0 0.0
    %v839 = vand.u32 %v794, 4294901760
    %840 = vmatpush1.msra.mxu0 %v839
    %841 = vmatprep.subr.mxu0 0.0
    %v842 = vand.u32 %v795, 4294901760
    %843 = vmatpush1.msra.mxu0 %v842
    %844 = vmatprep.subr.mxu0 0.0
    %845 = vmatpush1.msra.mxu0 0.0
    %846 = vmatprep.subr.mxu0 0.0
    %847 = vmatpush1.msra.mxu0 0.0
    %848 = vmatprep.subr.mxu0 0.0
    %849 = vmatpush1.msra.mxu0 0.0
    %850 = vmatprep.subr.mxu0 0.0
    %851 = vmatpush1.msra.mxu0 0.0
    %852 = vmatprep.subr.mxu0 0.0
    %853 = vmatpush1.msra.mxu0 0.0
    %854 = vmatprep.subr.mxu0 0.0
    %855 = vmatpush1.msra.mxu0 0.0
    %856 = vmatprep.subr.mxu0 0.0
    %857 = vmatpush1.msra.mxu0 0.0
    %858 = vmatprep.subr.mxu0 0.0
    %859 = vmatpush1.msra.mxu0 0.0
    %860 = vmatprep.subr.mxu0 0.0
    %861 = vmatpush1.msra.mxu0 0.0
    %862 = vmatprep.subr.mxu0 0.0
    %863 = vmatpush1.msra.mxu0 0.0
    %864 = vmatprep.subr.mxu0 0.0
    %865 = vmatpush1.msra.mxu0 0.0
    %866 = vmatprep.subr.mxu0 0.0
    %867 = vmatpush1.msra.mxu0 0.0
    %868 = vmatprep.subr.mxu0 0.0
    %869 = vmatpush1.msra.mxu0 0.0
    %870 = vmatprep.subr.mxu0 0.0
    %871 = vmatpush1.msra.mxu0 0.0
    %872 = vmatprep.subr.mxu0 0.0
    %873 = vmatpush1.msra.mxu0 0.0
    %874 = vmatprep.subr.mxu0 0.0
    %875 = vmatpush1.msra.mxu0 0.0
    %876 = vmatprep.mubr.f32.mxu0 0.0
    %v877 = vand.u32 %v36, 4294901760
    %v878 = vsub.f32 %v36, %v877
    %v879 = vand.u32 %v878, 4294901760
    %v880 = vsub.f32 %v878, %v879
    %v881 = vand.u32 %v880, 4294901760
    %882 = vmatmul.mubr.f32.gmra.mrb[0].mxu0 %v881
    %v883 = vpop.f32.mrb[0].mxu0
    %v884 = vadd.f32 0.0, %v883
    %v885 = vpop.f32.mrb[0].mxu0
    %886 = vdwg.mxu0
    %887 = vmatprep.subr.mxu0 0.0
    %v888 = vand.u32 %v780, 4294901760
    %v889 = vsub.f32 %v780, %v888
    %v890 = vand.u32 %v889, 4294901760
    %v891 = vsub.f32 %v889, %v890
    %v892 = vand.u32 %v891, 4294901760
    %893 = vmatpush1.msra.mxu0 %v892
    %894 = vmatprep.subr.mxu0 0.0
    %v895 = vand.u32 %v781, 4294901760
    %v896 = vsub.f32 %v781, %v895
    %v897 = vand.u32 %v896, 4294901760
    %v898 = vsub.f32 %v896, %v897
    %v899 = vand.u32 %v898, 4294901760
    %900 = vmatpush1.msra.mxu0 %v899
    %901 = vmatprep.subr.mxu0 0.0
    %v902 = vand.u32 %v782, 4294901760
    %v903 = vsub.f32 %v782, %v902
    %v904 = vand.u32 %v903, 4294901760
    %v905 = vsub.f32 %v903, %v904
    %v906 = vand.u32 %v905, 4294901760
    %907 = vmatpush1.msra.mxu0 %v906
    %908 = vmatprep.subr.mxu0 0.0
    %v909 = vand.u32 %v783, 4294901760
    %v910 = vsub.f32 %v783, %v909
    %v911 = vand.u32 %v910, 4294901760
    %v912 = vsub.f32 %v910, %v911
    %v913 = vand.u32 %v912, 4294901760
    %914 = vmatpush1.msra.mxu0 %v913
    %915 = vmatprep.subr.mxu0 0.0
    %v916 = vand.u32 %v784, 4294901760
    %v917 = vsub.f32 %v784, %v916
    %v918 = vand.u32 %v917, 4294901760
    %v919 = vsub.f32 %v917, %v918
    %v920 = vand.u32 %v919, 4294901760
    %921 = vmatpush1.msra.mxu0 %v920
    %922 = vmatprep.subr.mxu0 0.0
    %v923 = vand.u32 %v785, 4294901760
    %v924 = vsub.f32 %v785, %v923
    %v925 = vand.u32 %v924, 4294901760
    %v926 = vsub.f32 %v924, %v925
    %v927 = vand.u32 %v926, 4294901760
    %928 = vmatpush1.msra.mxu0 %v927
    %929 = vmatprep.subr.mxu0 0.0
    %v930 = vand.u32 %v786, 4294901760
    %v931 = vsub.f32 %v786, %v930
    %v932 = vand.u32 %v931, 4294901760
    %v933 = vsub.f32 %v931, %v932
    %v934 = vand.u32 %v933, 4294901760
    %935 = vmatpush1.msra.mxu0 %v934
    %936 = vmatprep.subr.mxu0 0.0
    %v937 = vand.u32 %v787, 4294901760
    %v938 = vsub.f32 %v787, %v937
    %v939 = vand.u32 %v938, 4294901760
    %v940 = vsub.f32 %v938, %v939
    %v941 = vand.u32 %v940, 4294901760
    %942 = vmatpush1.msra.mxu0 %v941
    %943 = vmatprep.subr.mxu0 0.0
    %v944 = vand.u32 %v788, 4294901760
    %v945 = vsub.f32 %v788, %v944
    %v946 = vand.u32 %v945, 4294901760
    %v947 = vsub.f32 %v945, %v946
    %v948 = vand.u32 %v947, 4294901760
    %949 = vmatpush1.msra.mxu0 %v948
    %950 = vmatprep.subr.mxu0 0.0
    %v951 = vand.u32 %v789, 4294901760
    %v952 = vsub.f32 %v789, %v951
    %v953 = vand.u32 %v952, 4294901760
    %v954 = vsub.f32 %v952, %v953
    %v955 = vand.u32 %v954, 4294901760
    %956 = vmatpush1.msra.mxu0 %v955
    %957 = vmatprep.subr.mxu0 0.0
    %v958 = vand.u32 %v790, 4294901760
    %v959 = vsub.f32 %v790, %v958
    %v960 = vand.u32 %v959, 4294901760
    %v961 = vsub.f32 %v959, %v960
    %v962 = vand.u32 %v961, 4294901760
    %963 = vmatpush1.msra.mxu0 %v962
    %964 = vmatprep.subr.mxu0 0.0
    %v965 = vand.u32 %v791, 4294901760
    %v966 = vsub.f32 %v791, %v965
    %v967 = vand.u32 %v966, 4294901760
    %v968 = vsub.f32 %v966, %v967
    %v969 = vand.u32 %v968, 4294901760
    %970 = vmatpush1.msra.mxu0 %v969
    %971 = vmatprep.subr.mxu0 0.0
    %v972 = vand.u32 %v792, 4294901760
    %v973 = vsub.f32 %v792, %v972
    %v974 = vand.u32 %v973, 4294901760
    %v975 = vsub.f32 %v973, %v974
    %v976 = vand.u32 %v975, 4294901760
    %977 = vmatpush1.msra.mxu0 %v976
    %978 = vmatprep.subr.mxu0 0.0
    %v979 = vand.u32 %v793, 4294901760
    %v980 = vsub.f32 %v793, %v979
    %v981 = vand.u32 %v980, 4294901760
    %v982 = vsub.f32 %v980, %v981
    %v983 = vand.u32 %v982, 4294901760
    %984 = vmatpush1.msra.mxu0 %v983
    %985 = vmatprep.subr.mxu0 0.0
    %v986 = vand.u32 %v794, 4294901760
    %v987 = vsub.f32 %v794, %v986
    %v988 = vand.u32 %v987, 4294901760
    %v989 = vsub.f32 %v987, %v988
    %v990 = vand.u32 %v989, 4294901760
    %991 = vmatpush1.msra.mxu0 %v990
    %992 = vmatprep.subr.mxu0 0.0
    %v993 = vand.u32 %v795, 4294901760
    %v994 = vsub.f32 %v795, %v993
    %v995 = vand.u32 %v994, 4294901760
    %v996 = vsub.f32 %v994, %v995
    %v997 = vand.u32 %v996, 4294901760
    %998 = vmatpush1.msra.mxu0 %v997
    %999 = vmatprep.subr.mxu0 0.0
    %1000 = vmatpush1.msra.mxu0 0.0
    %1001 = vmatprep.subr.mxu0 0.0
    %1002 = vmatpush1.msra.mxu0 0.0
    %1003 = vmatprep.subr.mxu0 0.0
    %1004 = vmatpush1.msra.mxu0 0.0
    %1005 = vmatprep.subr.mxu0 0.0
    %1006 = vmatpush1.msra.mxu0 0.0
    %1007 = vmatprep.subr.mxu0 0.0
    %1008 = vmatpush1.msra.mxu0 0.0
    %1009 = vmatprep.subr.mxu0 0.0
    %1010 = vmatpush1.msra.mxu0 0.0
    %1011 = vmatprep.subr.mxu0 0.0
    %1012 = vmatpush1.msra.mxu0 0.0
    %1013 = vmatprep.subr.mxu0 0.0
    %1014 = vmatpush1.msra.mxu0 0.0
    %1015 = vmatprep.subr.mxu0 0.0
    %1016 = vmatpush1.msra.mxu0 0.0
    %1017 = vmatprep.subr.mxu0 0.0
    %1018 = vmatpush1.msra.mxu0 0.0
    %1019 = vmatprep.subr.mxu0 0.0
    %1020 = vmatpush1.msra.mxu0 0.0
    %1021 = vmatprep.subr.mxu0 0.0
    %1022 = vmatpush1.msra.mxu0 0.0
    %1023 = vmatprep.subr.mxu0 0.0
    %1024 = vmatpush1.msra.mxu0 0.0
    %1025 = vmatprep.subr.mxu0 0.0
    %1026 = vmatpush1.msra.mxu0 0.0
    %1027 = vmatprep.subr.mxu0 0.0
    %1028 = vmatpush1.msra.mxu0 0.0
    %1029 = vmatprep.subr.mxu0 0.0
    %1030 = vmatpush1.msra.mxu0 0.0
    %1031 = vmatprep.mubr.f32.mxu0 0.0
    %v1032 = vand.u32 %v36, 4294901760
    %1033 = vmatmul.mubr.f32.gmra.mrb[0].mxu0 %v1032
    %v1034 = vpop.f32.mrb[0].mxu0
    %v1035 = vadd.f32 %v884, %v1034
    %v1036 = vpop.f32.mrb[0].mxu0
    %1037 = vdwg.mxu0
    %1038 = vmatprep.subr.mxu0 0.0
    %v1039 = vand.u32 %v780, 4294901760
    %v1040 = vsub.f32 %v780, %v1039
    %1041 = vmatpush1.msra.mxu0 %v1040
    %1042 = vmatprep.subr.mxu0 0.0
    %v1043 = vand.u32 %v781, 4294901760
    %v1044 = vsub.f32 %v781, %v1043
    %1045 = vmatpush1.msra.mxu0 %v1044
    %1046 = vmatprep.subr.mxu0 0.0
    %v1047 = vand.u32 %v782, 4294901760
    %v1048 = vsub.f32 %v782, %v1047
    %1049 = vmatpush1.msra.mxu0 %v1048
    %1050 = vmatprep.subr.mxu0 0.0
    %v1051 = vand.u32 %v783, 4294901760
    %v1052 = vsub.f32 %v783, %v1051
    %1053 = vmatpush1.msra.mxu0 %v1052
    %1054 = vmatprep.subr.mxu0 0.0
    %v1055 = vand.u32 %v784, 4294901760
    %v1056 = vsub.f32 %v784, %v1055
    %1057 = vmatpush1.msra.mxu0 %v1056
    %1058 = vmatprep.subr.mxu0 0.0
    %v1059 = vand.u32 %v785, 4294901760
    %v1060 = vsub.f32 %v785, %v1059
    %1061 = vmatpush1.msra.mxu0 %v1060
    %1062 = vmatprep.subr.mxu0 0.0
    %v1063 = vand.u32 %v786, 4294901760
    %v1064 = vsub.f32 %v786, %v1063
    %1065 = vmatpush1.msra.mxu0 %v1064
    %1066 = vmatprep.subr.mxu0 0.0
    %v1067 = vand.u32 %v787, 4294901760
    %v1068 = vsub.f32 %v787, %v1067
    %1069 = vmatpush1.msra.mxu0 %v1068
    %1070 = vmatprep.subr.mxu0 0.0
    %v1071 = vand.u32 %v788, 4294901760
    %v1072 = vsub.f32 %v788, %v1071
    %1073 = vmatpush1.msra.mxu0 %v1072
    %1074 = vmatprep.subr.mxu0 0.0
    %v1075 = vand.u32 %v789, 4294901760
    %v1076 = vsub.f32 %v789, %v1075
    %1077 = vmatpush1.msra.mxu0 %v1076
    %1078 = vmatprep.subr.mxu0 0.0
    %v1079 = vand.u32 %v790, 4294901760
    %v1080 = vsub.f32 %v790, %v1079
    %1081 = vmatpush1.msra.mxu0 %v1080
    %1082 = vmatprep.subr.mxu0 0.0
    %v1083 = vand.u32 %v791, 4294901760
    %v1084 = vsub.f32 %v791, %v1083
    %1085 = vmatpush1.msra.mxu0 %v1084
    %1086 = vmatprep.subr.mxu0 0.0
    %v1087 = vand.u32 %v792, 4294901760
    %v1088 = vsub.f32 %v792, %v1087
    %1089 = vmatpush1.msra.mxu0 %v1088
    %1090 = vmatprep.subr.mxu0 0.0
    %v1091 = vand.u32 %v793, 4294901760
    %v1092 = vsub.f32 %v793, %v1091
    %1093 = vmatpush1.msra.mxu0 %v1092
    %1094 = vmatprep.subr.mxu0 0.0
    %v1095 = vand.u32 %v794, 4294901760
    %v1096 = vsub.f32 %v794, %v1095
    %1097 = vmatpush1.msra.mxu0 %v1096
    %1098 = vmatprep.subr.mxu0 0.0
    %v1099 = vand.u32 %v795, 4294901760
    %v1100 = vsub.f32 %v795, %v1099
    %1101 = vmatpush1.msra.mxu0 %v1100
    %1102 = vmatprep.subr.mxu0 0.0
    %1103 = vmatpush1.msra.mxu0 0.0
    %1104 = vmatprep.subr.mxu0 0.0
    %1105 = vmatpush1.msra.mxu0 0.0
    %1106 = vmatprep.subr.mxu0 0.0
    %1107 = vmatpush1.msra.mxu0 0.0
    %1108 = vmatprep.subr.mxu0 0.0
    %1109 = vmatpush1.msra.mxu0 0.0
    %1110 = vmatprep.subr.mxu0 0.0
    %1111 = vmatpush1.msra.mxu0 0.0
    %1112 = vmatprep.subr.mxu0 0.0
    %1113 = vmatpush1.msra.mxu0 0.0
    %1114 = vmatprep.subr.mxu0 0.0
    %1115 = vmatpush1.msra.mxu0 0.0
    %1116 = vmatprep.subr.mxu0 0.0
    %1117 = vmatpush1.msra.mxu0 0.0
    %1118 = vmatprep.subr.mxu0 0.0
    %1119 = vmatpush1.msra.mxu0 0.0
    %1120 = vmatprep.subr.mxu0 0.0
    %1121 = vmatpush1.msra.mxu0 0.0
    %1122 = vmatprep.subr.mxu0 0.0
    %1123 = vmatpush1.msra.mxu0 0.0
    %1124 = vmatprep.subr.mxu0 0.0
    %1125 = vmatpush1.msra.mxu0 0.0
    %1126 = vmatprep.subr.mxu0 0.0
    %1127 = vmatpush1.msra.mxu0 0.0
    %1128 = vmatprep.subr.mxu0 0.0
    %1129 = vmatpush1.msra.mxu0 0.0
    %1130 = vmatprep.subr.mxu0 0.0
    %1131 = vmatpush1.msra.mxu0 0.0
    %1132 = vmatprep.subr.mxu0 0.0
    %1133 = vmatpush1.msra.mxu0 0.0
    %1134 = vmatprep.mubr.f32.mxu0 0.0
    %v1135 = vand.u32 %v36, 4294901760
    %v1136 = vsub.f32 %v36, %v1135
    %1137 = vmatmul.mubr.f32.gmra.mrb[0].mxu0 %v1136
    %v1138 = vpop.f32.mrb[0].mxu0
    %v1139 = vadd.f32 %v1035, %v1138
    %v1140 = vpop.f32.mrb[0].mxu0
    %1141 = vdwg.mxu0
    %1142 = vmatprep.subr.mxu0 0.0
    %v1143 = vand.u32 %v780, 4294901760
    %1144 = vmatpush1.msra.mxu0 %v1143
    %1145 = vmatprep.subr.mxu0 0.0
    %v1146 = vand.u32 %v781, 4294901760
    %1147 = vmatpush1.msra.mxu0 %v1146
    %1148 = vmatprep.subr.mxu0 0.0
    %v1149 = vand.u32 %v782, 4294901760
    %1150 = vmatpush1.msra.mxu0 %v1149
    %1151 = vmatprep.subr.mxu0 0.0
    %v1152 = vand.u32 %v783, 4294901760
    %1153 = vmatpush1.msra.mxu0 %v1152
    %1154 = vmatprep.subr.mxu0 0.0
    %v1155 = vand.u32 %v784, 4294901760
    %1156 = vmatpush1.msra.mxu0 %v1155
    %1157 = vmatprep.subr.mxu0 0.0
    %v1158 = vand.u32 %v785, 4294901760
    %1159 = vmatpush1.msra.mxu0 %v1158
    %1160 = vmatprep.subr.mxu0 0.0
    %v1161 = vand.u32 %v786, 4294901760
    %1162 = vmatpush1.msra.mxu0 %v1161
    %1163 = vmatprep.subr.mxu0 0.0
    %v1164 = vand.u32 %v787, 4294901760
    %1165 = vmatpush1.msra.mxu0 %v1164
    %1166 = vmatprep.subr.mxu0 0.0
    %v1167 = vand.u32 %v788, 4294901760
    %1168 = vmatpush1.msra.mxu0 %v1167
    %1169 = vmatprep.subr.mxu0 0.0
    %v1170 = vand.u32 %v789, 4294901760
    %1171 = vmatpush1.msra.mxu0 %v1170
    %1172 = vmatprep.subr.mxu0 0.0
    %v1173 = vand.u32 %v790, 4294901760
    %1174 = vmatpush1.msra.mxu0 %v1173
    %1175 = vmatprep.subr.mxu0 0.0
    %v1176 = vand.u32 %v791, 4294901760
    %1177 = vmatpush1.msra.mxu0 %v1176
    %1178 = vmatprep.subr.mxu0 0.0
    %v1179 = vand.u32 %v792, 4294901760
    %1180 = vmatpush1.msra.mxu0 %v1179
    %1181 = vmatprep.subr.mxu0 0.0
    %v1182 = vand.u32 %v793, 4294901760
    %1183 = vmatpush1.msra.mxu0 %v1182
    %1184 = vmatprep.subr.mxu0 0.0
    %v1185 = vand.u32 %v794, 4294901760
    %1186 = vmatpush1.msra.mxu0 %v1185
    %1187 = vmatprep.subr.mxu0 0.0
    %v1188 = vand.u32 %v795, 4294901760
    %1189 = vmatpush1.msra.mxu0 %v1188
    %1190 = vmatprep.subr.mxu0 0.0
    %1191 = vmatpush1.msra.mxu0 0.0
    %1192 = vmatprep.subr.mxu0 0.0
    %1193 = vmatpush1.msra.mxu0 0.0
    %1194 = vmatprep.subr.mxu0 0.0
    %1195 = vmatpush1.msra.mxu0 0.0
    %1196 = vmatprep.subr.mxu0 0.0
    %1197 = vmatpush1.msra.mxu0 0.0
    %1198 = vmatprep.subr.mxu0 0.0
    %1199 = vmatpush1.msra.mxu0 0.0
    %1200 = vmatprep.subr.mxu0 0.0
    %1201 = vmatpush1.msra.mxu0 0.0
    %1202 = vmatprep.subr.mxu0 0.0
    %1203 = vmatpush1.msra.mxu0 0.0
    %1204 = vmatprep.subr.mxu0 0.0
    %1205 = vmatpush1.msra.mxu0 0.0
    %1206 = vmatprep.subr.mxu0 0.0
    %1207 = vmatpush1.msra.mxu0 0.0
    %1208 = vmatprep.subr.mxu0 0.0
    %1209 = vmatpush1.msra.mxu0 0.0
    %1210 = vmatprep.subr.mxu0 0.0
    %1211 = vmatpush1.msra.mxu0 0.0
    %1212 = vmatprep.subr.mxu0 0.0
    %1213 = vmatpush1.msra.mxu0 0.0
    %1214 = vmatprep.subr.mxu0 0.0
    %1215 = vmatpush1.msra.mxu0 0.0
    %1216 = vmatprep.subr.mxu0 0.0
    %1217 = vmatpush1.msra.mxu0 0.0
    %1218 = vmatprep.subr.mxu0 0.0
    %1219 = vmatpush1.msra.mxu0 0.0
    %1220 = vmatprep.subr.mxu0 0.0
    %1221 = vmatpush1.msra.mxu0 0.0
    %1222 = vmatprep.mubr.f32.mxu0 0.0
    %v1223 = vand.u32 %v36, 4294901760
    %v1224 = vsub.f32 %v36, %v1223
    %v1225 = vand.u32 %v1224, 4294901760
    %1226 = vmatmul.mubr.f32.gmra.mrb[0].mxu0 %v1225
    %v1227 = vpop.f32.mrb[0].mxu0
    %v1228 = vadd.f32 %v1139, %v1227
    %v1229 = vpop.f32.mrb[0].mxu0
    %1230 = vdwg.mxu0
    %1231 = vmatprep.subr.mxu0 0.0
    %v1232 = vand.u32 %v780, 4294901760
    %v1233 = vsub.f32 %v780, %v1232
    %v1234 = vand.u32 %v1233, 4294901760
    %1235 = vmatpush1.msra.mxu0 %v1234
    %1236 = vmatprep.subr.mxu0 0.0
    %v1237 = vand.u32 %v781, 4294901760
    %v1238 = vsub.f32 %v781, %v1237
    %v1239 = vand.u32 %v1238, 4294901760
    %1240 = vmatpush1.msra.mxu0 %v1239
    %1241 = vmatprep.subr.mxu0 0.0
    %v1242 = vand.u32 %v782, 4294901760
    %v1243 = vsub.f32 %v782, %v1242
    %v1244 = vand.u32 %v1243, 4294901760
    %1245 = vmatpush1.msra.mxu0 %v1244
    %1246 = vmatprep.subr.mxu0 0.0
    %v1247 = vand.u32 %v783, 4294901760
    %v1248 = vsub.f32 %v783, %v1247
    %v1249 = vand.u32 %v1248, 4294901760
    %1250 = vmatpush1.msra.mxu0 %v1249
    %1251 = vmatprep.subr.mxu0 0.0
    %v1252 = vand.u32 %v784, 4294901760
    %v1253 = vsub.f32 %v784, %v1252
    %v1254 = vand.u32 %v1253, 4294901760
    %1255 = vmatpush1.msra.mxu0 %v1254
    %1256 = vmatprep.subr.mxu0 0.0
    %v1257 = vand.u32 %v785, 4294901760
    %v1258 = vsub.f32 %v785, %v1257
    %v1259 = vand.u32 %v1258, 4294901760
    %1260 = vmatpush1.msra.mxu0 %v1259
    %1261 = vmatprep.subr.mxu0 0.0
    %v1262 = vand.u32 %v786, 4294901760
    %v1263 = vsub.f32 %v786, %v1262
    %v1264 = vand.u32 %v1263, 4294901760
    %1265 = vmatpush1.msra.mxu0 %v1264
    %1266 = vmatprep.subr.mxu0 0.0
    %v1267 = vand.u32 %v787, 4294901760
    %v1268 = vsub.f32 %v787, %v1267
    %v1269 = vand.u32 %v1268, 4294901760
    %1270 = vmatpush1.msra.mxu0 %v1269
    %1271 = vmatprep.subr.mxu0 0.0
    %v1272 = vand.u32 %v788, 4294901760
    %v1273 = vsub.f32 %v788, %v1272
    %v1274 = vand.u32 %v1273, 4294901760
    %1275 = vmatpush1.msra.mxu0 %v1274
    %1276 = vmatprep.subr.mxu0 0.0
    %v1277 = vand.u32 %v789, 4294901760
    %v1278 = vsub.f32 %v789, %v1277
    %v1279 = vand.u32 %v1278, 4294901760
    %1280 = vmatpush1.msra.mxu0 %v1279
    %1281 = vmatprep.subr.mxu0 0.0
    %v1282 = vand.u32 %v790, 4294901760
    %v1283 = vsub.f32 %v790, %v1282
    %v1284 = vand.u32 %v1283, 4294901760
    %1285 = vmatpush1.msra.mxu0 %v1284
    %1286 = vmatprep.subr.mxu0 0.0
    %v1287 = vand.u32 %v791, 4294901760
    %v1288 = vsub.f32 %v791, %v1287
    %v1289 = vand.u32 %v1288, 4294901760
    %1290 = vmatpush1.msra.mxu0 %v1289
    %1291 = vmatprep.subr.mxu0 0.0
    %v1292 = vand.u32 %v792, 4294901760
    %v1293 = vsub.f32 %v792, %v1292
    %v1294 = vand.u32 %v1293, 4294901760
    %1295 = vmatpush1.msra.mxu0 %v1294
    %1296 = vmatprep.subr.mxu0 0.0
    %v1297 = vand.u32 %v793, 4294901760
    %v1298 = vsub.f32 %v793, %v1297
    %v1299 = vand.u32 %v1298, 4294901760
    %1300 = vmatpush1.msra.mxu0 %v1299
    %1301 = vmatprep.subr.mxu0 0.0
    %v1302 = vand.u32 %v794, 4294901760
    %v1303 = vsub.f32 %v794, %v1302
    %v1304 = vand.u32 %v1303, 4294901760
    %1305 = vmatpush1.msra.mxu0 %v1304
    %1306 = vmatprep.subr.mxu0 0.0
    %v1307 = vand.u32 %v795, 4294901760
    %v1308 = vsub.f32 %v795, %v1307
    %v1309 = vand.u32 %v1308, 4294901760
    %1310 = vmatpush1.msra.mxu0 %v1309
    %1311 = vmatprep.subr.mxu0 0.0
    %1312 = vmatpush1.msra.mxu0 0.0
    %1313 = vmatprep.subr.mxu0 0.0
    %1314 = vmatpush1.msra.mxu0 0.0
    %1315 = vmatprep.subr.mxu0 0.0
    %1316 = vmatpush1.msra.mxu0 0.0
    %1317 = vmatprep.subr.mxu0 0.0
    %1318 = vmatpush1.msra.mxu0 0.0
    %1319 = vmatprep.subr.mxu0 0.0
    %1320 = vmatpush1.msra.mxu0 0.0
    %1321 = vmatprep.subr.mxu0 0.0
    %1322 = vmatpush1.msra.mxu0 0.0
    %1323 = vmatprep.subr.mxu0 0.0
    %1324 = vmatpush1.msra.mxu0 0.0
    %1325 = vmatprep.subr.mxu0 0.0
    %1326 = vmatpush1.msra.mxu0 0.0
    %1327 = vmatprep.subr.mxu0 0.0
    %1328 = vmatpush1.msra.mxu0 0.0
    %1329 = vmatprep.subr.mxu0 0.0
    %1330 = vmatpush1.msra.mxu0 0.0
    %1331 = vmatprep.subr.mxu0 0.0
    %1332 = vmatpush1.msra.mxu0 0.0
    %1333 = vmatprep.subr.mxu0 0.0
    %1334 = vmatpush1.msra.mxu0 0.0
    %1335 = vmatprep.subr.mxu0 0.0
    %1336 = vmatpush1.msra.mxu0 0.0
    %1337 = vmatprep.subr.mxu0 0.0
    %1338 = vmatpush1.msra.mxu0 0.0
    %1339 = vmatprep.subr.mxu0 0.0
    %1340 = vmatpush1.msra.mxu0 0.0
    %1341 = vmatprep.subr.mxu0 0.0
    %1342 = vmatpush1.msra.mxu0 0.0
    %1343 = vmatprep.mubr.f32.mxu0 0.0
    %v1344 = vand.u32 %v36, 4294901760
    %1345 = vmatmul.mubr.f32.gmra.mrb[0].mxu0 %v1344
    %v1346 = vpop.f32.mrb[0].mxu0
    %v1347 = vadd.f32 %v1228, %v1346
    %v1348 = vpop.f32.mrb[0].mxu0
    %1349 = vdwg.mxu0
    %1350 = vmatprep.subr.mxu0 0.0
    %v1351 = vand.u32 %v780, 4294901760
    %1352 = vmatpush1.msra.mxu0 %v1351
    %1353 = vmatprep.subr.mxu0 0.0
    %v1354 = vand.u32 %v781, 4294901760
    %1355 = vmatpush1.msra.mxu0 %v1354
    %1356 = vmatprep.subr.mxu0 0.0
    %v1357 = vand.u32 %v782, 4294901760
    %1358 = vmatpush1.msra.mxu0 %v1357
    %1359 = vmatprep.subr.mxu0 0.0
    %v1360 = vand.u32 %v783, 4294901760
    %1361 = vmatpush1.msra.mxu0 %v1360
    %1362 = vmatprep.subr.mxu0 0.0
    %v1363 = vand.u32 %v784, 4294901760
    %1364 = vmatpush1.msra.mxu0 %v1363
    %1365 = vmatprep.subr.mxu0 0.0
    %v1366 = vand.u32 %v785, 4294901760
    %1367 = vmatpush1.msra.mxu0 %v1366
    %1368 = vmatprep.subr.mxu0 0.0
    %v1369 = vand.u32 %v786, 4294901760
    %1370 = vmatpush1.msra.mxu0 %v1369
    %1371 = vmatprep.subr.mxu0 0.0
    %v1372 = vand.u32 %v787, 4294901760
    %1373 = vmatpush1.msra.mxu0 %v1372
    %1374 = vmatprep.subr.mxu0 0.0
    %v1375 = vand.u32 %v788, 4294901760
    %1376 = vmatpush1.msra.mxu0 %v1375
    %1377 = vmatprep.subr.mxu0 0.0
    %v1378 = vand.u32 %v789, 4294901760
    %1379 = vmatpush1.msra.mxu0 %v1378
    %1380 = vmatprep.subr.mxu0 0.0
    %v1381 = vand.u32 %v790, 4294901760
    %1382 = vmatpush1.msra.mxu0 %v1381
    %1383 = vmatprep.subr.mxu0 0.0
    %v1384 = vand.u32 %v791, 4294901760
    %1385 = vmatpush1.msra.mxu0 %v1384
    %1386 = vmatprep.subr.mxu0 0.0
    %v1387 = vand.u32 %v792, 4294901760
    %1388 = vmatpush1.msra.mxu0 %v1387
    %1389 = vmatprep.subr.mxu0 0.0
    %v1390 = vand.u32 %v793, 4294901760
    %1391 = vmatpush1.msra.mxu0 %v1390
    %1392 = vmatprep.subr.mxu0 0.0
    %v1393 = vand.u32 %v794, 4294901760
    %1394 = vmatpush1.msra.mxu0 %v1393
    %1395 = vmatprep.subr.mxu0 0.0
    %v1396 = vand.u32 %v795, 4294901760
    %1397 = vmatpush1.msra.mxu0 %v1396
    %1398 = vmatprep.subr.mxu0 0.0
    %1399 = vmatpush1.msra.mxu0 0.0
    %1400 = vmatprep.subr.mxu0 0.0
    %1401 = vmatpush1.msra.mxu0 0.0
    %1402 = vmatprep.subr.mxu0 0.0
    %1403 = vmatpush1.msra.mxu0 0.0
    %1404 = vmatprep.subr.mxu0 0.0
    %1405 = vmatpush1.msra.mxu0 0.0
    %1406 = vmatprep.subr.mxu0 0.0
    %1407 = vmatpush1.msra.mxu0 0.0
    %1408 = vmatprep.subr.mxu0 0.0
    %1409 = vmatpush1.msra.mxu0 0.0
    %1410 = vmatprep.subr.mxu0 0.0
    %1411 = vmatpush1.msra.mxu0 0.0
    %1412 = vmatprep.subr.mxu0 0.0
    %1413 = vmatpush1.msra.mxu0 0.0
    %1414 = vmatprep.subr.mxu0 0.0
    %1415 = vmatpush1.msra.mxu0 0.0
    %1416 = vmatprep.subr.mxu0 0.0
    %1417 = vmatpush1.msra.mxu0 0.0
    %1418 = vmatprep.subr.mxu0 0.0
    %1419 = vmatpush1.msra.mxu0 0.0
    %1420 = vmatprep.subr.mxu0 0.0
    %1421 = vmatpush1.msra.mxu0 0.0
    %1422 = vmatprep.subr.mxu0 0.0
    %1423 = vmatpush1.msra.mxu0 0.0
    %1424 = vmatprep.subr.mxu0 0.0
    %1425 = vmatpush1.msra.mxu0 0.0
    %1426 = vmatprep.subr.mxu0 0.0
    %1427 = vmatpush1.msra.mxu0 0.0
    %1428 = vmatprep.subr.mxu0 0.0
    %1429 = vmatpush1.msra.mxu0 0.0
    %1430 = vmatprep.mubr.f32.mxu0 0.0
    %v1431 = vand.u32 %v36, 4294901760
    %1432 = vmatmul.mubr.f32.gmra.mrb[0].mxu0 %v1431
    %v1433 = vpop.f32.mrb[0].mxu0
    %v1434 = vadd.f32 %v1347, %v1433
    %v1435 = vpop.f32.mrb[0].mxu0
    %1436 = vdwg.mxu0
    %v1437 = vmax.f32 %v744, %v1434
    %v1438 = vadd.s32 %v57, 2
    %vm1439 = vcmp.eq.s32.totalorder %v39, %v1438
    %vm1440 = vcmp.eq.s32.totalorder %v40, %v1438
    %vm1441 = vcmp.eq.s32.totalorder %v41, %v1438
    %vm1442 = vcmp.eq.s32.totalorder %v42, %v1438
    %vm1443 = vcmp.eq.s32.totalorder %v43, %v1438
    %vm1444 = vcmp.eq.s32.totalorder %v44, %v1438
    %vm1445 = vcmp.eq.s32.totalorder %v45, %v1438
    %vm1446 = vcmp.eq.s32.totalorder %v46, %v1438
    %vm1447 = vcmp.eq.s32.totalorder %v47, %v1438
    %vm1448 = vcmp.eq.s32.totalorder %v48, %v1438
    %vm1449 = vcmp.eq.s32.totalorder %v49, %v1438
    %vm1450 = vcmp.eq.s32.totalorder %v50, %v1438
    %vm1451 = vcmp.eq.s32.totalorder %v51, %v1438
    %vm1452 = vcmp.eq.s32.totalorder %v52, %v1438
    %vm1453 = vcmp.eq.s32.totalorder %v53, %v1438
    %vm1454 = vcmp.eq.s32.totalorder %v54, %v1438
    %v1455 = vsel %vm1439, 1, 0
    %v1456 = vsel %vm1440, 1, 0
    %v1457 = vsel %vm1441, 1, 0
    %v1458 = vsel %vm1442, 1, 0
    %v1459 = vsel %vm1443, 1, 0
    %v1460 = vsel %vm1444, 1, 0
    %v1461 = vsel %vm1445, 1, 0
    %v1462 = vsel %vm1446, 1, 0
    %v1463 = vsel %vm1447, 1, 0
    %v1464 = vsel %vm1448, 1, 0
    %v1465 = vsel %vm1449, 1, 0
    %v1466 = vsel %vm1450, 1, 0
    %v1467 = vsel %vm1451, 1, 0
    %v1468 = vsel %vm1452, 1, 0
    %v1469 = vsel %vm1453, 1, 0
    %v1470 = vsel %vm1454, 1, 0
    %v1471 = vcvt.s32.f32 %v1455
    %v1472 = vcvt.s32.f32 %v1456
    %v1473 = vcvt.s32.f32 %v1457
    %v1474 = vcvt.s32.f32 %v1458
    %v1475 = vcvt.s32.f32 %v1459
    %v1476 = vcvt.s32.f32 %v1460
    %v1477 = vcvt.s32.f32 %v1461
    %v1478 = vcvt.s32.f32 %v1462
    %v1479 = vcvt.s32.f32 %v1463
    %v1480 = vcvt.s32.f32 %v1464
    %v1481 = vcvt.s32.f32 %v1465
    %v1482 = vcvt.s32.f32 %v1466
    %v1483 = vcvt.s32.f32 %v1467
    %v1484 = vcvt.s32.f32 %v1468
    %v1485 = vcvt.s32.f32 %v1469
    %v1486 = vcvt.s32.f32 %v1470
    %1487 = vmatprep.subr.mxu0 0.0
    %v1488 = vand.u32 %v1471, 4294901760
    %1489 = vmatpush1.msra.mxu0 %v1488
    %1490 = vmatprep.subr.mxu0 0.0
    %v1491 = vand.u32 %v1472, 4294901760
    %1492 = vmatpush1.msra.mxu0 %v1491
    %1493 = vmatprep.subr.mxu0 0.0
    %v1494 = vand.u32 %v1473, 4294901760
    %1495 = vmatpush1.msra.mxu0 %v1494
    %1496 = vmatprep.subr.mxu0 0.0
    %v1497 = vand.u32 %v1474, 4294901760
    %1498 = vmatpush1.msra.mxu0 %v1497
    %1499 = vmatprep.subr.mxu0 0.0
    %v1500 = vand.u32 %v1475, 4294901760
    %1501 = vmatpush1.msra.mxu0 %v1500
    %1502 = vmatprep.subr.mxu0 0.0
    %v1503 = vand.u32 %v1476, 4294901760
    %1504 = vmatpush1.msra.mxu0 %v1503
    %1505 = vmatprep.subr.mxu0 0.0
    %v1506 = vand.u32 %v1477, 4294901760
    %1507 = vmatpush1.msra.mxu0 %v1506
    %1508 = vmatprep.subr.mxu0 0.0
    %v1509 = vand.u32 %v1478, 4294901760
    %1510 = vmatpush1.msra.mxu0 %v1509
    %1511 = vmatprep.subr.mxu0 0.0
    %v1512 = vand.u32 %v1479, 4294901760
    %1513 = vmatpush1.msra.mxu0 %v1512
    %1514 = vmatprep.subr.mxu0 0.0
    %v1515 = vand.u32 %v1480, 4294901760
    %1516 = vmatpush1.msra.mxu0 %v1515
    %1517 = vmatprep.subr.mxu0 0.0
    %v1518 = vand.u32 %v1481, 4294901760
    %1519 = vmatpush1.msra.mxu0 %v1518
    %1520 = vmatprep.subr.mxu0 0.0
    %v1521 = vand.u32 %v1482, 4294901760
    %1522 = vmatpush1.msra.mxu0 %v1521
    %1523 = vmatprep.subr.mxu0 0.0
    %v1524 = vand.u32 %v1483, 4294901760
    %1525 = vmatpush1.msra.mxu0 %v1524
    %1526 = vmatprep.subr.mxu0 0.0
    %v1527 = vand.u32 %v1484, 4294901760
    %1528 = vmatpush1.msra.mxu0 %v1527
    %1529 = vmatprep.subr.mxu0 0.0
    %v1530 = vand.u32 %v1485, 4294901760
    %1531 = vmatpush1.msra.mxu0 %v1530
    %1532 = vmatprep.subr.mxu0 0.0
    %v1533 = vand.u32 %v1486, 4294901760
    %1534 = vmatpush1.msra.mxu0 %v1533
    %1535 = vmatprep.subr.mxu0 0.0
    %1536 = vmatpush1.msra.mxu0 0.0
    %1537 = vmatprep.subr.mxu0 0.0
    %1538 = vmatpush1.msra.mxu0 0.0
    %1539 = vmatprep.subr.mxu0 0.0
    %1540 = vmatpush1.msra.mxu0 0.0
    %1541 = vmatprep.subr.mxu0 0.0
    %1542 = vmatpush1.msra.mxu0 0.0
    %1543 = vmatprep.subr.mxu0 0.0
    %1544 = vmatpush1.msra.mxu0 0.0
    %1545 = vmatprep.subr.mxu0 0.0
    %1546 = vmatpush1.msra.mxu0 0.0
    %1547 = vmatprep.subr.mxu0 0.0
    %1548 = vmatpush1.msra.mxu0 0.0
    %1549 = vmatprep.subr.mxu0 0.0
    %1550 = vmatpush1.msra.mxu0 0.0
    %1551 = vmatprep.subr.mxu0 0.0
    %1552 = vmatpush1.msra.mxu0 0.0
    %1553 = vmatprep.subr.mxu0 0.0
    %1554 = vmatpush1.msra.mxu0 0.0
    %1555 = vmatprep.subr.mxu0 0.0
    %1556 = vmatpush1.msra.mxu0 0.0
    %1557 = vmatprep.subr.mxu0 0.0
    %1558 = vmatpush1.msra.mxu0 0.0
    %1559 = vmatprep.subr.mxu0 0.0
    %1560 = vmatpush1.msra.mxu0 0.0
    %1561 = vmatprep.subr.mxu0 0.0
    %1562 = vmatpush1.msra.mxu0 0.0
    %1563 = vmatprep.subr.mxu0 0.0
    %1564 = vmatpush1.msra.mxu0 0.0
    %1565 = vmatprep.subr.mxu0 0.0
    %1566 = vmatpush1.msra.mxu0 0.0
    %1567 = vmatprep.mubr.f32.mxu0 0.0
    %v1568 = vand.u32 %v36, 4294901760
    %v1569 = vsub.f32 %v36, %v1568
    %v1570 = vand.u32 %v1569, 4294901760
    %v1571 = vsub.f32 %v1569, %v1570
    %v1572 = vand.u32 %v1571, 4294901760
    %1573 = vmatmul.mubr.f32.gmra.mrb[0].mxu0 %v1572
    %v1574 = vpop.f32.mrb[0].mxu0
    %v1575 = vadd.f32 0.0, %v1574
    %v1576 = vpop.f32.mrb[0].mxu0
    %1577 = vdwg.mxu0
    %1578 = vmatprep.subr.mxu0 0.0
    %v1579 = vand.u32 %v1471, 4294901760
    %v1580 = vsub.f32 %v1471, %v1579
    %v1581 = vand.u32 %v1580, 4294901760
    %v1582 = vsub.f32 %v1580, %v1581
    %v1583 = vand.u32 %v1582, 4294901760
    %1584 = vmatpush1.msra.mxu0 %v1583
    %1585 = vmatprep.subr.mxu0 0.0
    %v1586 = vand.u32 %v1472, 4294901760
    %v1587 = vsub.f32 %v1472, %v1586
    %v1588 = vand.u32 %v1587, 4294901760
    %v1589 = vsub.f32 %v1587, %v1588
    %v1590 = vand.u32 %v1589, 4294901760
    %1591 = vmatpush1.msra.mxu0 %v1590
    %1592 = vmatprep.subr.mxu0 0.0
    %v1593 = vand.u32 %v1473, 4294901760
    %v1594 = vsub.f32 %v1473, %v1593
    %v1595 = vand.u32 %v1594, 4294901760
    %v1596 = vsub.f32 %v1594, %v1595
    %v1597 = vand.u32 %v1596, 4294901760
    %1598 = vmatpush1.msra.mxu0 %v1597
    %1599 = vmatprep.subr.mxu0 0.0
    %v1600 = vand.u32 %v1474, 4294901760
    %v1601 = vsub.f32 %v1474, %v1600
    %v1602 = vand.u32 %v1601, 4294901760
    %v1603 = vsub.f32 %v1601, %v1602
    %v1604 = vand.u32 %v1603, 4294901760
    %1605 = vmatpush1.msra.mxu0 %v1604
    %1606 = vmatprep.subr.mxu0 0.0
    %v1607 = vand.u32 %v1475, 4294901760
    %v1608 = vsub.f32 %v1475, %v1607
    %v1609 = vand.u32 %v1608, 4294901760
    %v1610 = vsub.f32 %v1608, %v1609
    %v1611 = vand.u32 %v1610, 4294901760
    %1612 = vmatpush1.msra.mxu0 %v1611
    %1613 = vmatprep.subr.mxu0 0.0
    %v1614 = vand.u32 %v1476, 4294901760
    %v1615 = vsub.f32 %v1476, %v1614
    %v1616 = vand.u32 %v1615, 4294901760
    %v1617 = vsub.f32 %v1615, %v1616
    %v1618 = vand.u32 %v1617, 4294901760
    %1619 = vmatpush1.msra.mxu0 %v1618
    %1620 = vmatprep.subr.mxu0 0.0
    %v1621 = vand.u32 %v1477, 4294901760
    %v1622 = vsub.f32 %v1477, %v1621
    %v1623 = vand.u32 %v1622, 4294901760
    %v1624 = vsub.f32 %v1622, %v1623
    %v1625 = vand.u32 %v1624, 4294901760
    %1626 = vmatpush1.msra.mxu0 %v1625
    %1627 = vmatprep.subr.mxu0 0.0
    %v1628 = vand.u32 %v1478, 4294901760
    %v1629 = vsub.f32 %v1478, %v1628
    %v1630 = vand.u32 %v1629, 4294901760
    %v1631 = vsub.f32 %v1629, %v1630
    %v1632 = vand.u32 %v1631, 4294901760
    %1633 = vmatpush1.msra.mxu0 %v1632
    %1634 = vmatprep.subr.mxu0 0.0
    %v1635 = vand.u32 %v1479, 4294901760
    %v1636 = vsub.f32 %v1479, %v1635
    %v1637 = vand.u32 %v1636, 4294901760
    %v1638 = vsub.f32 %v1636, %v1637
    %v1639 = vand.u32 %v1638, 4294901760
    %1640 = vmatpush1.msra.mxu0 %v1639
    %1641 = vmatprep.subr.mxu0 0.0
    %v1642 = vand.u32 %v1480, 4294901760
    %v1643 = vsub.f32 %v1480, %v1642
    %v1644 = vand.u32 %v1643, 4294901760
    %v1645 = vsub.f32 %v1643, %v1644
    %v1646 = vand.u32 %v1645, 4294901760
    %1647 = vmatpush1.msra.mxu0 %v1646
    %1648 = vmatprep.subr.mxu0 0.0
    %v1649 = vand.u32 %v1481, 4294901760
    %v1650 = vsub.f32 %v1481, %v1649
    %v1651 = vand.u32 %v1650, 4294901760
    %v1652 = vsub.f32 %v1650, %v1651
    %v1653 = vand.u32 %v1652, 4294901760
    %1654 = vmatpush1.msra.mxu0 %v1653
    %1655 = vmatprep.subr.mxu0 0.0
    %v1656 = vand.u32 %v1482, 4294901760
    %v1657 = vsub.f32 %v1482, %v1656
    %v1658 = vand.u32 %v1657, 4294901760
    %v1659 = vsub.f32 %v1657, %v1658
    %v1660 = vand.u32 %v1659, 4294901760
    %1661 = vmatpush1.msra.mxu0 %v1660
    %1662 = vmatprep.subr.mxu0 0.0
    %v1663 = vand.u32 %v1483, 4294901760
    %v1664 = vsub.f32 %v1483, %v1663
    %v1665 = vand.u32 %v1664, 4294901760
    %v1666 = vsub.f32 %v1664, %v1665
    %v1667 = vand.u32 %v1666, 4294901760
    %1668 = vmatpush1.msra.mxu0 %v1667
    %1669 = vmatprep.subr.mxu0 0.0
    %v1670 = vand.u32 %v1484, 4294901760
    %v1671 = vsub.f32 %v1484, %v1670
    %v1672 = vand.u32 %v1671, 4294901760
    %v1673 = vsub.f32 %v1671, %v1672
    %v1674 = vand.u32 %v1673, 4294901760
    %1675 = vmatpush1.msra.mxu0 %v1674
    %1676 = vmatprep.subr.mxu0 0.0
    %v1677 = vand.u32 %v1485, 4294901760
    %v1678 = vsub.f32 %v1485, %v1677
    %v1679 = vand.u32 %v1678, 4294901760
    %v1680 = vsub.f32 %v1678, %v1679
    %v1681 = vand.u32 %v1680, 4294901760
    %1682 = vmatpush1.msra.mxu0 %v1681
    %1683 = vmatprep.subr.mxu0 0.0
    %v1684 = vand.u32 %v1486, 4294901760
    %v1685 = vsub.f32 %v1486, %v1684
    %v1686 = vand.u32 %v1685, 4294901760
    %v1687 = vsub.f32 %v1685, %v1686
    %v1688 = vand.u32 %v1687, 4294901760
    %1689 = vmatpush1.msra.mxu0 %v1688
    %1690 = vmatprep.subr.mxu0 0.0
    %1691 = vmatpush1.msra.mxu0 0.0
    %1692 = vmatprep.subr.mxu0 0.0
    %1693 = vmatpush1.msra.mxu0 0.0
    %1694 = vmatprep.subr.mxu0 0.0
    %1695 = vmatpush1.msra.mxu0 0.0
    %1696 = vmatprep.subr.mxu0 0.0
    %1697 = vmatpush1.msra.mxu0 0.0
    %1698 = vmatprep.subr.mxu0 0.0
    %1699 = vmatpush1.msra.mxu0 0.0
    %1700 = vmatprep.subr.mxu0 0.0
    %1701 = vmatpush1.msra.mxu0 0.0
    %1702 = vmatprep.subr.mxu0 0.0
    %1703 = vmatpush1.msra.mxu0 0.0
    %1704 = vmatprep.subr.mxu0 0.0
    %1705 = vmatpush1.msra.mxu0 0.0
    %1706 = vmatprep.subr.mxu0 0.0
    %1707 = vmatpush1.msra.mxu0 0.0
    %1708 = vmatprep.subr.mxu0 0.0
    %1709 = vmatpush1.msra.mxu0 0.0
    %1710 = vmatprep.subr.mxu0 0.0
    %1711 = vmatpush1.msra.mxu0 0.0
    %1712 = vmatprep.subr.mxu0 0.0
    %1713 = vmatpush1.msra.mxu0 0.0
    %1714 = vmatprep.subr.mxu0 0.0
    %1715 = vmatpush1.msra.mxu0 0.0
    %1716 = vmatprep.subr.mxu0 0.0
    %1717 = vmatpush1.msra.mxu0 0.0
    %1718 = vmatprep.subr.mxu0 0.0
    %1719 = vmatpush1.msra.mxu0 0.0
    %1720 = vmatprep.subr.mxu0 0.0
    %1721 = vmatpush1.msra.mxu0 0.0
    %1722 = vmatprep.mubr.f32.mxu0 0.0
    %v1723 = vand.u32 %v36, 4294901760
    %1724 = vmatmul.mubr.f32.gmra.mrb[0].mxu0 %v1723
    %v1725 = vpop.f32.mrb[0].mxu0
    %v1726 = vadd.f32 %v1575, %v1725
    %v1727 = vpop.f32.mrb[0].mxu0
    %1728 = vdwg.mxu0
    %1729 = vmatprep.subr.mxu0 0.0
    %v1730 = vand.u32 %v1471, 4294901760
    %v1731 = vsub.f32 %v1471, %v1730
    %1732 = vmatpush1.msra.mxu0 %v1731
    %1733 = vmatprep.subr.mxu0 0.0
    %v1734 = vand.u32 %v1472, 4294901760
    %v1735 = vsub.f32 %v1472, %v1734
    %1736 = vmatpush1.msra.mxu0 %v1735
    %1737 = vmatprep.subr.mxu0 0.0
    %v1738 = vand.u32 %v1473, 4294901760
    %v1739 = vsub.f32 %v1473, %v1738
    %1740 = vmatpush1.msra.mxu0 %v1739
    %1741 = vmatprep.subr.mxu0 0.0
    %v1742 = vand.u32 %v1474, 4294901760
    %v1743 = vsub.f32 %v1474, %v1742
    %1744 = vmatpush1.msra.mxu0 %v1743
    %1745 = vmatprep.subr.mxu0 0.0
    %v1746 = vand.u32 %v1475, 4294901760
    %v1747 = vsub.f32 %v1475, %v1746
    %1748 = vmatpush1.msra.mxu0 %v1747
    %1749 = vmatprep.subr.mxu0 0.0
    %v1750 = vand.u32 %v1476, 4294901760
    %v1751 = vsub.f32 %v1476, %v1750
    %1752 = vmatpush1.msra.mxu0 %v1751
    %1753 = vmatprep.subr.mxu0 0.0
    %v1754 = vand.u32 %v1477, 4294901760
    %v1755 = vsub.f32 %v1477, %v1754
    %1756 = vmatpush1.msra.mxu0 %v1755
    %1757 = vmatprep.subr.mxu0 0.0
    %v1758 = vand.u32 %v1478, 4294901760
    %v1759 = vsub.f32 %v1478, %v1758
    %1760 = vmatpush1.msra.mxu0 %v1759
    %1761 = vmatprep.subr.mxu0 0.0
    %v1762 = vand.u32 %v1479, 4294901760
    %v1763 = vsub.f32 %v1479, %v1762
    %1764 = vmatpush1.msra.mxu0 %v1763
    %1765 = vmatprep.subr.mxu0 0.0
    %v1766 = vand.u32 %v1480, 4294901760
    %v1767 = vsub.f32 %v1480, %v1766
    %1768 = vmatpush1.msra.mxu0 %v1767
    %1769 = vmatprep.subr.mxu0 0.0
    %v1770 = vand.u32 %v1481, 4294901760
    %v1771 = vsub.f32 %v1481, %v1770
    %1772 = vmatpush1.msra.mxu0 %v1771
    %1773 = vmatprep.subr.mxu0 0.0
    %v1774 = vand.u32 %v1482, 4294901760
    %v1775 = vsub.f32 %v1482, %v1774
    %1776 = vmatpush1.msra.mxu0 %v1775
    %1777 = vmatprep.subr.mxu0 0.0
    %v1778 = vand.u32 %v1483, 4294901760
    %v1779 = vsub.f32 %v1483, %v1778
    %1780 = vmatpush1.msra.mxu0 %v1779
    %1781 = vmatprep.subr.mxu0 0.0
    %v1782 = vand.u32 %v1484, 4294901760
    %v1783 = vsub.f32 %v1484, %v1782
    %1784 = vmatpush1.msra.mxu0 %v1783
    %1785 = vmatprep.subr.mxu0 0.0
    %v1786 = vand.u32 %v1485, 4294901760
    %v1787 = vsub.f32 %v1485, %v1786
    %1788 = vmatpush1.msra.mxu0 %v1787
    %1789 = vmatprep.subr.mxu0 0.0
    %v1790 = vand.u32 %v1486, 4294901760
    %v1791 = vsub.f32 %v1486, %v1790
    %1792 = vmatpush1.msra.mxu0 %v1791
    %1793 = vmatprep.subr.mxu0 0.0
    %1794 = vmatpush1.msra.mxu0 0.0
    %1795 = vmatprep.subr.mxu0 0.0
    %1796 = vmatpush1.msra.mxu0 0.0
    %1797 = vmatprep.subr.mxu0 0.0
    %1798 = vmatpush1.msra.mxu0 0.0
    %1799 = vmatprep.subr.mxu0 0.0
    %1800 = vmatpush1.msra.mxu0 0.0
    %1801 = vmatprep.subr.mxu0 0.0
    %1802 = vmatpush1.msra.mxu0 0.0
    %1803 = vmatprep.subr.mxu0 0.0
    %1804 = vmatpush1.msra.mxu0 0.0
    %1805 = vmatprep.subr.mxu0 0.0
    %1806 = vmatpush1.msra.mxu0 0.0
    %1807 = vmatprep.subr.mxu0 0.0
    %1808 = vmatpush1.msra.mxu0 0.0
    %1809 = vmatprep.subr.mxu0 0.0
    %1810 = vmatpush1.msra.mxu0 0.0
    %1811 = vmatprep.subr.mxu0 0.0
    %1812 = vmatpush1.msra.mxu0 0.0
    %1813 = vmatprep.subr.mxu0 0.0
    %1814 = vmatpush1.msra.mxu0 0.0
    %1815 = vmatprep.subr.mxu0 0.0
    %1816 = vmatpush1.msra.mxu0 0.0
    %1817 = vmatprep.subr.mxu0 0.0
    %1818 = vmatpush1.msra.mxu0 0.0
    %1819 = vmatprep.subr.mxu0 0.0
    %1820 = vmatpush1.msra.mxu0 0.0
    %1821 = vmatprep.subr.mxu0 0.0
    %1822 = vmatpush1.msra.mxu0 0.0
    %1823 = vmatprep.subr.mxu0 0.0
    %1824 = vmatpush1.msra.mxu0 0.0
    %1825 = vmatprep.mubr.f32.mxu0 0.0
    %v1826 = vand.u32 %v36, 4294901760
    %v1827 = vsub.f32 %v36, %v1826
    %1828 = vmatmul.mubr.f32.gmra.mrb[0].mxu0 %v1827
    %v1829 = vpop.f32.mrb[0].mxu0
    %v1830 = vadd.f32 %v1726, %v1829
    %v1831 = vpop.f32.mrb[0].mxu0
    %1832 = vdwg.mxu0
    %1833 = vmatprep.subr.mxu0 0.0
    %v1834 = vand.u32 %v1471, 4294901760
    %1835 = vmatpush1.msra.mxu0 %v1834
    %1836 = vmatprep.subr.mxu0 0.0
    %v1837 = vand.u32 %v1472, 4294901760
    %1838 = vmatpush1.msra.mxu0 %v1837
    %1839 = vmatprep.subr.mxu0 0.0
    %v1840 = vand.u32 %v1473, 4294901760
    %1841 = vmatpush1.msra.mxu0 %v1840
    %1842 = vmatprep.subr.mxu0 0.0
    %v1843 = vand.u32 %v1474, 4294901760
    %1844 = vmatpush1.msra.mxu0 %v1843
    %1845 = vmatprep.subr.mxu0 0.0
    %v1846 = vand.u32 %v1475, 4294901760
    %1847 = vmatpush1.msra.mxu0 %v1846
    %1848 = vmatprep.subr.mxu0 0.0
    %v1849 = vand.u32 %v1476, 4294901760
    %1850 = vmatpush1.msra.mxu0 %v1849
    %1851 = vmatprep.subr.mxu0 0.0
    %v1852 = vand.u32 %v1477, 4294901760
    %1853 = vmatpush1.msra.mxu0 %v1852
    %1854 = vmatprep.subr.mxu0 0.0
    %v1855 = vand.u32 %v1478, 4294901760
    %1856 = vmatpush1.msra.mxu0 %v1855
    %1857 = vmatprep.subr.mxu0 0.0
    %v1858 = vand.u32 %v1479, 4294901760
    %1859 = vmatpush1.msra.mxu0 %v1858
    %1860 = vmatprep.subr.mxu0 0.0
    %v1861 = vand.u32 %v1480, 4294901760
    %1862 = vmatpush1.msra.mxu0 %v1861
    %1863 = vmatprep.subr.mxu0 0.0
    %v1864 = vand.u32 %v1481, 4294901760
    %1865 = vmatpush1.msra.mxu0 %v1864
    %1866 = vmatprep.subr.mxu0 0.0
    %v1867 = vand.u32 %v1482, 4294901760
    %1868 = vmatpush1.msra.mxu0 %v1867
    %1869 = vmatprep.subr.mxu0 0.0
    %v1870 = vand.u32 %v1483, 4294901760
    %1871 = vmatpush1.msra.mxu0 %v1870
    %1872 = vmatprep.subr.mxu0 0.0
    %v1873 = vand.u32 %v1484, 4294901760
    %1874 = vmatpush1.msra.mxu0 %v1873
    %1875 = vmatprep.subr.mxu0 0.0
    %v1876 = vand.u32 %v1485, 4294901760
    %1877 = vmatpush1.msra.mxu0 %v1876
    %1878 = vmatprep.subr.mxu0 0.0
    %v1879 = vand.u32 %v1486, 4294901760
    %1880 = vmatpush1.msra.mxu0 %v1879
    %1881 = vmatprep.subr.mxu0 0.0
    %1882 = vmatpush1.msra.mxu0 0.0
    %1883 = vmatprep.subr.mxu0 0.0
    %1884 = vmatpush1.msra.mxu0 0.0
    %1885 = vmatprep.subr.mxu0 0.0
    %1886 = vmatpush1.msra.mxu0 0.0
    %1887 = vmatprep.subr.mxu0 0.0
    %1888 = vmatpush1.msra.mxu0 0.0
    %1889 = vmatprep.subr.mxu0 0.0
    %1890 = vmatpush1.msra.mxu0 0.0
    %1891 = vmatprep.subr.mxu0 0.0
    %1892 = vmatpush1.msra.mxu0 0.0
    %1893 = vmatprep.subr.mxu0 0.0
    %1894 = vmatpush1.msra.mxu0 0.0
    %1895 = vmatprep.subr.mxu0 0.0
    %1896 = vmatpush1.msra.mxu0 0.0
    %1897 = vmatprep.subr.mxu0 0.0
    %1898 = vmatpush1.msra.mxu0 0.0
    %1899 = vmatprep.subr.mxu0 0.0
    %1900 = vmatpush1.msra.mxu0 0.0
    %1901 = vmatprep.subr.mxu0 0.0
    %1902 = vmatpush1.msra.mxu0 0.0
    %1903 = vmatprep.subr.mxu0 0.0
    %1904 = vmatpush1.msra.mxu0 0.0
    %1905 = vmatprep.subr.mxu0 0.0
    %1906 = vmatpush1.msra.mxu0 0.0
    %1907 = vmatprep.subr.mxu0 0.0
    %1908 = vmatpush1.msra.mxu0 0.0
    %1909 = vmatprep.subr.mxu0 0.0
    %1910 = vmatpush1.msra.mxu0 0.0
    %1911 = vmatprep.subr.mxu0 0.0
    %1912 = vmatpush1.msra.mxu0 0.0
    %1913 = vmatprep.mubr.f32.mxu0 0.0
    %v1914 = vand.u32 %v36, 4294901760
    %v1915 = vsub.f32 %v36, %v1914
    %v1916 = vand.u32 %v1915, 4294901760
    %1917 = vmatmul.mubr.f32.gmra.mrb[0].mxu0 %v1916
    %v1918 = vpop.f32.mrb[0].mxu0
    %v1919 = vadd.f32 %v1830, %v1918
    %v1920 = vpop.f32.mrb[0].mxu0
    %1921 = vdwg.mxu0
    %1922 = vmatprep.subr.mxu0 0.0
    %v1923 = vand.u32 %v1471, 4294901760
    %v1924 = vsub.f32 %v1471, %v1923
    %v1925 = vand.u32 %v1924, 4294901760
    %1926 = vmatpush1.msra.mxu0 %v1925
    %1927 = vmatprep.subr.mxu0 0.0
    %v1928 = vand.u32 %v1472, 4294901760
    %v1929 = vsub.f32 %v1472, %v1928
    %v1930 = vand.u32 %v1929, 4294901760
    %1931 = vmatpush1.msra.mxu0 %v1930
    %1932 = vmatprep.subr.mxu0 0.0
    %v1933 = vand.u32 %v1473, 4294901760
    %v1934 = vsub.f32 %v1473, %v1933
    %v1935 = vand.u32 %v1934, 4294901760
    %1936 = vmatpush1.msra.mxu0 %v1935
    %1937 = vmatprep.subr.mxu0 0.0
    %v1938 = vand.u32 %v1474, 4294901760
    %v1939 = vsub.f32 %v1474, %v1938
    %v1940 = vand.u32 %v1939, 4294901760
    %1941 = vmatpush1.msra.mxu0 %v1940
    %1942 = vmatprep.subr.mxu0 0.0
    %v1943 = vand.u32 %v1475, 4294901760
    %v1944 = vsub.f32 %v1475, %v1943
    %v1945 = vand.u32 %v1944, 4294901760
    %1946 = vmatpush1.msra.mxu0 %v1945
    %1947 = vmatprep.subr.mxu0 0.0
    %v1948 = vand.u32 %v1476, 4294901760
    %v1949 = vsub.f32 %v1476, %v1948
    %v1950 = vand.u32 %v1949, 4294901760
    %1951 = vmatpush1.msra.mxu0 %v1950
    %1952 = vmatprep.subr.mxu0 0.0
    %v1953 = vand.u32 %v1477, 4294901760
    %v1954 = vsub.f32 %v1477, %v1953
    %v1955 = vand.u32 %v1954, 4294901760
    %1956 = vmatpush1.msra.mxu0 %v1955
    %1957 = vmatprep.subr.mxu0 0.0
    %v1958 = vand.u32 %v1478, 4294901760
    %v1959 = vsub.f32 %v1478, %v1958
    %v1960 = vand.u32 %v1959, 4294901760
    %1961 = vmatpush1.msra.mxu0 %v1960
    %1962 = vmatprep.subr.mxu0 0.0
    %v1963 = vand.u32 %v1479, 4294901760
    %v1964 = vsub.f32 %v1479, %v1963
    %v1965 = vand.u32 %v1964, 4294901760
    %1966 = vmatpush1.msra.mxu0 %v1965
    %1967 = vmatprep.subr.mxu0 0.0
    %v1968 = vand.u32 %v1480, 4294901760
    %v1969 = vsub.f32 %v1480, %v1968
    %v1970 = vand.u32 %v1969, 4294901760
    %1971 = vmatpush1.msra.mxu0 %v1970
    %1972 = vmatprep.subr.mxu0 0.0
    %v1973 = vand.u32 %v1481, 4294901760
    %v1974 = vsub.f32 %v1481, %v1973
    %v1975 = vand.u32 %v1974, 4294901760
    %1976 = vmatpush1.msra.mxu0 %v1975
    %1977 = vmatprep.subr.mxu0 0.0
    %v1978 = vand.u32 %v1482, 4294901760
    %v1979 = vsub.f32 %v1482, %v1978
    %v1980 = vand.u32 %v1979, 4294901760
    %1981 = vmatpush1.msra.mxu0 %v1980
    %1982 = vmatprep.subr.mxu0 0.0
    %v1983 = vand.u32 %v1483, 4294901760
    %v1984 = vsub.f32 %v1483, %v1983
    %v1985 = vand.u32 %v1984, 4294901760
    %1986 = vmatpush1.msra.mxu0 %v1985
    %1987 = vmatprep.subr.mxu0 0.0
    %v1988 = vand.u32 %v1484, 4294901760
    %v1989 = vsub.f32 %v1484, %v1988
    %v1990 = vand.u32 %v1989, 4294901760
    %1991 = vmatpush1.msra.mxu0 %v1990
    %1992 = vmatprep.subr.mxu0 0.0
    %v1993 = vand.u32 %v1485, 4294901760
    %v1994 = vsub.f32 %v1485, %v1993
    %v1995 = vand.u32 %v1994, 4294901760
    %1996 = vmatpush1.msra.mxu0 %v1995
    %1997 = vmatprep.subr.mxu0 0.0
    %v1998 = vand.u32 %v1486, 4294901760
    %v1999 = vsub.f32 %v1486, %v1998
    %v2000 = vand.u32 %v1999, 4294901760
    %2001 = vmatpush1.msra.mxu0 %v2000
    %2002 = vmatprep.subr.mxu0 0.0
    %2003 = vmatpush1.msra.mxu0 0.0
    %2004 = vmatprep.subr.mxu0 0.0
    %2005 = vmatpush1.msra.mxu0 0.0
    %2006 = vmatprep.subr.mxu0 0.0
    %2007 = vmatpush1.msra.mxu0 0.0
    %2008 = vmatprep.subr.mxu0 0.0
    %2009 = vmatpush1.msra.mxu0 0.0
    %2010 = vmatprep.subr.mxu0 0.0
    %2011 = vmatpush1.msra.mxu0 0.0
    %2012 = vmatprep.subr.mxu0 0.0
    %2013 = vmatpush1.msra.mxu0 0.0
    %2014 = vmatprep.subr.mxu0 0.0
    %2015 = vmatpush1.msra.mxu0 0.0
    %2016 = vmatprep.subr.mxu0 0.0
    %2017 = vmatpush1.msra.mxu0 0.0
    %2018 = vmatprep.subr.mxu0 0.0
    %2019 = vmatpush1.msra.mxu0 0.0
    %2020 = vmatprep.subr.mxu0 0.0
    %2021 = vmatpush1.msra.mxu0 0.0
    %2022 = vmatprep.subr.mxu0 0.0
    %2023 = vmatpush1.msra.mxu0 0.0
    %2024 = vmatprep.subr.mxu0 0.0
    %2025 = vmatpush1.msra.mxu0 0.0
    %2026 = vmatprep.subr.mxu0 0.0
    %2027 = vmatpush1.msra.mxu0 0.0
    %2028 = vmatprep.subr.mxu0 0.0
    %2029 = vmatpush1.msra.mxu0 0.0
    %2030 = vmatprep.subr.mxu0 0.0
    %2031 = vmatpush1.msra.mxu0 0.0
    %2032 = vmatprep.subr.mxu0 0.0
    %2033 = vmatpush1.msra.mxu0 0.0
    %2034 = vmatprep.mubr.f32.mxu0 0.0
    %v2035 = vand.u32 %v36, 4294901760
    %2036 = vmatmul.mubr.f32.gmra.mrb[0].mxu0 %v2035
    %v2037 = vpop.f32.mrb[0].mxu0
    %v2038 = vadd.f32 %v1919, %v2037
    %v2039 = vpop.f32.mrb[0].mxu0
    %2040 = vdwg.mxu0
    %2041 = vmatprep.subr.mxu0 0.0
    %v2042 = vand.u32 %v1471, 4294901760
    %2043 = vmatpush1.msra.mxu0 %v2042
    %2044 = vmatprep.subr.mxu0 0.0
    %v2045 = vand.u32 %v1472, 4294901760
    %2046 = vmatpush1.msra.mxu0 %v2045
    %2047 = vmatprep.subr.mxu0 0.0
    %v2048 = vand.u32 %v1473, 4294901760
    %2049 = vmatpush1.msra.mxu0 %v2048
    %2050 = vmatprep.subr.mxu0 0.0
    %v2051 = vand.u32 %v1474, 4294901760
    %2052 = vmatpush1.msra.mxu0 %v2051
    %2053 = vmatprep.subr.mxu0 0.0
    %v2054 = vand.u32 %v1475, 4294901760
    %2055 = vmatpush1.msra.mxu0 %v2054
    %2056 = vmatprep.subr.mxu0 0.0
    %v2057 = vand.u32 %v1476, 4294901760
    %2058 = vmatpush1.msra.mxu0 %v2057
    %2059 = vmatprep.subr.mxu0 0.0
    %v2060 = vand.u32 %v1477, 4294901760
    %2061 = vmatpush1.msra.mxu0 %v2060
    %2062 = vmatprep.subr.mxu0 0.0
    %v2063 = vand.u32 %v1478, 4294901760
    %2064 = vmatpush1.msra.mxu0 %v2063
    %2065 = vmatprep.subr.mxu0 0.0
    %v2066 = vand.u32 %v1479, 4294901760
    %2067 = vmatpush1.msra.mxu0 %v2066
    %2068 = vmatprep.subr.mxu0 0.0
    %v2069 = vand.u32 %v1480, 4294901760
    %2070 = vmatpush1.msra.mxu0 %v2069
    %2071 = vmatprep.subr.mxu0 0.0
    %v2072 = vand.u32 %v1481, 4294901760
    %2073 = vmatpush1.msra.mxu0 %v2072
    %2074 = vmatprep.subr.mxu0 0.0
    %v2075 = vand.u32 %v1482, 4294901760
    %2076 = vmatpush1.msra.mxu0 %v2075
    %2077 = vmatprep.subr.mxu0 0.0
    %v2078 = vand.u32 %v1483, 4294901760
    %2079 = vmatpush1.msra.mxu0 %v2078
    %2080 = vmatprep.subr.mxu0 0.0
    %v2081 = vand.u32 %v1484, 4294901760
    %2082 = vmatpush1.msra.mxu0 %v2081
    %2083 = vmatprep.subr.mxu0 0.0
    %v2084 = vand.u32 %v1485, 4294901760
    %2085 = vmatpush1.msra.mxu0 %v2084
    %2086 = vmatprep.subr.mxu0 0.0
    %v2087 = vand.u32 %v1486, 4294901760
    %2088 = vmatpush1.msra.mxu0 %v2087
    %2089 = vmatprep.subr.mxu0 0.0
    %2090 = vmatpush1.msra.mxu0 0.0
    %2091 = vmatprep.subr.mxu0 0.0
    %2092 = vmatpush1.msra.mxu0 0.0
    %2093 = vmatprep.subr.mxu0 0.0
    %2094 = vmatpush1.msra.mxu0 0.0
    %2095 = vmatprep.subr.mxu0 0.0
    %2096 = vmatpush1.msra.mxu0 0.0
    %2097 = vmatprep.subr.mxu0 0.0
    %2098 = vmatpush1.msra.mxu0 0.0
    %2099 = vmatprep.subr.mxu0 0.0
    %2100 = vmatpush1.msra.mxu0 0.0
    %2101 = vmatprep.subr.mxu0 0.0
    %2102 = vmatpush1.msra.mxu0 0.0
    %2103 = vmatprep.subr.mxu0 0.0
    %2104 = vmatpush1.msra.mxu0 0.0
    %2105 = vmatprep.subr.mxu0 0.0
    %2106 = vmatpush1.msra.mxu0 0.0
    %2107 = vmatprep.subr.mxu0 0.0
    %2108 = vmatpush1.msra.mxu0 0.0
    %2109 = vmatprep.subr.mxu0 0.0
    %2110 = vmatpush1.msra.mxu0 0.0
    %2111 = vmatprep.subr.mxu0 0.0
    %2112 = vmatpush1.msra.mxu0 0.0
    %2113 = vmatprep.subr.mxu0 0.0
    %2114 = vmatpush1.msra.mxu0 0.0
    %2115 = vmatprep.subr.mxu0 0.0
    %2116 = vmatpush1.msra.mxu0 0.0
    %2117 = vmatprep.subr.mxu0 0.0
    %2118 = vmatpush1.msra.mxu0 0.0
    %2119 = vmatprep.subr.mxu0 0.0
    %2120 = vmatpush1.msra.mxu0 0.0
    %2121 = vmatprep.mubr.f32.mxu0 0.0
    %v2122 = vand.u32 %v36, 4294901760
    %2123 = vmatmul.mubr.f32.gmra.mrb[0].mxu0 %v2122
    %v2124 = vpop.f32.mrb[0].mxu0
    %v2125 = vadd.f32 %v2038, %v2124
    %v2126 = vpop.f32.mrb[0].mxu0
    %2127 = vdwg.mxu0
    %v2128 = vmax.f32 %v1437, %v2125
    %v2129 = vadd.s32 %v57, 3
    %vm2130 = vcmp.eq.s32.totalorder %v39, %v2129
    %vm2131 = vcmp.eq.s32.totalorder %v40, %v2129
    %vm2132 = vcmp.eq.s32.totalorder %v41, %v2129
    %vm2133 = vcmp.eq.s32.totalorder %v42, %v2129
    %vm2134 = vcmp.eq.s32.totalorder %v43, %v2129
    %vm2135 = vcmp.eq.s32.totalorder %v44, %v2129
    %vm2136 = vcmp.eq.s32.totalorder %v45, %v2129
    %vm2137 = vcmp.eq.s32.totalorder %v46, %v2129
    %vm2138 = vcmp.eq.s32.totalorder %v47, %v2129
    %vm2139 = vcmp.eq.s32.totalorder %v48, %v2129
    %vm2140 = vcmp.eq.s32.totalorder %v49, %v2129
    %vm2141 = vcmp.eq.s32.totalorder %v50, %v2129
    %vm2142 = vcmp.eq.s32.totalorder %v51, %v2129
    %vm2143 = vcmp.eq.s32.totalorder %v52, %v2129
    %vm2144 = vcmp.eq.s32.totalorder %v53, %v2129
    %vm2145 = vcmp.eq.s32.totalorder %v54, %v2129
    %v2146 = vsel %vm2130, 1, 0
    %v2147 = vsel %vm2131, 1, 0
    %v2148 = vsel %vm2132, 1, 0
    %v2149 = vsel %vm2133, 1, 0
    %v2150 = vsel %vm2134, 1, 0
    %v2151 = vsel %vm2135, 1, 0
    %v2152 = vsel %vm2136, 1, 0
    %v2153 = vsel %vm2137, 1, 0
    %v2154 = vsel %vm2138, 1, 0
    %v2155 = vsel %vm2139, 1, 0
    %v2156 = vsel %vm2140, 1, 0
    %v2157 = vsel %vm2141, 1, 0
    %v2158 = vsel %vm2142, 1, 0
    %v2159 = vsel %vm2143, 1, 0
    %v2160 = vsel %vm2144, 1, 0
    %v2161 = vsel %vm2145, 1, 0
    %v2162 = vcvt.s32.f32 %v2146
    %v2163 = vcvt.s32.f32 %v2147
    %v2164 = vcvt.s32.f32 %v2148
    %v2165 = vcvt.s32.f32 %v2149
    %v2166 = vcvt.s32.f32 %v2150
    %v2167 = vcvt.s32.f32 %v2151
    %v2168 = vcvt.s32.f32 %v2152
    %v2169 = vcvt.s32.f32 %v2153
    %v2170 = vcvt.s32.f32 %v2154
    %v2171 = vcvt.s32.f32 %v2155
    %v2172 = vcvt.s32.f32 %v2156
    %v2173 = vcvt.s32.f32 %v2157
    %v2174 = vcvt.s32.f32 %v2158
    %v2175 = vcvt.s32.f32 %v2159
    %v2176 = vcvt.s32.f32 %v2160
    %v2177 = vcvt.s32.f32 %v2161
    %2178 = vmatprep.subr.mxu0 0.0
    %v2179 = vand.u32 %v2162, 4294901760
    %2180 = vmatpush1.msra.mxu0 %v2179
    %2181 = vmatprep.subr.mxu0 0.0
    %v2182 = vand.u32 %v2163, 4294901760
    %2183 = vmatpush1.msra.mxu0 %v2182
    %2184 = vmatprep.subr.mxu0 0.0
    %v2185 = vand.u32 %v2164, 4294901760
    %2186 = vmatpush1.msra.mxu0 %v2185
    %2187 = vmatprep.subr.mxu0 0.0
    %v2188 = vand.u32 %v2165, 4294901760
    %2189 = vmatpush1.msra.mxu0 %v2188
    %2190 = vmatprep.subr.mxu0 0.0
    %v2191 = vand.u32 %v2166, 4294901760
    %2192 = vmatpush1.msra.mxu0 %v2191
    %2193 = vmatprep.subr.mxu0 0.0
    %v2194 = vand.u32 %v2167, 4294901760
    %2195 = vmatpush1.msra.mxu0 %v2194
    %2196 = vmatprep.subr.mxu0 0.0
    %v2197 = vand.u32 %v2168, 4294901760
    %2198 = vmatpush1.msra.mxu0 %v2197
    %2199 = vmatprep.subr.mxu0 0.0
    %v2200 = vand.u32 %v2169, 4294901760
    %2201 = vmatpush1.msra.mxu0 %v2200
    %2202 = vmatprep.subr.mxu0 0.0
    %v2203 = vand.u32 %v2170, 4294901760
    %2204 = vmatpush1.msra.mxu0 %v2203
    %2205 = vmatprep.subr.mxu0 0.0
    %v2206 = vand.u32 %v2171, 4294901760
    %2207 = vmatpush1.msra.mxu0 %v2206
    %2208 = vmatprep.subr.mxu0 0.0
    %v2209 = vand.u32 %v2172, 4294901760
    %2210 = vmatpush1.msra.mxu0 %v2209
    %2211 = vmatprep.subr.mxu0 0.0
    %v2212 = vand.u32 %v2173, 4294901760
    %2213 = vmatpush1.msra.mxu0 %v2212
    %2214 = vmatprep.subr.mxu0 0.0
    %v2215 = vand.u32 %v2174, 4294901760
    %2216 = vmatpush1.msra.mxu0 %v2215
    %2217 = vmatprep.subr.mxu0 0.0
    %v2218 = vand.u32 %v2175, 4294901760
    %2219 = vmatpush1.msra.mxu0 %v2218
    %2220 = vmatprep.subr.mxu0 0.0
    %v2221 = vand.u32 %v2176, 4294901760
    %2222 = vmatpush1.msra.mxu0 %v2221
    %2223 = vmatprep.subr.mxu0 0.0
    %v2224 = vand.u32 %v2177, 4294901760
    %2225 = vmatpush1.msra.mxu0 %v2224
    %2226 = vmatprep.subr.mxu0 0.0
    %2227 = vmatpush1.msra.mxu0 0.0
    %2228 = vmatprep.subr.mxu0 0.0
    %2229 = vmatpush1.msra.mxu0 0.0
    %2230 = vmatprep.subr.mxu0 0.0
    %2231 = vmatpush1.msra.mxu0 0.0
    %2232 = vmatprep.subr.mxu0 0.0
    %2233 = vmatpush1.msra.mxu0 0.0
    %2234 = vmatprep.subr.mxu0 0.0
    %2235 = vmatpush1.msra.mxu0 0.0
    %2236 = vmatprep.subr.mxu0 0.0
    %2237 = vmatpush1.msra.mxu0 0.0
    %2238 = vmatprep.subr.mxu0 0.0
    %2239 = vmatpush1.msra.mxu0 0.0
    %2240 = vmatprep.subr.mxu0 0.0
    %2241 = vmatpush1.msra.mxu0 0.0
    %2242 = vmatprep.subr.mxu0 0.0
    %2243 = vmatpush1.msra.mxu0 0.0
    %2244 = vmatprep.subr.mxu0 0.0
    %2245 = vmatpush1.msra.mxu0 0.0
    %2246 = vmatprep.subr.mxu0 0.0
    %2247 = vmatpush1.msra.mxu0 0.0
    %2248 = vmatprep.subr.mxu0 0.0
    %2249 = vmatpush1.msra.mxu0 0.0
    %2250 = vmatprep.subr.mxu0 0.0
    %2251 = vmatpush1.msra.mxu0 0.0
    %2252 = vmatprep.subr.mxu0 0.0
    %2253 = vmatpush1.msra.mxu0 0.0
    %2254 = vmatprep.subr.mxu0 0.0
    %2255 = vmatpush1.msra.mxu0 0.0
    %2256 = vmatprep.subr.mxu0 0.0
    %2257 = vmatpush1.msra.mxu0 0.0
    %2258 = vmatprep.mubr.f32.mxu0 0.0
    %v2259 = vand.u32 %v36, 4294901760
    %v2260 = vsub.f32 %v36, %v2259
    %v2261 = vand.u32 %v2260, 4294901760
    %v2262 = vsub.f32 %v2260, %v2261
    %v2263 = vand.u32 %v2262, 4294901760
    %2264 = vmatmul.mubr.f32.gmra.mrb[0].mxu0 %v2263
    %v2265 = vpop.f32.mrb[0].mxu0
    %v2266 = vadd.f32 0.0, %v2265
    %v2267 = vpop.f32.mrb[0].mxu0
    %2268 = vdwg.mxu0
    %2269 = vmatprep.subr.mxu0 0.0
    %v2270 = vand.u32 %v2162, 4294901760
    %v2271 = vsub.f32 %v2162, %v2270
    %v2272 = vand.u32 %v2271, 4294901760
    %v2273 = vsub.f32 %v2271, %v2272
    %v2274 = vand.u32 %v2273, 4294901760
    %2275 = vmatpush1.msra.mxu0 %v2274
    %2276 = vmatprep.subr.mxu0 0.0
    %v2277 = vand.u32 %v2163, 4294901760
    %v2278 = vsub.f32 %v2163, %v2277
    %v2279 = vand.u32 %v2278, 4294901760
    %v2280 = vsub.f32 %v2278, %v2279
    %v2281 = vand.u32 %v2280, 4294901760
    %2282 = vmatpush1.msra.mxu0 %v2281
    %2283 = vmatprep.subr.mxu0 0.0
    %v2284 = vand.u32 %v2164, 4294901760
    %v2285 = vsub.f32 %v2164, %v2284
    %v2286 = vand.u32 %v2285, 4294901760
    %v2287 = vsub.f32 %v2285, %v2286
    %v2288 = vand.u32 %v2287, 4294901760
    %2289 = vmatpush1.msra.mxu0 %v2288
    %2290 = vmatprep.subr.mxu0 0.0
    %v2291 = vand.u32 %v2165, 4294901760
    %v2292 = vsub.f32 %v2165, %v2291
    %v2293 = vand.u32 %v2292, 4294901760
    %v2294 = vsub.f32 %v2292, %v2293
    %v2295 = vand.u32 %v2294, 4294901760
    %2296 = vmatpush1.msra.mxu0 %v2295
    %2297 = vmatprep.subr.mxu0 0.0
    %v2298 = vand.u32 %v2166, 4294901760
    %v2299 = vsub.f32 %v2166, %v2298
    %v2300 = vand.u32 %v2299, 4294901760
    %v2301 = vsub.f32 %v2299, %v2300
    %v2302 = vand.u32 %v2301, 4294901760
    %2303 = vmatpush1.msra.mxu0 %v2302
    %2304 = vmatprep.subr.mxu0 0.0
    %v2305 = vand.u32 %v2167, 4294901760
    %v2306 = vsub.f32 %v2167, %v2305
    %v2307 = vand.u32 %v2306, 4294901760
    %v2308 = vsub.f32 %v2306, %v2307
    %v2309 = vand.u32 %v2308, 4294901760
    %2310 = vmatpush1.msra.mxu0 %v2309
    %2311 = vmatprep.subr.mxu0 0.0
    %v2312 = vand.u32 %v2168, 4294901760
    %v2313 = vsub.f32 %v2168, %v2312
    %v2314 = vand.u32 %v2313, 4294901760
    %v2315 = vsub.f32 %v2313, %v2314
    %v2316 = vand.u32 %v2315, 4294901760
    %2317 = vmatpush1.msra.mxu0 %v2316
    %2318 = vmatprep.subr.mxu0 0.0
    %v2319 = vand.u32 %v2169, 4294901760
    %v2320 = vsub.f32 %v2169, %v2319
    %v2321 = vand.u32 %v2320, 4294901760
    %v2322 = vsub.f32 %v2320, %v2321
    %v2323 = vand.u32 %v2322, 4294901760
    %2324 = vmatpush1.msra.mxu0 %v2323
    %2325 = vmatprep.subr.mxu0 0.0
    %v2326 = vand.u32 %v2170, 4294901760
    %v2327 = vsub.f32 %v2170, %v2326
    %v2328 = vand.u32 %v2327, 4294901760
    %v2329 = vsub.f32 %v2327, %v2328
    %v2330 = vand.u32 %v2329, 4294901760
    %2331 = vmatpush1.msra.mxu0 %v2330
    %2332 = vmatprep.subr.mxu0 0.0
    %v2333 = vand.u32 %v2171, 4294901760
    %v2334 = vsub.f32 %v2171, %v2333
    %v2335 = vand.u32 %v2334, 4294901760
    %v2336 = vsub.f32 %v2334, %v2335
    %v2337 = vand.u32 %v2336, 4294901760
    %2338 = vmatpush1.msra.mxu0 %v2337
    %2339 = vmatprep.subr.mxu0 0.0
    %v2340 = vand.u32 %v2172, 4294901760
    %v2341 = vsub.f32 %v2172, %v2340
    %v2342 = vand.u32 %v2341, 4294901760
    %v2343 = vsub.f32 %v2341, %v2342
    %v2344 = vand.u32 %v2343, 4294901760
    %2345 = vmatpush1.msra.mxu0 %v2344
    %2346 = vmatprep.subr.mxu0 0.0
    %v2347 = vand.u32 %v2173, 4294901760
    %v2348 = vsub.f32 %v2173, %v2347
    %v2349 = vand.u32 %v2348, 4294901760
    %v2350 = vsub.f32 %v2348, %v2349
    %v2351 = vand.u32 %v2350, 4294901760
    %2352 = vmatpush1.msra.mxu0 %v2351
    %2353 = vmatprep.subr.mxu0 0.0
    %v2354 = vand.u32 %v2174, 4294901760
    %v2355 = vsub.f32 %v2174, %v2354
    %v2356 = vand.u32 %v2355, 4294901760
    %v2357 = vsub.f32 %v2355, %v2356
    %v2358 = vand.u32 %v2357, 4294901760
    %2359 = vmatpush1.msra.mxu0 %v2358
    %2360 = vmatprep.subr.mxu0 0.0
    %v2361 = vand.u32 %v2175, 4294901760
    %v2362 = vsub.f32 %v2175, %v2361
    %v2363 = vand.u32 %v2362, 4294901760
    %v2364 = vsub.f32 %v2362, %v2363
    %v2365 = vand.u32 %v2364, 4294901760
    %2366 = vmatpush1.msra.mxu0 %v2365
    %2367 = vmatprep.subr.mxu0 0.0
    %v2368 = vand.u32 %v2176, 4294901760
    %v2369 = vsub.f32 %v2176, %v2368
    %v2370 = vand.u32 %v2369, 4294901760
    %v2371 = vsub.f32 %v2369, %v2370
    %v2372 = vand.u32 %v2371, 4294901760
    %2373 = vmatpush1.msra.mxu0 %v2372
    %2374 = vmatprep.subr.mxu0 0.0
    %v2375 = vand.u32 %v2177, 4294901760
    %v2376 = vsub.f32 %v2177, %v2375
    %v2377 = vand.u32 %v2376, 4294901760
    %v2378 = vsub.f32 %v2376, %v2377
    %v2379 = vand.u32 %v2378, 4294901760
    %2380 = vmatpush1.msra.mxu0 %v2379
    %2381 = vmatprep.subr.mxu0 0.0
    %2382 = vmatpush1.msra.mxu0 0.0
    %2383 = vmatprep.subr.mxu0 0.0
    %2384 = vmatpush1.msra.mxu0 0.0
    %2385 = vmatprep.subr.mxu0 0.0
    %2386 = vmatpush1.msra.mxu0 0.0
    %2387 = vmatprep.subr.mxu0 0.0
    %2388 = vmatpush1.msra.mxu0 0.0
    %2389 = vmatprep.subr.mxu0 0.0
    %2390 = vmatpush1.msra.mxu0 0.0
    %2391 = vmatprep.subr.mxu0 0.0
    %2392 = vmatpush1.msra.mxu0 0.0
    %2393 = vmatprep.subr.mxu0 0.0
    %2394 = vmatpush1.msra.mxu0 0.0
    %2395 = vmatprep.subr.mxu0 0.0
    %2396 = vmatpush1.msra.mxu0 0.0
    %2397 = vmatprep.subr.mxu0 0.0
    %2398 = vmatpush1.msra.mxu0 0.0
    %2399 = vmatprep.subr.mxu0 0.0
    %2400 = vmatpush1.msra.mxu0 0.0
    %2401 = vmatprep.subr.mxu0 0.0
    %2402 = vmatpush1.msra.mxu0 0.0
    %2403 = vmatprep.subr.mxu0 0.0
    %2404 = vmatpush1.msra.mxu0 0.0
    %2405 = vmatprep.subr.mxu0 0.0
    %2406 = vmatpush1.msra.mxu0 0.0
    %2407 = vmatprep.subr.mxu0 0.0
    %2408 = vmatpush1.msra.mxu0 0.0
    %2409 = vmatprep.subr.mxu0 0.0
    %2410 = vmatpush1.msra.mxu0 0.0
    %2411 = vmatprep.subr.mxu0 0.0
    %2412 = vmatpush1.msra.mxu0 0.0
    %2413 = vmatprep.mubr.f32.mxu0 0.0
    %v2414 = vand.u32 %v36, 4294901760
    %2415 = vmatmul.mubr.f32.gmra.mrb[0].mxu0 %v2414
    %v2416 = vpop.f32.mrb[0].mxu0
    %v2417 = vadd.f32 %v2266, %v2416
    %v2418 = vpop.f32.mrb[0].mxu0
    %2419 = vdwg.mxu0
    %2420 = vmatprep.subr.mxu0 0.0
    %v2421 = vand.u32 %v2162, 4294901760
    %v2422 = vsub.f32 %v2162, %v2421
    %2423 = vmatpush1.msra.mxu0 %v2422
    %2424 = vmatprep.subr.mxu0 0.0
    %v2425 = vand.u32 %v2163, 4294901760
    %v2426 = vsub.f32 %v2163, %v2425
    %2427 = vmatpush1.msra.mxu0 %v2426
    %2428 = vmatprep.subr.mxu0 0.0
    %v2429 = vand.u32 %v2164, 4294901760
    %v2430 = vsub.f32 %v2164, %v2429
    %2431 = vmatpush1.msra.mxu0 %v2430
    %2432 = vmatprep.subr.mxu0 0.0
    %v2433 = vand.u32 %v2165, 4294901760
    %v2434 = vsub.f32 %v2165, %v2433
    %2435 = vmatpush1.msra.mxu0 %v2434
    %2436 = vmatprep.subr.mxu0 0.0
    %v2437 = vand.u32 %v2166, 4294901760
    %v2438 = vsub.f32 %v2166, %v2437
    %2439 = vmatpush1.msra.mxu0 %v2438
    %2440 = vmatprep.subr.mxu0 0.0
    %v2441 = vand.u32 %v2167, 4294901760
    %v2442 = vsub.f32 %v2167, %v2441
    %2443 = vmatpush1.msra.mxu0 %v2442
    %2444 = vmatprep.subr.mxu0 0.0
    %v2445 = vand.u32 %v2168, 4294901760
    %v2446 = vsub.f32 %v2168, %v2445
    %2447 = vmatpush1.msra.mxu0 %v2446
    %2448 = vmatprep.subr.mxu0 0.0
    %v2449 = vand.u32 %v2169, 4294901760
    %v2450 = vsub.f32 %v2169, %v2449
    %2451 = vmatpush1.msra.mxu0 %v2450
    %2452 = vmatprep.subr.mxu0 0.0
    %v2453 = vand.u32 %v2170, 4294901760
    %v2454 = vsub.f32 %v2170, %v2453
    %2455 = vmatpush1.msra.mxu0 %v2454
    %2456 = vmatprep.subr.mxu0 0.0
    %v2457 = vand.u32 %v2171, 4294901760
    %v2458 = vsub.f32 %v2171, %v2457
    %2459 = vmatpush1.msra.mxu0 %v2458
    %2460 = vmatprep.subr.mxu0 0.0
    %v2461 = vand.u32 %v2172, 4294901760
    %v2462 = vsub.f32 %v2172, %v2461
    %2463 = vmatpush1.msra.mxu0 %v2462
    %2464 = vmatprep.subr.mxu0 0.0
    %v2465 = vand.u32 %v2173, 4294901760
    %v2466 = vsub.f32 %v2173, %v2465
    %2467 = vmatpush1.msra.mxu0 %v2466
    %2468 = vmatprep.subr.mxu0 0.0
    %v2469 = vand.u32 %v2174, 4294901760
    %v2470 = vsub.f32 %v2174, %v2469
    %2471 = vmatpush1.msra.mxu0 %v2470
    %2472 = vmatprep.subr.mxu0 0.0
    %v2473 = vand.u32 %v2175, 4294901760
    %v2474 = vsub.f32 %v2175, %v2473
    %2475 = vmatpush1.msra.mxu0 %v2474
    %2476 = vmatprep.subr.mxu0 0.0
    %v2477 = vand.u32 %v2176, 4294901760
    %v2478 = vsub.f32 %v2176, %v2477
    %2479 = vmatpush1.msra.mxu0 %v2478
    %2480 = vmatprep.subr.mxu0 0.0
    %v2481 = vand.u32 %v2177, 4294901760
    %v2482 = vsub.f32 %v2177, %v2481
    %2483 = vmatpush1.msra.mxu0 %v2482
    %2484 = vmatprep.subr.mxu0 0.0
    %2485 = vmatpush1.msra.mxu0 0.0
    %2486 = vmatprep.subr.mxu0 0.0
    %2487 = vmatpush1.msra.mxu0 0.0
    %2488 = vmatprep.subr.mxu0 0.0
    %2489 = vmatpush1.msra.mxu0 0.0
    %2490 = vmatprep.subr.mxu0 0.0
    %2491 = vmatpush1.msra.mxu0 0.0
    %2492 = vmatprep.subr.mxu0 0.0
    %2493 = vmatpush1.msra.mxu0 0.0
    %2494 = vmatprep.subr.mxu0 0.0
    %2495 = vmatpush1.msra.mxu0 0.0
    %2496 = vmatprep.subr.mxu0 0.0
    %2497 = vmatpush1.msra.mxu0 0.0
    %2498 = vmatprep.subr.mxu0 0.0
    %2499 = vmatpush1.msra.mxu0 0.0
    %2500 = vmatprep.subr.mxu0 0.0
    %2501 = vmatpush1.msra.mxu0 0.0
    %2502 = vmatprep.subr.mxu0 0.0
    %2503 = vmatpush1.msra.mxu0 0.0
    %2504 = vmatprep.subr.mxu0 0.0
    %2505 = vmatpush1.msra.mxu0 0.0
    %2506 = vmatprep.subr.mxu0 0.0
    %2507 = vmatpush1.msra.mxu0 0.0
    %2508 = vmatprep.subr.mxu0 0.0
    %2509 = vmatpush1.msra.mxu0 0.0
    %2510 = vmatprep.subr.mxu0 0.0
    %2511 = vmatpush1.msra.mxu0 0.0
    %2512 = vmatprep.subr.mxu0 0.0
    %2513 = vmatpush1.msra.mxu0 0.0
    %2514 = vmatprep.subr.mxu0 0.0
    %2515 = vmatpush1.msra.mxu0 0.0
    %2516 = vmatprep.mubr.f32.mxu0 0.0
    %v2517 = vand.u32 %v36, 4294901760
    %v2518 = vsub.f32 %v36, %v2517
    %2519 = vmatmul.mubr.f32.gmra.mrb[0].mxu0 %v2518
    %v2520 = vpop.f32.mrb[0].mxu0
    %v2521 = vadd.f32 %v2417, %v2520
    %v2522 = vpop.f32.mrb[0].mxu0
    %2523 = vdwg.mxu0
    %2524 = vmatprep.subr.mxu0 0.0
    %v2525 = vand.u32 %v2162, 4294901760
    %2526 = vmatpush1.msra.mxu0 %v2525
    %2527 = vmatprep.subr.mxu0 0.0
    %v2528 = vand.u32 %v2163, 4294901760
    %2529 = vmatpush1.msra.mxu0 %v2528
    %2530 = vmatprep.subr.mxu0 0.0
    %v2531 = vand.u32 %v2164, 4294901760
    %2532 = vmatpush1.msra.mxu0 %v2531
    %2533 = vmatprep.subr.mxu0 0.0
    %v2534 = vand.u32 %v2165, 4294901760
    %2535 = vmatpush1.msra.mxu0 %v2534
    %2536 = vmatprep.subr.mxu0 0.0
    %v2537 = vand.u32 %v2166, 4294901760
    %2538 = vmatpush1.msra.mxu0 %v2537
    %2539 = vmatprep.subr.mxu0 0.0
    %v2540 = vand.u32 %v2167, 4294901760
    %2541 = vmatpush1.msra.mxu0 %v2540
    %2542 = vmatprep.subr.mxu0 0.0
    %v2543 = vand.u32 %v2168, 4294901760
    %2544 = vmatpush1.msra.mxu0 %v2543
    %2545 = vmatprep.subr.mxu0 0.0
    %v2546 = vand.u32 %v2169, 4294901760
    %2547 = vmatpush1.msra.mxu0 %v2546
    %2548 = vmatprep.subr.mxu0 0.0
    %v2549 = vand.u32 %v2170, 4294901760
    %2550 = vmatpush1.msra.mxu0 %v2549
    %2551 = vmatprep.subr.mxu0 0.0
    %v2552 = vand.u32 %v2171, 4294901760
    %2553 = vmatpush1.msra.mxu0 %v2552
    %2554 = vmatprep.subr.mxu0 0.0
    %v2555 = vand.u32 %v2172, 4294901760
    %2556 = vmatpush1.msra.mxu0 %v2555
    %2557 = vmatprep.subr.mxu0 0.0
    %v2558 = vand.u32 %v2173, 4294901760
    %2559 = vmatpush1.msra.mxu0 %v2558
    %2560 = vmatprep.subr.mxu0 0.0
    %v2561 = vand.u32 %v2174, 4294901760
    %2562 = vmatpush1.msra.mxu0 %v2561
    %2563 = vmatprep.subr.mxu0 0.0
    %v2564 = vand.u32 %v2175, 4294901760
    %2565 = vmatpush1.msra.mxu0 %v2564
    %2566 = vmatprep.subr.mxu0 0.0
    %v2567 = vand.u32 %v2176, 4294901760
    %2568 = vmatpush1.msra.mxu0 %v2567
    %2569 = vmatprep.subr.mxu0 0.0
    %v2570 = vand.u32 %v2177, 4294901760
    %2571 = vmatpush1.msra.mxu0 %v2570
    %2572 = vmatprep.subr.mxu0 0.0
    %2573 = vmatpush1.msra.mxu0 0.0
    %2574 = vmatprep.subr.mxu0 0.0
    %2575 = vmatpush1.msra.mxu0 0.0
    %2576 = vmatprep.subr.mxu0 0.0
    %2577 = vmatpush1.msra.mxu0 0.0
    %2578 = vmatprep.subr.mxu0 0.0
    %2579 = vmatpush1.msra.mxu0 0.0
    %2580 = vmatprep.subr.mxu0 0.0
    %2581 = vmatpush1.msra.mxu0 0.0
    %2582 = vmatprep.subr.mxu0 0.0
    %2583 = vmatpush1.msra.mxu0 0.0
    %2584 = vmatprep.subr.mxu0 0.0
    %2585 = vmatpush1.msra.mxu0 0.0
    %2586 = vmatprep.subr.mxu0 0.0
    %2587 = vmatpush1.msra.mxu0 0.0
    %2588 = vmatprep.subr.mxu0 0.0
    %2589 = vmatpush1.msra.mxu0 0.0
    %2590 = vmatprep.subr.mxu0 0.0
    %2591 = vmatpush1.msra.mxu0 0.0
    %2592 = vmatprep.subr.mxu0 0.0
    %2593 = vmatpush1.msra.mxu0 0.0
    %2594 = vmatprep.subr.mxu0 0.0
    %2595 = vmatpush1.msra.mxu0 0.0
    %2596 = vmatprep.subr.mxu0 0.0
    %2597 = vmatpush1.msra.mxu0 0.0
    %2598 = vmatprep.subr.mxu0 0.0
    %2599 = vmatpush1.msra.mxu0 0.0
    %2600 = vmatprep.subr.mxu0 0.0
    %2601 = vmatpush1.msra.mxu0 0.0
    %2602 = vmatprep.subr.mxu0 0.0
    %2603 = vmatpush1.msra.mxu0 0.0
    %2604 = vmatprep.mubr.f32.mxu0 0.0
    %v2605 = vand.u32 %v36, 4294901760
    %v2606 = vsub.f32 %v36, %v2605
    %v2607 = vand.u32 %v2606, 4294901760
    %2608 = vmatmul.mubr.f32.gmra.mrb[0].mxu0 %v2607
    %v2609 = vpop.f32.mrb[0].mxu0
    %v2610 = vadd.f32 %v2521, %v2609
    %v2611 = vpop.f32.mrb[0].mxu0
    %2612 = vdwg.mxu0
    %2613 = vmatprep.subr.mxu0 0.0
    %v2614 = vand.u32 %v2162, 4294901760
    %v2615 = vsub.f32 %v2162, %v2614
    %v2616 = vand.u32 %v2615, 4294901760
    %2617 = vmatpush1.msra.mxu0 %v2616
    %2618 = vmatprep.subr.mxu0 0.0
    %v2619 = vand.u32 %v2163, 4294901760
    %v2620 = vsub.f32 %v2163, %v2619
    %v2621 = vand.u32 %v2620, 4294901760
    %2622 = vmatpush1.msra.mxu0 %v2621
    %2623 = vmatprep.subr.mxu0 0.0
    %v2624 = vand.u32 %v2164, 4294901760
    %v2625 = vsub.f32 %v2164, %v2624
    %v2626 = vand.u32 %v2625, 4294901760
    %2627 = vmatpush1.msra.mxu0 %v2626
    %2628 = vmatprep.subr.mxu0 0.0
    %v2629 = vand.u32 %v2165, 4294901760
    %v2630 = vsub.f32 %v2165, %v2629
    %v2631 = vand.u32 %v2630, 4294901760
    %2632 = vmatpush1.msra.mxu0 %v2631
    %2633 = vmatprep.subr.mxu0 0.0
    %v2634 = vand.u32 %v2166, 4294901760
    %v2635 = vsub.f32 %v2166, %v2634
    %v2636 = vand.u32 %v2635, 4294901760
    %2637 = vmatpush1.msra.mxu0 %v2636
    %2638 = vmatprep.subr.mxu0 0.0
    %v2639 = vand.u32 %v2167, 4294901760
    %v2640 = vsub.f32 %v2167, %v2639
    %v2641 = vand.u32 %v2640, 4294901760
    %2642 = vmatpush1.msra.mxu0 %v2641
    %2643 = vmatprep.subr.mxu0 0.0
    %v2644 = vand.u32 %v2168, 4294901760
    %v2645 = vsub.f32 %v2168, %v2644
    %v2646 = vand.u32 %v2645, 4294901760
    %2647 = vmatpush1.msra.mxu0 %v2646
    %2648 = vmatprep.subr.mxu0 0.0
    %v2649 = vand.u32 %v2169, 4294901760
    %v2650 = vsub.f32 %v2169, %v2649
    %v2651 = vand.u32 %v2650, 4294901760
    %2652 = vmatpush1.msra.mxu0 %v2651
    %2653 = vmatprep.subr.mxu0 0.0
    %v2654 = vand.u32 %v2170, 4294901760
    %v2655 = vsub.f32 %v2170, %v2654
    %v2656 = vand.u32 %v2655, 4294901760
    %2657 = vmatpush1.msra.mxu0 %v2656
    %2658 = vmatprep.subr.mxu0 0.0
    %v2659 = vand.u32 %v2171, 4294901760
    %v2660 = vsub.f32 %v2171, %v2659
    %v2661 = vand.u32 %v2660, 4294901760
    %2662 = vmatpush1.msra.mxu0 %v2661
    %2663 = vmatprep.subr.mxu0 0.0
    %v2664 = vand.u32 %v2172, 4294901760
    %v2665 = vsub.f32 %v2172, %v2664
    %v2666 = vand.u32 %v2665, 4294901760
    %2667 = vmatpush1.msra.mxu0 %v2666
    %2668 = vmatprep.subr.mxu0 0.0
    %v2669 = vand.u32 %v2173, 4294901760
    %v2670 = vsub.f32 %v2173, %v2669
    %v2671 = vand.u32 %v2670, 4294901760
    %2672 = vmatpush1.msra.mxu0 %v2671
    %2673 = vmatprep.subr.mxu0 0.0
    %v2674 = vand.u32 %v2174, 4294901760
    %v2675 = vsub.f32 %v2174, %v2674
    %v2676 = vand.u32 %v2675, 4294901760
    %2677 = vmatpush1.msra.mxu0 %v2676
    %2678 = vmatprep.subr.mxu0 0.0
    %v2679 = vand.u32 %v2175, 4294901760
    %v2680 = vsub.f32 %v2175, %v2679
    %v2681 = vand.u32 %v2680, 4294901760
    %2682 = vmatpush1.msra.mxu0 %v2681
    %2683 = vmatprep.subr.mxu0 0.0
    %v2684 = vand.u32 %v2176, 4294901760
    %v2685 = vsub.f32 %v2176, %v2684
    %v2686 = vand.u32 %v2685, 4294901760
    %2687 = vmatpush1.msra.mxu0 %v2686
    %2688 = vmatprep.subr.mxu0 0.0
    %v2689 = vand.u32 %v2177, 4294901760
    %v2690 = vsub.f32 %v2177, %v2689
    %v2691 = vand.u32 %v2690, 4294901760
    %2692 = vmatpush1.msra.mxu0 %v2691
    %2693 = vmatprep.subr.mxu0 0.0
    %2694 = vmatpush1.msra.mxu0 0.0
    %2695 = vmatprep.subr.mxu0 0.0
    %2696 = vmatpush1.msra.mxu0 0.0
    %2697 = vmatprep.subr.mxu0 0.0
    %2698 = vmatpush1.msra.mxu0 0.0
    %2699 = vmatprep.subr.mxu0 0.0
    %2700 = vmatpush1.msra.mxu0 0.0
    %2701 = vmatprep.subr.mxu0 0.0
    %2702 = vmatpush1.msra.mxu0 0.0
    %2703 = vmatprep.subr.mxu0 0.0
    %2704 = vmatpush1.msra.mxu0 0.0
    %2705 = vmatprep.subr.mxu0 0.0
    %2706 = vmatpush1.msra.mxu0 0.0
    %2707 = vmatprep.subr.mxu0 0.0
    %2708 = vmatpush1.msra.mxu0 0.0
    %2709 = vmatprep.subr.mxu0 0.0
    %2710 = vmatpush1.msra.mxu0 0.0
    %2711 = vmatprep.subr.mxu0 0.0
    %2712 = vmatpush1.msra.mxu0 0.0
    %2713 = vmatprep.subr.mxu0 0.0
    %2714 = vmatpush1.msra.mxu0 0.0
    %2715 = vmatprep.subr.mxu0 0.0
    %2716 = vmatpush1.msra.mxu0 0.0
    %2717 = vmatprep.subr.mxu0 0.0
    %2718 = vmatpush1.msra.mxu0 0.0
    %2719 = vmatprep.subr.mxu0 0.0
    %2720 = vmatpush1.msra.mxu0 0.0
    %2721 = vmatprep.subr.mxu0 0.0
    %2722 = vmatpush1.msra.mxu0 0.0
    %2723 = vmatprep.subr.mxu0 0.0
    %2724 = vmatpush1.msra.mxu0 0.0
    %2725 = vmatprep.mubr.f32.mxu0 0.0
    %v2726 = vand.u32 %v36, 4294901760
    %2727 = vmatmul.mubr.f32.gmra.mrb[0].mxu0 %v2726
    %v2728 = vpop.f32.mrb[0].mxu0
    %v2729 = vadd.f32 %v2610, %v2728
    %v2730 = vpop.f32.mrb[0].mxu0
    %2731 = vdwg.mxu0
    %2732 = vmatprep.subr.mxu0 0.0
    %v2733 = vand.u32 %v2162, 4294901760
    %2734 = vmatpush1.msra.mxu0 %v2733
    %2735 = vmatprep.subr.mxu0 0.0
    %v2736 = vand.u32 %v2163, 4294901760
    %2737 = vmatpush1.msra.mxu0 %v2736
    %2738 = vmatprep.subr.mxu0 0.0
    %v2739 = vand.u32 %v2164, 4294901760
    %2740 = vmatpush1.msra.mxu0 %v2739
    %2741 = vmatprep.subr.mxu0 0.0
    %v2742 = vand.u32 %v2165, 4294901760
    %2743 = vmatpush1.msra.mxu0 %v2742
    %2744 = vmatprep.subr.mxu0 0.0
    %v2745 = vand.u32 %v2166, 4294901760
    %2746 = vmatpush1.msra.mxu0 %v2745
    %2747 = vmatprep.subr.mxu0 0.0
    %v2748 = vand.u32 %v2167, 4294901760
    %2749 = vmatpush1.msra.mxu0 %v2748
    %2750 = vmatprep.subr.mxu0 0.0
    %v2751 = vand.u32 %v2168, 4294901760
    %2752 = vmatpush1.msra.mxu0 %v2751
    %2753 = vmatprep.subr.mxu0 0.0
    %v2754 = vand.u32 %v2169, 4294901760
    %2755 = vmatpush1.msra.mxu0 %v2754
    %2756 = vmatprep.subr.mxu0 0.0
    %v2757 = vand.u32 %v2170, 4294901760
    %2758 = vmatpush1.msra.mxu0 %v2757
    %2759 = vmatprep.subr.mxu0 0.0
    %v2760 = vand.u32 %v2171, 4294901760
    %2761 = vmatpush1.msra.mxu0 %v2760
    %2762 = vmatprep.subr.mxu0 0.0
    %v2763 = vand.u32 %v2172, 4294901760
    %2764 = vmatpush1.msra.mxu0 %v2763
    %2765 = vmatprep.subr.mxu0 0.0
    %v2766 = vand.u32 %v2173, 4294901760
    %2767 = vmatpush1.msra.mxu0 %v2766
    %2768 = vmatprep.subr.mxu0 0.0
    %v2769 = vand.u32 %v2174, 4294901760
    %2770 = vmatpush1.msra.mxu0 %v2769
    %2771 = vmatprep.subr.mxu0 0.0
    %v2772 = vand.u32 %v2175, 4294901760
    %2773 = vmatpush1.msra.mxu0 %v2772
    %2774 = vmatprep.subr.mxu0 0.0
    %v2775 = vand.u32 %v2176, 4294901760
    %2776 = vmatpush1.msra.mxu0 %v2775
    %2777 = vmatprep.subr.mxu0 0.0
    %v2778 = vand.u32 %v2177, 4294901760
    %2779 = vmatpush1.msra.mxu0 %v2778
    %2780 = vmatprep.subr.mxu0 0.0
    %2781 = vmatpush1.msra.mxu0 0.0
    %2782 = vmatprep.subr.mxu0 0.0
    %2783 = vmatpush1.msra.mxu0 0.0
    %2784 = vmatprep.subr.mxu0 0.0
    %2785 = vmatpush1.msra.mxu0 0.0
    %2786 = vmatprep.subr.mxu0 0.0
    %2787 = vmatpush1.msra.mxu0 0.0
    %2788 = vmatprep.subr.mxu0 0.0
    %2789 = vmatpush1.msra.mxu0 0.0
    %2790 = vmatprep.subr.mxu0 0.0
    %2791 = vmatpush1.msra.mxu0 0.0
    %2792 = vmatprep.subr.mxu0 0.0
    %2793 = vmatpush1.msra.mxu0 0.0
    %2794 = vmatprep.subr.mxu0 0.0
    %2795 = vmatpush1.msra.mxu0 0.0
    %2796 = vmatprep.subr.mxu0 0.0
    %2797 = vmatpush1.msra.mxu0 0.0
    %2798 = vmatprep.subr.mxu0 0.0
    %2799 = vmatpush1.msra.mxu0 0.0
    %2800 = vmatprep.subr.mxu0 0.0
    %2801 = vmatpush1.msra.mxu0 0.0
    %2802 = vmatprep.subr.mxu0 0.0
    %2803 = vmatpush1.msra.mxu0 0.0
    %2804 = vmatprep.subr.mxu0 0.0
    %2805 = vmatpush1.msra.mxu0 0.0
    %2806 = vmatprep.subr.mxu0 0.0
    %2807 = vmatpush1.msra.mxu0 0.0
    %2808 = vmatprep.subr.mxu0 0.0
    %2809 = vmatpush1.msra.mxu0 0.0
    %2810 = vmatprep.subr.mxu0 0.0
    %2811 = vmatpush1.msra.mxu0 0.0
    %2812 = vmatprep.mubr.f32.mxu0 0.0
    %v2813 = vand.u32 %v36, 4294901760
    %2814 = vmatmul.mubr.f32.gmra.mrb[0].mxu0 %v2813
    %v2815 = vpop.f32.mrb[0].mxu0
    %v2816 = vadd.f32 %v2729, %v2815
    %v2817 = vpop.f32.mrb[0].mxu0
    %2818 = vdwg.mxu0
    %v2819 = vmax.f32 %v2128, %v2816
    %v2820 = vsub.f32 %v744, %v2819
    %v2821 = vmul.f32 %v2820, 1.442695
    %v2822 = vpow.pop %v2821
    %v2823 = vadd.f32 %v2822, 0.0
    %vm2824 = vcmp.eq.s32.totalorder %v37, 0
    %v2825 = vsel %vm2824, %v744, 0.0
    %v2826 = vsel %vm2824, %v2822, 0.0
    %v2827 = vsel %vm2824, 0.1, 0.0
    %v2828 = vsub.f32 %v1434, %v2819
    %v2829 = vmul.f32 %v2828, 1.442695
    %v2830 = vpow.pop %v2829
    %v2831 = vadd.f32 %v2823, %v2830
    %vm2832 = vcmp.eq.s32.totalorder %v37, 1
    %v2833 = vsel %vm2832, %v1434, %v2825
    %v2834 = vsel %vm2832, %v2830, %v2826
    %v2835 = vsel %vm2832, 0.2, %v2827
    %v2836 = vsub.f32 %v2125, %v2819
    %v2837 = vmul.f32 %v2836, 1.442695
    %v2838 = vpow.pop %v2837
    %v2839 = vadd.f32 %v2831, %v2838
    %vm2840 = vcmp.eq.s32.totalorder %v37, 2
    %v2841 = vsel %vm2840, %v2125, %v2833
    %v2842 = vsel %vm2840, %v2838, %v2834
    %v2843 = vsel %vm2840, 0.3, %v2835
    %v2844 = vsub.f32 %v2816, %v2819
    %v2845 = vmul.f32 %v2844, 1.442695
    %v2846 = vpow.pop %v2845
    %v2847 = vadd.f32 %v2839, %v2846
    %vm2848 = vcmp.eq.s32.totalorder %v37, 3
    %v2849 = vsel %vm2848, %v2816, %v2841
    %v2850 = vsel %vm2848, %v2846, %v2842
    %v2851 = vsel %vm2848, 0.4, %v2843
    %v2852 = vlog2.pop %v2847
    %v2853 = vmul.f32 %v2852, 0.6931472
    %v2854 = vadd.f32 %v2819, %v2853
    %v2855 = vsub.f32 %v2854, %v2849
    %v2856 = vmax.f32 %v2855, 0.0
    %v2857 = vrcp.pop %v2847
    %v2858 = vmul.f32 %v2850, %v2857
    %v2859 = vsub.f32 1.0, %v2858
    %v2860 = vmul.f32 %v2859, %v2859
    %v2861 = vmul.f32 %v2860, %v2856
    %v2862 = vmul.f32 %v2861, %v2851
    %s2863 = smul.u32 0, 8
    %v2864 = vstv %s2863
    %v2865 = vadd.s32 %v2864, %v39
    %vm2866 = vcmp.lt.s32.totalorder %v2865, 8
    %v2867 = vsel %vm2866, %v2862, 0.0
    %vm2868 = vcmask 261120
    %v2869 = vsel %vm2868, %v2867, 0.0
    %2870 = vadd.xlane.f32.xlu0 %v2869
    %v2871 = vpop.xlane.xlu0 %2870
    %v2872 = vrot.slane %v2871, 4
    %v2873 = vadd.f32 %v2871, %v2872
    %v2874 = vrot.slane %v2873, 2
    %v2875 = vadd.f32 %v2873, %v2874
    %v2876 = vrot.slane %v2875, 1
    %v2877 = vadd.f32 %v2875, %v2876
    %s2878 = vtos %v2877
    %v2879 = vstv %s2878
    %vm2880 = vcmask 0
    %2881 = vst.msk [vmem:[#allocation7] sm:$0x1] %vm2880, %v2879
    // Predicated region
    $region18: #{tpu_custom_call.1} parent=1 // pred_check
      _
    $region19: #{tpu_custom_call.1} parent=1 // pred_check_branch
      %2883 = sbr.rel (0) target = $region21
    $region20: #{tpu_custom_call.1} parent=1 // pred_region
      %s2885 = ssub.s32 16, 16
      %2886 = vsyncadd [#allocation4], %s2885
      %s2888 = sshll.u32 [#allocation7], 4
      %s2889 = int_to_ptr.vmem [resolvable:$true] %s2888
      %2891 = dma.vmem_to_hbm [thread:$0]  %s2889, 16, %s2, [#allocation4]
    $region21: #{tpu_custom_call.1} parent=1 // pred_fallthru
      _
    // Predicated region
    $region22: #{tpu_custom_call.1} parent=1 // pred_check
      _
    $region23: #{tpu_custom_call.1} parent=1 // pred_check_branch
      %2893 = sbr.rel (0) target = $region25
    $region24: #{tpu_custom_call.1} parent=1 // pred_region
      %2894 = dma.done [#allocation4], 16
    $region25: #{tpu_custom_call.1} parent=1 // pred_fallthru
      _
    %2895 = vsyncpa [#allocation3], 1
    %2896 = vsyncpa [#allocation6], 1
    %2897 = vsyncpa [#allocation4], 1

</llo_original>
